<compile_context>
chip_gen: v6e
topology: v6e:2x2x1
jax: 0.10.0
libtpu: 0.0.40
codegen_flags: <defaults>
</compile_context>

<pallas_src>
import functools
import math

import jax
import jax.numpy as jnp
from jax import lax
from jax.experimental import pallas as pl
from jax.experimental.pallas import tpu as pltpu


# ----------------------------- fused Pallas kernel ---------------------------

def _coattention_kernel(
    s_in_ref, xm_ref,
    w_is_ref, b_is_ref, g_is_ref, be_is_ref,        # in_single_proj + in_single_ln
    w_im_ref, b_im_ref, g_im_ref, be_im_ref,        # in_multi_proj + in_multi_ln
    w_qksv_ref, b_qksv_ref,                         # fused q/k/single_v proj (S, 3S)
    w_mv_ref, b_mv_ref,                             # multi_v_proj (M, M)
    w_so_ref, b_so_ref,                             # single_out_proj
    w_mo_ref, b_mo_ref,                             # multi_out_proj
    g_ms_ref, be_ms_ref,                            # mca_single_out_ln
    g_mm_ref, be_mm_ref,                            # mca_multi_out_ln
    w_qkv2_ref, b_qkv2_ref,                         # fused mha q/k/v (S, 3S)
    w_o2_ref, b_o2_ref,                             # mha out_proj
    g_mha_ref, be_mha_ref,                          # mha_ln
    w_cs_ref, w_cm_ref, b_cat_ref,                  # cat_proj split: (S,E), (M,E), bias
    out_ref,                                        # (C*F, E) rows ordered (c, f)
    *, F, C, H, S, M, eps,
):
    hs = S // H
    hm = M // H

    def mm(a, b):
        return jnp.dot(a, b, preferred_element_type=jnp.float32)

    def layer_norm(x, g, b):
        mu = jnp.mean(x, axis=-1, keepdims=True)
        var = jnp.mean((x - mu) ** 2, axis=-1, keepdims=True)
        return (x - mu) * lax.rsqrt(var + eps) * g + b

    def softmax(s):
        s = s - jnp.max(s, axis=-1, keepdims=True)
        p = jnp.exp(s)
        return p * pl.reciprocal(jnp.sum(p, axis=-1, keepdims=True), approx=True)

    x_res = xm_ref[...].astype(jnp.float32)          # (C*F, E) original input rows (residual)
    s_in = s_in_ref[...].astype(jnp.float32)         # (F, E)   per-group-mean rows

    # ---- input projections + LayerNorm (fused) ----
    s0 = layer_norm(mm(s_in, w_is_ref[...]) + b_is_ref[...],
                    g_is_ref[...], be_is_ref[...])                       # (F, S)
    m0 = layer_norm(mm(x_res, w_im_ref[...]) + b_im_ref[...],
                    g_im_ref[...], be_im_ref[...])                       # (C*F, M)

    # ---- MultiHeadCoAttention ----
    qksv = mm(s0, w_qksv_ref[...]) + b_qksv_ref[...]                     # (F, 3S): q | k | single_v
    mv = mm(m0, w_mv_ref[...]) + b_mv_ref[...]                           # (C*F, M)

    scale = 1.0 / math.sqrt(hs)
    single_heads = []
    multi_heads = [[] for _ in range(C)]
    for h in range(H):                                                   # static, unrolled
        q_h = qksv[:, h * hs:(h + 1) * hs]
        k_h = qksv[:, S + h * hs:S + (h + 1) * hs]
        att = softmax(mm(q_h, k_h.T) * scale)                            # (F, F)
        # fold single_v and all C multi_v channels into one lane-dense value matrix
        v_parts = [qksv[:, 2 * S + h * hs:2 * S + (h + 1) * hs]]
        for c in range(C):
            v_parts.append(mv[c * F:(c + 1) * F, h * hm:(h + 1) * hm])
        v_h = jnp.concatenate(v_parts, axis=1)                           # (F, hs + C*hm)
        r = mm(att, v_h)                                                 # one MXU pass per head
        single_heads.append(r[:, :hs])
        for c in range(C):
            multi_heads[c].append(r[:, hs + c * hm:hs + (c + 1) * hm])

    single_res = jnp.concatenate(single_heads, axis=1)                   # (F, S)
    multi_res = jnp.concatenate(
        [jnp.concatenate(multi_heads[c], axis=1) for c in range(C)], axis=0)  # (C*F, M)

    # ---- MCA out-projections + residual + LayerNorm (fused) ----
    s1 = layer_norm(s0 + mm(single_res, w_so_ref[...]) + b_so_ref[...],
                    g_ms_ref[...], be_ms_ref[...])                       # (F, S)
    m1 = layer_norm(m0 + mm(multi_res, w_mo_ref[...]) + b_mo_ref[...],
                    g_mm_ref[...], be_mm_ref[...])                       # (C*F, M)

    # ---- cross-frame multi-head attention (fused QKV) ----
    qkv2 = mm(s1, w_qkv2_ref[...]) + b_qkv2_ref[...]                     # (F, 3S)
    scale2 = 1.0 / math.sqrt(hs)
    mha_heads = []
    for h in range(H):
        q2 = qkv2[:, h * hs:(h + 1) * hs]
        k2 = qkv2[:, S + h * hs:S + (h + 1) * hs]
        v2 = qkv2[:, 2 * S + h * hs:2 * S + (h + 1) * hs]
        att2 = softmax(mm(q2, k2.T) * scale2)
        mha_heads.append(mm(att2, v2))
    mha_cat = jnp.concatenate(mha_heads, axis=1)                         # (F, S)
    s2 = layer_norm(mm(mha_cat, w_o2_ref[...]) + b_o2_ref[...] + s1,
                    g_mha_ref[...], be_mha_ref[...])                     # (F, S)
    # TODO(synk): attn_dropout=0.0 in the reference config, so dropout is a no-op and omitted.

    # ---- fused cat-projection (split weights; no tile/concat materialized) + residual ----
    out_single = mm(s2, w_cs_ref[...])                                   # (F, E) computed once
    out_multi = mm(m1, w_cm_ref[...]) + b_cat_ref[...]                   # (C*F, E)
    out = jnp.concatenate([out_single] * C, axis=0) + out_multi + x_res  # broadcast over channels
    out_ref[...] = out.astype(out_ref.dtype)                             # single lane-dense store


# ----------------------------- parameters ------------------------------------

def init_params(key, embed_dim, single_dim, multi_dim, n_heads):
    def lin(k, din, dout, scale=0.05):
        kw, kb = jax.random.split(k)
        return {
            "w": jax.random.normal(kw, (din, dout), jnp.float32) * scale,  # stored (in, out)
            "b": jax.random.normal(kb, (dout,), jnp.float32) * 0.01,
        }

    def ln(d):
        return {"g": jnp.ones((d,), jnp.float32), "b": jnp.zeros((d,), jnp.float32)}

    keys = jax.random.split(key, 13)
    p = {}
    p["in_single_proj"] = lin(keys[0], embed_dim, single_dim)
    p["in_single_ln"] = ln(single_dim)
    p["in_multi_proj"] = lin(keys[1], embed_dim, multi_dim)
    p["in_multi_ln"] = ln(multi_dim)
    # MultiHeadCoAttention
    p["q_proj"] = lin(keys[2], single_dim, single_dim)
    p["k_proj"] = lin(keys[3], single_dim, single_dim)
    p["multi_v_proj"] = lin(keys[4], multi_dim, multi_dim)
    p["single_v_proj"] = lin(keys[5], single_dim, single_dim)
    p["multi_out_proj"] = lin(keys[6], multi_dim, multi_dim)
    p["single_out_proj"] = lin(keys[7], single_dim, single_dim)
    p["mca_multi_out_ln"] = ln(multi_dim)
    p["mca_single_out_ln"] = ln(single_dim)
    # cross_frame_mha (nn.MultiheadAttention: in_proj split into q/k/v + out_proj)
    p["mha_q"] = lin(keys[8], single_dim, single_dim)
    p["mha_k"] = lin(keys[9], single_dim, single_dim)
    p["mha_v"] = lin(keys[10], single_dim, single_dim)
    p["mha_out"] = lin(keys[11], single_dim, single_dim)
    p["mha_ln"] = ln(single_dim)
    p["cat_proj"] = lin(keys[12], single_dim + multi_dim, embed_dim)
    return p


# ----------------------------- forward ---------------------------------------

def coattention_forward(params, x, active_channels, *, single_dim, multi_dim, n_heads):
    F, B, C, E = x.shape
    S, M, H = single_dim, multi_dim, n_heads
    assert S % H == 0 and M % H == 0
    assert F % 8 == 0, "frames must be a multiple of 8 for the (8,128) block constraint"
    p = params

    # per-group mean over active channels (data-dependent Python-list slicing; JAX glue,
    # mirrors the PyTorch reference).  Requires exactly B non-zero groups.
    means = []
    i = 0
    for ac in active_channels:
        if ac == 0:
            continue
        means.append(jnp.mean(x[:, i, :ac, :], axis=1, keepdims=True))
        i += 1
    assert len(means) == B, "need one non-zero active_channels entry per batch element"
    single_in = jnp.concatenate(means, axis=1)                              # (F, B, E)

    # batch-major row layouts (only glue transposes in the whole forward)
    s_in2d = jnp.transpose(single_in, (1, 0, 2)).reshape(B * F, E)          # rows (b, f)
    xm2d = jnp.transpose(x, (1, 2, 0, 3)).reshape(B * C * F, E)             # rows (b, c, f)

    row = lambda v: v.reshape(1, -1)

    # fuse q/k/single_v and mha q/k/v projection weights; split cat_proj weight
    w_qksv = jnp.concatenate([p["q_proj"]["w"], p["k_proj"]["w"], p["single_v_proj"]["w"]], axis=1)
    b_qksv = jnp.concatenate([p["q_proj"]["b"], p["k_proj"]["b"], p["single_v_proj"]["b"]])
    w_qkv2 = jnp.concatenate([p["mha_q"]["w"], p["mha_k"]["w"], p["mha_v"]["w"]], axis=1)
    b_qkv2 = jnp.concatenate([p["mha_q"]["b"], p["mha_k"]["b"], p["mha_v"]["b"]])

    weights = [
        p["in_single_proj"]["w"], row(p["in_single_proj"]["b"]),
        row(p["in_single_ln"]["g"]), row(p["in_single_ln"]["b"]),
        p["in_multi_proj"]["w"], row(p["in_multi_proj"]["b"]),
        row(p["in_multi_ln"]["g"]), row(p["in_multi_ln"]["b"]),
        w_qksv, row(b_qksv),
        p["multi_v_proj"]["w"], row(p["multi_v_proj"]["b"]),
        p["single_out_proj"]["w"], row(p["single_out_proj"]["b"]),
        p["multi_out_proj"]["w"], row(p["multi_out_proj"]["b"]),
        row(p["mca_single_out_ln"]["g"]), row(p["mca_single_out_ln"]["b"]),
        row(p["mca_multi_out_ln"]["g"]), row(p["mca_multi_out_ln"]["b"]),
        w_qkv2, row(b_qkv2),
        p["mha_out"]["w"], row(p["mha_out"]["b"]),
        row(p["mha_ln"]["g"]), row(p["mha_ln"]["b"]),
        p["cat_proj"]["w"][:S], p["cat_proj"]["w"][S:], row(p["cat_proj"]["b"]),
    ]

    in_specs = [
        pl.BlockSpec((F, E), lambda b: (b, 0)),            # single-stream rows of batch b
        pl.BlockSpec((C * F, E), lambda b: (b, 0)),        # multi-stream rows of batch b
    ] + [pl.BlockSpec(w.shape, lambda b: (0, 0)) for w in weights]   # weights: fetched once

    out2d = pl.pallas_call(
        functools.partial(_coattention_kernel, F=F, C=C, H=H, S=S, M=M, eps=1e-5),
        out_shape=jax.ShapeDtypeStruct((B * C * F, E), x.dtype),
        grid=(B,),
        in_specs=in_specs,
        out_specs=pl.BlockSpec((C * F, E), lambda b: (b, 0)),
        compiler_params=pltpu.CompilerParams(dimension_semantics=("parallel",)),
    )(s_in2d, xm2d, *weights)

    return out2d.reshape(B, C, F, E).transpose(2, 0, 1, 3)   # back to (F, B, C, E)


# ----------------------------- main -------------------------------------------

if __name__ == "__main__":
    EMBED, SINGLE, MULTI, HEADS = 64, 32, 16, 4
    FRAMES, B, CHANS = 8, 2, 4

    key = jax.random.PRNGKey(0)
    kx, kp = jax.random.split(key)
    x = jax.random.normal(kx, (FRAMES, B, CHANS, EMBED), jnp.float32)
    params = init_params(kp, EMBED, SINGLE, MULTI, HEADS)
    active_channels = [4, 3]   # one non-zero entry per batch element

    out = coattention_forward(params, x, active_channels,
                              single_dim=SINGLE, multi_dim=MULTI, n_heads=HEADS)
    out = jax.block_until_ready(out)
    assert out.shape == (FRAMES, B, CHANS, EMBED)
    assert bool(jnp.all(jnp.isfinite(out)))
    print("KERNEL_OK")
</pallas_src>

<mosaic_0001>
module attributes {stable_mosaic.version = 11 : i64} {
  func.func @_coattention_kernel(%arg0: i32, %arg1: memref<8x64xf32, #tpu.memory_space<vmem>>, %arg2: memref<32x64xf32, #tpu.memory_space<vmem>>, %arg3: memref<64x32xf32, #tpu.memory_space<vmem>>, %arg4: memref<1x32xf32, #tpu.memory_space<vmem>>, %arg5: memref<1x32xf32, #tpu.memory_space<vmem>>, %arg6: memref<1x32xf32, #tpu.memory_space<vmem>>, %arg7: memref<64x16xf32, #tpu.memory_space<vmem>>, %arg8: memref<1x16xf32, #tpu.memory_space<vmem>>, %arg9: memref<1x16xf32, #tpu.memory_space<vmem>>, %arg10: memref<1x16xf32, #tpu.memory_space<vmem>>, %arg11: memref<32x96xf32, #tpu.memory_space<vmem>>, %arg12: memref<1x96xf32, #tpu.memory_space<vmem>>, %arg13: memref<16x16xf32, #tpu.memory_space<vmem>>, %arg14: memref<1x16xf32, #tpu.memory_space<vmem>>, %arg15: memref<32x32xf32, #tpu.memory_space<vmem>>, %arg16: memref<1x32xf32, #tpu.memory_space<vmem>>, %arg17: memref<16x16xf32, #tpu.memory_space<vmem>>, %arg18: memref<1x16xf32, #tpu.memory_space<vmem>>, %arg19: memref<1x32xf32, #tpu.memory_space<vmem>>, %arg20: memref<1x32xf32, #tpu.memory_space<vmem>>, %arg21: memref<1x16xf32, #tpu.memory_space<vmem>>, %arg22: memref<1x16xf32, #tpu.memory_space<vmem>>, %arg23: memref<32x96xf32, #tpu.memory_space<vmem>>, %arg24: memref<1x96xf32, #tpu.memory_space<vmem>>, %arg25: memref<32x32xf32, #tpu.memory_space<vmem>>, %arg26: memref<1x32xf32, #tpu.memory_space<vmem>>, %arg27: memref<1x32xf32, #tpu.memory_space<vmem>>, %arg28: memref<1x32xf32, #tpu.memory_space<vmem>>, %arg29: memref<32x64xf32, #tpu.memory_space<vmem>>, %arg30: memref<16x64xf32, #tpu.memory_space<vmem>>, %arg31: memref<1x64xf32, #tpu.memory_space<vmem>>, %arg32: memref<32x64xf32, #tpu.memory_space<vmem>>) attributes {dimension_semantics = [#tpu.dimension_semantics<parallel>], iteration_bounds = array<i64: 2>, scalar_prefetch = 0 : i64, scratch_operands = 0 : i64, tpu.core_type = #tpu.core_type<tc>, window_params = [{transform_indices = @transform_0, window_bounds = array<i64: 8, 64>}, {transform_indices = @transform_1, window_bounds = array<i64: 32, 64>}, {pipeline_mode = #tpu.pipeline_mode<synchronous>, transform_indices = @transform_2, window_bounds = array<i64: 64, 32>}, {pipeline_mode = #tpu.pipeline_mode<synchronous>, transform_indices = @transform_3, window_bounds = array<i64: 1, 32>}, {pipeline_mode = #tpu.pipeline_mode<synchronous>, transform_indices = @transform_4, window_bounds = array<i64: 1, 32>}, {pipeline_mode = #tpu.pipeline_mode<synchronous>, transform_indices = @transform_5, window_bounds = array<i64: 1, 32>}, {pipeline_mode = #tpu.pipeline_mode<synchronous>, transform_indices = @transform_6, window_bounds = array<i64: 64, 16>}, {pipeline_mode = #tpu.pipeline_mode<synchronous>, transform_indices = @transform_7, window_bounds = array<i64: 1, 16>}, {pipeline_mode = #tpu.pipeline_mode<synchronous>, transform_indices = @transform_8, window_bounds = array<i64: 1, 16>}, {pipeline_mode = #tpu.pipeline_mode<synchronous>, transform_indices = @transform_9, window_bounds = array<i64: 1, 16>}, {pipeline_mode = #tpu.pipeline_mode<synchronous>, transform_indices = @transform_10, window_bounds = array<i64: 32, 96>}, {pipeline_mode = #tpu.pipeline_mode<synchronous>, transform_indices = @transform_11, window_bounds = array<i64: 1, 96>}, {pipeline_mode = #tpu.pipeline_mode<synchronous>, transform_indices = @transform_12, window_bounds = array<i64: 16, 16>}, {pipeline_mode = #tpu.pipeline_mode<synchronous>, transform_indices = @transform_13, window_bounds = array<i64: 1, 16>}, {pipeline_mode = #tpu.pipeline_mode<synchronous>, transform_indices = @transform_14, window_bounds = array<i64: 32, 32>}, {pipeline_mode = #tpu.pipeline_mode<synchronous>, transform_indices = @transform_15, window_bounds = array<i64: 1, 32>}, {pipeline_mode = #tpu.pipeline_mode<synchronous>, transform_indices = @transform_16, window_bounds = array<i64: 16, 16>}, {pipeline_mode = #tpu.pipeline_mode<synchronous>, transform_indices = @transform_17, window_bounds = array<i64: 1, 16>}, {pipeline_mode = #tpu.pipeline_mode<synchronous>, transform_indices = @transform_18, window_bounds = array<i64: 1, 32>}, {pipeline_mode = #tpu.pipeline_mode<synchronous>, transform_indices = @transform_19, window_bounds = array<i64: 1, 32>}, {pipeline_mode = #tpu.pipeline_mode<synchronous>, transform_indices = @transform_20, window_bounds = array<i64: 1, 16>}, {pipeline_mode = #tpu.pipeline_mode<synchronous>, transform_indices = @transform_21, window_bounds = array<i64: 1, 16>}, {pipeline_mode = #tpu.pipeline_mode<synchronous>, transform_indices = @transform_22, window_bounds = array<i64: 32, 96>}, {pipeline_mode = #tpu.pipeline_mode<synchronous>, transform_indices = @transform_23, window_bounds = array<i64: 1, 96>}, {pipeline_mode = #tpu.pipeline_mode<synchronous>, transform_indices = @transform_24, window_bounds = array<i64: 32, 32>}, {pipeline_mode = #tpu.pipeline_mode<synchronous>, transform_indices = @transform_25, window_bounds = array<i64: 1, 32>}, {pipeline_mode = #tpu.pipeline_mode<synchronous>, transform_indices = @transform_26, window_bounds = array<i64: 1, 32>}, {pipeline_mode = #tpu.pipeline_mode<synchronous>, transform_indices = @transform_27, window_bounds = array<i64: 1, 32>}, {pipeline_mode = #tpu.pipeline_mode<synchronous>, transform_indices = @transform_28, window_bounds = array<i64: 32, 64>}, {pipeline_mode = #tpu.pipeline_mode<synchronous>, transform_indices = @transform_29, window_bounds = array<i64: 16, 64>}, {pipeline_mode = #tpu.pipeline_mode<synchronous>, transform_indices = @transform_30, window_bounds = array<i64: 1, 64>}, {transform_indices = @transform_31, window_bounds = array<i64: 32, 64>}]} {
    %c0 = arith.constant 0 : index
    %c0_0 = arith.constant 0 : index
    %0 = vector.load %arg2[%c0, %c0_0] : memref<32x64xf32, #tpu.memory_space<vmem>>, vector<32x64xf32>
    %c0_1 = arith.constant 0 : index
    %c0_2 = arith.constant 0 : index
    %1 = vector.load %arg1[%c0_1, %c0_2] : memref<8x64xf32, #tpu.memory_space<vmem>>, vector<8x64xf32>
    %c0_3 = arith.constant 0 : index
    %c0_4 = arith.constant 0 : index
    %2 = vector.load %arg3[%c0_3, %c0_4] : memref<64x32xf32, #tpu.memory_space<vmem>>, vector<64x32xf32>
    %cst = arith.constant dense<0.000000e+00> : vector<8x32xf32>
    %3 = tpu.matmul %1, %2, %cst {dimension_numbers = #tpu.dot_dimension_numbers<[1], [0], [0], [1], [0, 0, 1, 1], [], []>} : vector<8x64xf32>, vector<64x32xf32>, vector<8x32xf32> -> vector<8x32xf32>
    %c0_5 = arith.constant 0 : index
    %c0_6 = arith.constant 0 : index
    %4 = vector.load %arg4[%c0_5, %c0_6] : memref<1x32xf32, #tpu.memory_space<vmem>>, vector<1x32xf32>
    %5 = vector.broadcast %4 : vector<1x32xf32> to vector<8x32xf32>
    %6 = arith.addf %3, %5 : vector<8x32xf32>
    %c0_7 = arith.constant 0 : index
    %c0_8 = arith.constant 0 : index
    %7 = vector.load %arg5[%c0_7, %c0_8] : memref<1x32xf32, #tpu.memory_space<vmem>>, vector<1x32xf32>
    %c0_9 = arith.constant 0 : index
    %c0_10 = arith.constant 0 : index
    %8 = vector.load %arg6[%c0_9, %c0_10] : memref<1x32xf32, #tpu.memory_space<vmem>>, vector<1x32xf32>
    %cst_11 = arith.constant dense<0.000000e+00> : vector<8xf32>
    %9 = vector.multi_reduction <add>, %6, %cst_11 [1] : vector<8x32xf32> to vector<8xf32>
    %10 = vector.shape_cast %9 : vector<8xf32> to vector<8x1xf32>
    %cst_12 = arith.constant 3.200000e+01 : f32
    %11 = vector.broadcast %cst_12 : f32 to vector<8x1xf32>
    %12 = arith.divf %10, %11 : vector<8x1xf32>
    %13 = vector.broadcast %12 : vector<8x1xf32> to vector<8x32xf32>
    %14 = arith.subf %6, %13 : vector<8x32xf32>
    %15 = arith.mulf %14, %14 : vector<8x32xf32>
    %cst_13 = arith.constant dense<0.000000e+00> : vector<8xf32>
    %16 = vector.multi_reduction <add>, %15, %cst_13 [1] : vector<8x32xf32> to vector<8xf32>
    %17 = vector.shape_cast %16 : vector<8xf32> to vector<8x1xf32>
    %cst_14 = arith.constant 3.200000e+01 : f32
    %18 = vector.broadcast %cst_14 : f32 to vector<8x1xf32>
    %19 = arith.divf %17, %18 : vector<8x1xf32>
    %20 = vector.broadcast %12 : vector<8x1xf32> to vector<8x32xf32>
    %21 = arith.subf %6, %20 : vector<8x32xf32>
    %cst_15 = arith.constant 9.99999974E-6 : f32
    %22 = vector.broadcast %cst_15 : f32 to vector<8x1xf32>
    %23 = arith.addf %19, %22 : vector<8x1xf32>
    %24 = math.rsqrt %23 : vector<8x1xf32>
    %25 = vector.broadcast %24 : vector<8x1xf32> to vector<8x32xf32>
    %26 = arith.mulf %21, %25 : vector<8x32xf32>
    %27 = vector.broadcast %7 : vector<1x32xf32> to vector<8x32xf32>
    %28 = arith.mulf %26, %27 : vector<8x32xf32>
    %29 = vector.broadcast %8 : vector<1x32xf32> to vector<8x32xf32>
    %30 = arith.addf %28, %29 : vector<8x32xf32>
    %c0_16 = arith.constant 0 : index
    %c0_17 = arith.constant 0 : index
    %31 = vector.load %arg7[%c0_16, %c0_17] : memref<64x16xf32, #tpu.memory_space<vmem>>, vector<64x16xf32>
    %cst_18 = arith.constant dense<0.000000e+00> : vector<32x16xf32>
    %32 = tpu.matmul %0, %31, %cst_18 {dimension_numbers = #tpu.dot_dimension_numbers<[1], [0], [0], [1], [0, 0, 1, 1], [], []>} : vector<32x64xf32>, vector<64x16xf32>, vector<32x16xf32> -> vector<32x16xf32>
    %c0_19 = arith.constant 0 : index
    %c0_20 = arith.constant 0 : index
    %33 = vector.load %arg8[%c0_19, %c0_20] : memref<1x16xf32, #tpu.memory_space<vmem>>, vector<1x16xf32>
    %34 = vector.broadcast %33 : vector<1x16xf32> to vector<32x16xf32>
    %35 = arith.addf %32, %34 : vector<32x16xf32>
    %c0_21 = arith.constant 0 : index
    %c0_22 = arith.constant 0 : index
    %36 = vector.load %arg9[%c0_21, %c0_22] : memref<1x16xf32, #tpu.memory_space<vmem>>, vector<1x16xf32>
    %c0_23 = arith.constant 0 : index
    %c0_24 = arith.constant 0 : index
    %37 = vector.load %arg10[%c0_23, %c0_24] : memref<1x16xf32, #tpu.memory_space<vmem>>, vector<1x16xf32>
    %cst_25 = arith.constant dense<0.000000e+00> : vector<32xf32>
    %38 = vector.multi_reduction <add>, %35, %cst_25 [1] : vector<32x16xf32> to vector<32xf32>
    %39 = vector.shape_cast %38 : vector<32xf32> to vector<32x1xf32>
    %cst_26 = arith.constant 1.600000e+01 : f32
    %40 = vector.broadcast %cst_26 : f32 to vector<32x1xf32>
    %41 = arith.divf %39, %40 : vector<32x1xf32>
    %42 = vector.broadcast %41 : vector<32x1xf32> to vector<32x16xf32>
    %43 = arith.subf %35, %42 : vector<32x16xf32>
    %44 = arith.mulf %43, %43 : vector<32x16xf32>
    %cst_27 = arith.constant dense<0.000000e+00> : vector<32xf32>
    %45 = vector.multi_reduction <add>, %44, %cst_27 [1] : vector<32x16xf32> to vector<32xf32>
    %46 = vector.shape_cast %45 : vector<32xf32> to vector<32x1xf32>
    %cst_28 = arith.constant 1.600000e+01 : f32
    %47 = vector.broadcast %cst_28 : f32 to vector<32x1xf32>
    %48 = arith.divf %46, %47 : vector<32x1xf32>
    %49 = vector.broadcast %41 : vector<32x1xf32> to vector<32x16xf32>
    %50 = arith.subf %35, %49 : vector<32x16xf32>
    %cst_29 = arith.constant 9.99999974E-6 : f32
    %51 = vector.broadcast %cst_29 : f32 to vector<32x1xf32>
    %52 = arith.addf %48, %51 : vector<32x1xf32>
    %53 = math.rsqrt %52 : vector<32x1xf32>
    %54 = vector.broadcast %53 : vector<32x1xf32> to vector<32x16xf32>
    %55 = arith.mulf %50, %54 : vector<32x16xf32>
    %56 = vector.broadcast %36 : vector<1x16xf32> to vector<32x16xf32>
    %57 = arith.mulf %55, %56 : vector<32x16xf32>
    %58 = vector.broadcast %37 : vector<1x16xf32> to vector<32x16xf32>
    %59 = arith.addf %57, %58 : vector<32x16xf32>
    %c0_30 = arith.constant 0 : index
    %c0_31 = arith.constant 0 : index
    %60 = vector.load %arg11[%c0_30, %c0_31] : memref<32x96xf32, #tpu.memory_space<vmem>>, vector<32x96xf32>
    %cst_32 = arith.constant dense<0.000000e+00> : vector<8x96xf32>
    %61 = tpu.matmul %30, %60, %cst_32 {dimension_numbers = #tpu.dot_dimension_numbers<[1], [0], [0], [1], [0, 0, 1, 1], [], []>} : vector<8x32xf32>, vector<32x96xf32>, vector<8x96xf32> -> vector<8x96xf32>
    %c0_33 = arith.constant 0 : index
    %c0_34 = arith.constant 0 : index
    %62 = vector.load %arg12[%c0_33, %c0_34] : memref<1x96xf32, #tpu.memory_space<vmem>>, vector<1x96xf32>
    %63 = vector.broadcast %62 : vector<1x96xf32> to vector<8x96xf32>
    %64 = arith.addf %61, %63 : vector<8x96xf32>
    %c0_35 = arith.constant 0 : index
    %c0_36 = arith.constant 0 : index
    %65 = vector.load %arg13[%c0_35, %c0_36] : memref<16x16xf32, #tpu.memory_space<vmem>>, vector<16x16xf32>
    %cst_37 = arith.constant dense<0.000000e+00> : vector<32x16xf32>
    %66 = tpu.matmul %59, %65, %cst_37 {dimension_numbers = #tpu.dot_dimension_numbers<[1], [0], [0], [1], [0, 0, 1, 1], [], []>} : vector<32x16xf32>, vector<16x16xf32>, vector<32x16xf32> -> vector<32x16xf32>
    %c0_38 = arith.constant 0 : index
    %c0_39 = arith.constant 0 : index
    %67 = vector.load %arg14[%c0_38, %c0_39] : memref<1x16xf32, #tpu.memory_space<vmem>>, vector<1x16xf32>
    %68 = vector.broadcast %67 : vector<1x16xf32> to vector<32x16xf32>
    %69 = arith.addf %66, %68 : vector<32x16xf32>
    %70 = vector.extract_strided_slice %64 {offsets = [0, 0], sizes = [8, 8], strides = [1, 1]} : vector<8x96xf32> to vector<8x8xf32>
    %71 = vector.extract_strided_slice %64 {offsets = [0, 32], sizes = [8, 8], strides = [1, 1]} : vector<8x96xf32> to vector<8x8xf32>
    %72 = tpu.transpose %71, [1, 0] : vector<8x8xf32> -> vector<8x8xf32>
    %cst_40 = arith.constant dense<0.000000e+00> : vector<8x8xf32>
    %73 = tpu.matmul %70, %72, %cst_40 {dimension_numbers = #tpu.dot_dimension_numbers<[1], [0], [0], [1], [0, 0, 1, 1], [], []>} : vector<8x8xf32>, vector<8x8xf32>, vector<8x8xf32> -> vector<8x8xf32>
    %cst_41 = arith.constant 0.353553385 : f32
    %74 = vector.broadcast %cst_41 : f32 to vector<8x8xf32>
    %75 = arith.mulf %73, %74 : vector<8x8xf32>
    %cst_42 = arith.constant dense<0xFF800000> : vector<8xf32>
    %76 = vector.multi_reduction <maximumf>, %75, %cst_42 [1] : vector<8x8xf32> to vector<8xf32>
    %77 = vector.shape_cast %76 : vector<8xf32> to vector<8x1xf32>
    %78 = vector.broadcast %77 : vector<8x1xf32> to vector<8x8xf32>
    %79 = arith.subf %75, %78 : vector<8x8xf32>
    %80 = math.exp %79 : vector<8x8xf32>
    %cst_43 = arith.constant dense<0.000000e+00> : vector<8xf32>
    %81 = vector.multi_reduction <add>, %80, %cst_43 [1] : vector<8x8xf32> to vector<8xf32>
    %82 = vector.shape_cast %81 : vector<8xf32> to vector<8x1xf32>
    %83 = tpu.reciprocal %82 {approx = true} : vector<8x1xf32> -> vector<8x1xf32>
    %84 = vector.broadcast %83 : vector<8x1xf32> to vector<8x8xf32>
    %85 = arith.mulf %80, %84 : vector<8x8xf32>
    %86 = vector.extract_strided_slice %64 {offsets = [0, 64], sizes = [8, 8], strides = [1, 1]} : vector<8x96xf32> to vector<8x8xf32>
    %87 = vector.extract_strided_slice %69 {offsets = [0, 0], sizes = [8, 4], strides = [1, 1]} : vector<32x16xf32> to vector<8x4xf32>
    %88 = vector.extract_strided_slice %69 {offsets = [8, 0], sizes = [8, 4], strides = [1, 1]} : vector<32x16xf32> to vector<8x4xf32>
    %89 = vector.extract_strided_slice %69 {offsets = [16, 0], sizes = [8, 4], strides = [1, 1]} : vector<32x16xf32> to vector<8x4xf32>
    %90 = vector.extract_strided_slice %69 {offsets = [24, 0], sizes = [8, 4], strides = [1, 1]} : vector<32x16xf32> to vector<8x4xf32>
    %91 = tpu.concatenate %86, %87, %88, %89, %90 in 1 : vector<8x8xf32>, vector<8x4xf32>, vector<8x4xf32>, vector<8x4xf32>, vector<8x4xf32> -> vector<8x24xf32>
    %cst_44 = arith.constant dense<0.000000e+00> : vector<8x24xf32>
    %92 = tpu.matmul %85, %91, %cst_44 {dimension_numbers = #tpu.dot_dimension_numbers<[1], [0], [0], [1], [0, 0, 1, 1], [], []>} : vector<8x8xf32>, vector<8x24xf32>, vector<8x24xf32> -> vector<8x24xf32>
    %93 = vector.extract_strided_slice %92 {offsets = [0, 0], sizes = [8, 8], strides = [1, 1]} : vector<8x24xf32> to vector<8x8xf32>
    %94 = vector.extract_strided_slice %92 {offsets = [0, 8], sizes = [8, 4], strides = [1, 1]} : vector<8x24xf32> to vector<8x4xf32>
    %95 = vector.extract_strided_slice %92 {offsets = [0, 12], sizes = [8, 4], strides = [1, 1]} : vector<8x24xf32> to vector<8x4xf32>
    %96 = vector.extract_strided_slice %92 {offsets = [0, 16], sizes = [8, 4], strides = [1, 1]} : vector<8x24xf32> to vector<8x4xf32>
    %97 = vector.extract_strided_slice %92 {offsets = [0, 20], sizes = [8, 4], strides = [1, 1]} : vector<8x24xf32> to vector<8x4xf32>
    %98 = vector.extract_strided_slice %64 {offsets = [0, 8], sizes = [8, 8], strides = [1, 1]} : vector<8x96xf32> to vector<8x8xf32>
    %99 = vector.extract_strided_slice %64 {offsets = [0, 40], sizes = [8, 8], strides = [1, 1]} : vector<8x96xf32> to vector<8x8xf32>
    %100 = tpu.transpose %99, [1, 0] : vector<8x8xf32> -> vector<8x8xf32>
    %cst_45 = arith.constant dense<0.000000e+00> : vector<8x8xf32>
    %101 = tpu.matmul %98, %100, %cst_45 {dimension_numbers = #tpu.dot_dimension_numbers<[1], [0], [0], [1], [0, 0, 1, 1], [], []>} : vector<8x8xf32>, vector<8x8xf32>, vector<8x8xf32> -> vector<8x8xf32>
    %cst_46 = arith.constant 0.353553385 : f32
    %102 = vector.broadcast %cst_46 : f32 to vector<8x8xf32>
    %103 = arith.mulf %101, %102 : vector<8x8xf32>
    %cst_47 = arith.constant dense<0xFF800000> : vector<8xf32>
    %104 = vector.multi_reduction <maximumf>, %103, %cst_47 [1] : vector<8x8xf32> to vector<8xf32>
    %105 = vector.shape_cast %104 : vector<8xf32> to vector<8x1xf32>
    %106 = vector.broadcast %105 : vector<8x1xf32> to vector<8x8xf32>
    %107 = arith.subf %103, %106 : vector<8x8xf32>
    %108 = math.exp %107 : vector<8x8xf32>
    %cst_48 = arith.constant dense<0.000000e+00> : vector<8xf32>
    %109 = vector.multi_reduction <add>, %108, %cst_48 [1] : vector<8x8xf32> to vector<8xf32>
    %110 = vector.shape_cast %109 : vector<8xf32> to vector<8x1xf32>
    %111 = tpu.reciprocal %110 {approx = true} : vector<8x1xf32> -> vector<8x1xf32>
    %112 = vector.broadcast %111 : vector<8x1xf32> to vector<8x8xf32>
    %113 = arith.mulf %108, %112 : vector<8x8xf32>
    %114 = vector.extract_strided_slice %64 {offsets = [0, 72], sizes = [8, 8], strides = [1, 1]} : vector<8x96xf32> to vector<8x8xf32>
    %115 = vector.extract_strided_slice %69 {offsets = [0, 4], sizes = [8, 4], strides = [1, 1]} : vector<32x16xf32> to vector<8x4xf32>
    %116 = vector.extract_strided_slice %69 {offsets = [8, 4], sizes = [8, 4], strides = [1, 1]} : vector<32x16xf32> to vector<8x4xf32>
    %117 = vector.extract_strided_slice %69 {offsets = [16, 4], sizes = [8, 4], strides = [1, 1]} : vector<32x16xf32> to vector<8x4xf32>
    %118 = vector.extract_strided_slice %69 {offsets = [24, 4], sizes = [8, 4], strides = [1, 1]} : vector<32x16xf32> to vector<8x4xf32>
    %119 = tpu.concatenate %114, %115, %116, %117, %118 in 1 : vector<8x8xf32>, vector<8x4xf32>, vector<8x4xf32>, vector<8x4xf32>, vector<8x4xf32> -> vector<8x24xf32>
    %cst_49 = arith.constant dense<0.000000e+00> : vector<8x24xf32>
    %120 = tpu.matmul %113, %119, %cst_49 {dimension_numbers = #tpu.dot_dimension_numbers<[1], [0], [0], [1], [0, 0, 1, 1], [], []>} : vector<8x8xf32>, vector<8x24xf32>, vector<8x24xf32> -> vector<8x24xf32>
    %121 = vector.extract_strided_slice %120 {offsets = [0, 0], sizes = [8, 8], strides = [1, 1]} : vector<8x24xf32> to vector<8x8xf32>
    %122 = vector.extract_strided_slice %120 {offsets = [0, 8], sizes = [8, 4], strides = [1, 1]} : vector<8x24xf32> to vector<8x4xf32>
    %123 = vector.extract_strided_slice %120 {offsets = [0, 12], sizes = [8, 4], strides = [1, 1]} : vector<8x24xf32> to vector<8x4xf32>
    %124 = vector.extract_strided_slice %120 {offsets = [0, 16], sizes = [8, 4], strides = [1, 1]} : vector<8x24xf32> to vector<8x4xf32>
    %125 = vector.extract_strided_slice %120 {offsets = [0, 20], sizes = [8, 4], strides = [1, 1]} : vector<8x24xf32> to vector<8x4xf32>
    %126 = vector.extract_strided_slice %64 {offsets = [0, 16], sizes = [8, 8], strides = [1, 1]} : vector<8x96xf32> to vector<8x8xf32>
    %127 = vector.extract_strided_slice %64 {offsets = [0, 48], sizes = [8, 8], strides = [1, 1]} : vector<8x96xf32> to vector<8x8xf32>
    %128 = tpu.transpose %127, [1, 0] : vector<8x8xf32> -> vector<8x8xf32>
    %cst_50 = arith.constant dense<0.000000e+00> : vector<8x8xf32>
    %129 = tpu.matmul %126, %128, %cst_50 {dimension_numbers = #tpu.dot_dimension_numbers<[1], [0], [0], [1], [0, 0, 1, 1], [], []>} : vector<8x8xf32>, vector<8x8xf32>, vector<8x8xf32> -> vector<8x8xf32>
    %cst_51 = arith.constant 0.353553385 : f32
    %130 = vector.broadcast %cst_51 : f32 to vector<8x8xf32>
    %131 = arith.mulf %129, %130 : vector<8x8xf32>
    %cst_52 = arith.constant dense<0xFF800000> : vector<8xf32>
    %132 = vector.multi_reduction <maximumf>, %131, %cst_52 [1] : vector<8x8xf32> to vector<8xf32>
    %133 = vector.shape_cast %132 : vector<8xf32> to vector<8x1xf32>
    %134 = vector.broadcast %133 : vector<8x1xf32> to vector<8x8xf32>
    %135 = arith.subf %131, %134 : vector<8x8xf32>
    %136 = math.exp %135 : vector<8x8xf32>
    %cst_53 = arith.constant dense<0.000000e+00> : vector<8xf32>
    %137 = vector.multi_reduction <add>, %136, %cst_53 [1] : vector<8x8xf32> to vector<8xf32>
    %138 = vector.shape_cast %137 : vector<8xf32> to vector<8x1xf32>
    %139 = tpu.reciprocal %138 {approx = true} : vector<8x1xf32> -> vector<8x1xf32>
    %140 = vector.broadcast %139 : vector<8x1xf32> to vector<8x8xf32>
    %141 = arith.mulf %136, %140 : vector<8x8xf32>
    %142 = vector.extract_strided_slice %64 {offsets = [0, 80], sizes = [8, 8], strides = [1, 1]} : vector<8x96xf32> to vector<8x8xf32>
    %143 = vector.extract_strided_slice %69 {offsets = [0, 8], sizes = [8, 4], strides = [1, 1]} : vector<32x16xf32> to vector<8x4xf32>
    %144 = vector.extract_strided_slice %69 {offsets = [8, 8], sizes = [8, 4], strides = [1, 1]} : vector<32x16xf32> to vector<8x4xf32>
    %145 = vector.extract_strided_slice %69 {offsets = [16, 8], sizes = [8, 4], strides = [1, 1]} : vector<32x16xf32> to vector<8x4xf32>
    %146 = vector.extract_strided_slice %69 {offsets = [24, 8], sizes = [8, 4], strides = [1, 1]} : vector<32x16xf32> to vector<8x4xf32>
    %147 = tpu.concatenate %142, %143, %144, %145, %146 in 1 : vector<8x8xf32>, vector<8x4xf32>, vector<8x4xf32>, vector<8x4xf32>, vector<8x4xf32> -> vector<8x24xf32>
    %cst_54 = arith.constant dense<0.000000e+00> : vector<8x24xf32>
    %148 = tpu.matmul %141, %147, %cst_54 {dimension_numbers = #tpu.dot_dimension_numbers<[1], [0], [0], [1], [0, 0, 1, 1], [], []>} : vector<8x8xf32>, vector<8x24xf32>, vector<8x24xf32> -> vector<8x24xf32>
    %149 = vector.extract_strided_slice %148 {offsets = [0, 0], sizes = [8, 8], strides = [1, 1]} : vector<8x24xf32> to vector<8x8xf32>
    %150 = vector.extract_strided_slice %148 {offsets = [0, 8], sizes = [8, 4], strides = [1, 1]} : vector<8x24xf32> to vector<8x4xf32>
    %151 = vector.extract_strided_slice %148 {offsets = [0, 12], sizes = [8, 4], strides = [1, 1]} : vector<8x24xf32> to vector<8x4xf32>
    %152 = vector.extract_strided_slice %148 {offsets = [0, 16], sizes = [8, 4], strides = [1, 1]} : vector<8x24xf32> to vector<8x4xf32>
    %153 = vector.extract_strided_slice %148 {offsets = [0, 20], sizes = [8, 4], strides = [1, 1]} : vector<8x24xf32> to vector<8x4xf32>
    %154 = vector.extract_strided_slice %64 {offsets = [0, 24], sizes = [8, 8], strides = [1, 1]} : vector<8x96xf32> to vector<8x8xf32>
    %155 = vector.extract_strided_slice %64 {offsets = [0, 56], sizes = [8, 8], strides = [1, 1]} : vector<8x96xf32> to vector<8x8xf32>
    %156 = tpu.transpose %155, [1, 0] : vector<8x8xf32> -> vector<8x8xf32>
    %cst_55 = arith.constant dense<0.000000e+00> : vector<8x8xf32>
    %157 = tpu.matmul %154, %156, %cst_55 {dimension_numbers = #tpu.dot_dimension_numbers<[1], [0], [0], [1], [0, 0, 1, 1], [], []>} : vector<8x8xf32>, vector<8x8xf32>, vector<8x8xf32> -> vector<8x8xf32>
    %cst_56 = arith.constant 0.353553385 : f32
    %158 = vector.broadcast %cst_56 : f32 to vector<8x8xf32>
    %159 = arith.mulf %157, %158 : vector<8x8xf32>
    %cst_57 = arith.constant dense<0xFF800000> : vector<8xf32>
    %160 = vector.multi_reduction <maximumf>, %159, %cst_57 [1] : vector<8x8xf32> to vector<8xf32>
    %161 = vector.shape_cast %160 : vector<8xf32> to vector<8x1xf32>
    %162 = vector.broadcast %161 : vector<8x1xf32> to vector<8x8xf32>
    %163 = arith.subf %159, %162 : vector<8x8xf32>
    %164 = math.exp %163 : vector<8x8xf32>
    %cst_58 = arith.constant dense<0.000000e+00> : vector<8xf32>
    %165 = vector.multi_reduction <add>, %164, %cst_58 [1] : vector<8x8xf32> to vector<8xf32>
    %166 = vector.shape_cast %165 : vector<8xf32> to vector<8x1xf32>
    %167 = tpu.reciprocal %166 {approx = true} : vector<8x1xf32> -> vector<8x1xf32>
    %168 = vector.broadcast %167 : vector<8x1xf32> to vector<8x8xf32>
    %169 = arith.mulf %164, %168 : vector<8x8xf32>
    %170 = vector.extract_strided_slice %64 {offsets = [0, 88], sizes = [8, 8], strides = [1, 1]} : vector<8x96xf32> to vector<8x8xf32>
    %171 = vector.extract_strided_slice %69 {offsets = [0, 12], sizes = [8, 4], strides = [1, 1]} : vector<32x16xf32> to vector<8x4xf32>
    %172 = vector.extract_strided_slice %69 {offsets = [8, 12], sizes = [8, 4], strides = [1, 1]} : vector<32x16xf32> to vector<8x4xf32>
    %173 = vector.extract_strided_slice %69 {offsets = [16, 12], sizes = [8, 4], strides = [1, 1]} : vector<32x16xf32> to vector<8x4xf32>
    %174 = vector.extract_strided_slice %69 {offsets = [24, 12], sizes = [8, 4], strides = [1, 1]} : vector<32x16xf32> to vector<8x4xf32>
    %175 = tpu.concatenate %170, %171, %172, %173, %174 in 1 : vector<8x8xf32>, vector<8x4xf32>, vector<8x4xf32>, vector<8x4xf32>, vector<8x4xf32> -> vector<8x24xf32>
    %cst_59 = arith.constant dense<0.000000e+00> : vector<8x24xf32>
    %176 = tpu.matmul %169, %175, %cst_59 {dimension_numbers = #tpu.dot_dimension_numbers<[1], [0], [0], [1], [0, 0, 1, 1], [], []>} : vector<8x8xf32>, vector<8x24xf32>, vector<8x24xf32> -> vector<8x24xf32>
    %177 = vector.extract_strided_slice %176 {offsets = [0, 0], sizes = [8, 8], strides = [1, 1]} : vector<8x24xf32> to vector<8x8xf32>
    %178 = vector.extract_strided_slice %176 {offsets = [0, 8], sizes = [8, 4], strides = [1, 1]} : vector<8x24xf32> to vector<8x4xf32>
    %179 = vector.extract_strided_slice %176 {offsets = [0, 12], sizes = [8, 4], strides = [1, 1]} : vector<8x24xf32> to vector<8x4xf32>
    %180 = vector.extract_strided_slice %176 {offsets = [0, 16], sizes = [8, 4], strides = [1, 1]} : vector<8x24xf32> to vector<8x4xf32>
    %181 = vector.extract_strided_slice %176 {offsets = [0, 20], sizes = [8, 4], strides = [1, 1]} : vector<8x24xf32> to vector<8x4xf32>
    %182 = tpu.concatenate %93, %121, %149, %177 in 1 : vector<8x8xf32>, vector<8x8xf32>, vector<8x8xf32>, vector<8x8xf32> -> vector<8x32xf32>
    %183 = tpu.concatenate %94, %122, %150, %178 in 1 : vector<8x4xf32>, vector<8x4xf32>, vector<8x4xf32>, vector<8x4xf32> -> vector<8x16xf32>
    %184 = tpu.concatenate %95, %123, %151, %179 in 1 : vector<8x4xf32>, vector<8x4xf32>, vector<8x4xf32>, vector<8x4xf32> -> vector<8x16xf32>
    %185 = tpu.concatenate %96, %124, %152, %180 in 1 : vector<8x4xf32>, vector<8x4xf32>, vector<8x4xf32>, vector<8x4xf32> -> vector<8x16xf32>
    %186 = tpu.concatenate %97, %125, %153, %181 in 1 : vector<8x4xf32>, vector<8x4xf32>, vector<8x4xf32>, vector<8x4xf32> -> vector<8x16xf32>
    %187 = tpu.concatenate %183, %184, %185, %186 in 0 : vector<8x16xf32>, vector<8x16xf32>, vector<8x16xf32>, vector<8x16xf32> -> vector<32x16xf32>
    %c0_60 = arith.constant 0 : index
    %c0_61 = arith.constant 0 : index
    %188 = vector.load %arg15[%c0_60, %c0_61] : memref<32x32xf32, #tpu.memory_space<vmem>>, vector<32x32xf32>
    %cst_62 = arith.constant dense<0.000000e+00> : vector<8x32xf32>
    %189 = tpu.matmul %182, %188, %cst_62 {dimension_numbers = #tpu.dot_dimension_numbers<[1], [0], [0], [1], [0, 0, 1, 1], [], []>} : vector<8x32xf32>, vector<32x32xf32>, vector<8x32xf32> -> vector<8x32xf32>
    %190 = arith.addf %30, %189 : vector<8x32xf32>
    %c0_63 = arith.constant 0 : index
    %c0_64 = arith.constant 0 : index
    %191 = vector.load %arg16[%c0_63, %c0_64] : memref<1x32xf32, #tpu.memory_space<vmem>>, vector<1x32xf32>
    %192 = vector.broadcast %191 : vector<1x32xf32> to vector<8x32xf32>
    %193 = arith.addf %190, %192 : vector<8x32xf32>
    %c0_65 = arith.constant 0 : index
    %c0_66 = arith.constant 0 : index
    %194 = vector.load %arg19[%c0_65, %c0_66] : memref<1x32xf32, #tpu.memory_space<vmem>>, vector<1x32xf32>
    %c0_67 = arith.constant 0 : index
    %c0_68 = arith.constant 0 : index
    %195 = vector.load %arg20[%c0_67, %c0_68] : memref<1x32xf32, #tpu.memory_space<vmem>>, vector<1x32xf32>
    %cst_69 = arith.constant dense<0.000000e+00> : vector<8xf32>
    %196 = vector.multi_reduction <add>, %193, %cst_69 [1] : vector<8x32xf32> to vector<8xf32>
    %197 = vector.shape_cast %196 : vector<8xf32> to vector<8x1xf32>
    %cst_70 = arith.constant 3.200000e+01 : f32
    %198 = vector.broadcast %cst_70 : f32 to vector<8x1xf32>
    %199 = arith.divf %197, %198 : vector<8x1xf32>
    %200 = vector.broadcast %199 : vector<8x1xf32> to vector<8x32xf32>
    %201 = arith.subf %193, %200 : vector<8x32xf32>
    %202 = arith.mulf %201, %201 : vector<8x32xf32>
    %cst_71 = arith.constant dense<0.000000e+00> : vector<8xf32>
    %203 = vector.multi_reduction <add>, %202, %cst_71 [1] : vector<8x32xf32> to vector<8xf32>
    %204 = vector.shape_cast %203 : vector<8xf32> to vector<8x1xf32>
    %cst_72 = arith.constant 3.200000e+01 : f32
    %205 = vector.broadcast %cst_72 : f32 to vector<8x1xf32>
    %206 = arith.divf %204, %205 : vector<8x1xf32>
    %207 = vector.broadcast %199 : vector<8x1xf32> to vector<8x32xf32>
    %208 = arith.subf %193, %207 : vector<8x32xf32>
    %cst_73 = arith.constant 9.99999974E-6 : f32
    %209 = vector.broadcast %cst_73 : f32 to vector<8x1xf32>
    %210 = arith.addf %206, %209 : vector<8x1xf32>
    %211 = math.rsqrt %210 : vector<8x1xf32>
    %212 = vector.broadcast %211 : vector<8x1xf32> to vector<8x32xf32>
    %213 = arith.mulf %208, %212 : vector<8x32xf32>
    %214 = vector.broadcast %194 : vector<1x32xf32> to vector<8x32xf32>
    %215 = arith.mulf %213, %214 : vector<8x32xf32>
    %216 = vector.broadcast %195 : vector<1x32xf32> to vector<8x32xf32>
    %217 = arith.addf %215, %216 : vector<8x32xf32>
    %c0_74 = arith.constant 0 : index
    %c0_75 = arith.constant 0 : index
    %218 = vector.load %arg17[%c0_74, %c0_75] : memref<16x16xf32, #tpu.memory_space<vmem>>, vector<16x16xf32>
    %cst_76 = arith.constant dense<0.000000e+00> : vector<32x16xf32>
    %219 = tpu.matmul %187, %218, %cst_76 {dimension_numbers = #tpu.dot_dimension_numbers<[1], [0], [0], [1], [0, 0, 1, 1], [], []>} : vector<32x16xf32>, vector<16x16xf32>, vector<32x16xf32> -> vector<32x16xf32>
    %220 = arith.addf %59, %219 : vector<32x16xf32>
    %c0_77 = arith.constant 0 : index
    %c0_78 = arith.constant 0 : index
    %221 = vector.load %arg18[%c0_77, %c0_78] : memref<1x16xf32, #tpu.memory_space<vmem>>, vector<1x16xf32>
    %222 = vector.broadcast %221 : vector<1x16xf32> to vector<32x16xf32>
    %223 = arith.addf %220, %222 : vector<32x16xf32>
    %c0_79 = arith.constant 0 : index
    %c0_80 = arith.constant 0 : index
    %224 = vector.load %arg21[%c0_79, %c0_80] : memref<1x16xf32, #tpu.memory_space<vmem>>, vector<1x16xf32>
    %c0_81 = arith.constant 0 : index
    %c0_82 = arith.constant 0 : index
    %225 = vector.load %arg22[%c0_81, %c0_82] : memref<1x16xf32, #tpu.memory_space<vmem>>, vector<1x16xf32>
    %cst_83 = arith.constant dense<0.000000e+00> : vector<32xf32>
    %226 = vector.multi_reduction <add>, %223, %cst_83 [1] : vector<32x16xf32> to vector<32xf32>
    %227 = vector.shape_cast %226 : vector<32xf32> to vector<32x1xf32>
    %cst_84 = arith.constant 1.600000e+01 : f32
    %228 = vector.broadcast %cst_84 : f32 to vector<32x1xf32>
    %229 = arith.divf %227, %228 : vector<32x1xf32>
    %230 = vector.broadcast %229 : vector<32x1xf32> to vector<32x16xf32>
    %231 = arith.subf %223, %230 : vector<32x16xf32>
    %232 = arith.mulf %231, %231 : vector<32x16xf32>
    %cst_85 = arith.constant dense<0.000000e+00> : vector<32xf32>
    %233 = vector.multi_reduction <add>, %232, %cst_85 [1] : vector<32x16xf32> to vector<32xf32>
    %234 = vector.shape_cast %233 : vector<32xf32> to vector<32x1xf32>
    %cst_86 = arith.constant 1.600000e+01 : f32
    %235 = vector.broadcast %cst_86 : f32 to vector<32x1xf32>
    %236 = arith.divf %234, %235 : vector<32x1xf32>
    %237 = vector.broadcast %229 : vector<32x1xf32> to vector<32x16xf32>
    %238 = arith.subf %223, %237 : vector<32x16xf32>
    %cst_87 = arith.constant 9.99999974E-6 : f32
    %239 = vector.broadcast %cst_87 : f32 to vector<32x1xf32>
    %240 = arith.addf %236, %239 : vector<32x1xf32>
    %241 = math.rsqrt %240 : vector<32x1xf32>
    %242 = vector.broadcast %241 : vector<32x1xf32> to vector<32x16xf32>
    %243 = arith.mulf %238, %242 : vector<32x16xf32>
    %244 = vector.broadcast %224 : vector<1x16xf32> to vector<32x16xf32>
    %245 = arith.mulf %243, %244 : vector<32x16xf32>
    %246 = vector.broadcast %225 : vector<1x16xf32> to vector<32x16xf32>
    %247 = arith.addf %245, %246 : vector<32x16xf32>
    %c0_88 = arith.constant 0 : index
    %c0_89 = arith.constant 0 : index
    %248 = vector.load %arg23[%c0_88, %c0_89] : memref<32x96xf32, #tpu.memory_space<vmem>>, vector<32x96xf32>
    %cst_90 = arith.constant dense<0.000000e+00> : vector<8x96xf32>
    %249 = tpu.matmul %217, %248, %cst_90 {dimension_numbers = #tpu.dot_dimension_numbers<[1], [0], [0], [1], [0, 0, 1, 1], [], []>} : vector<8x32xf32>, vector<32x96xf32>, vector<8x96xf32> -> vector<8x96xf32>
    %c0_91 = arith.constant 0 : index
    %c0_92 = arith.constant 0 : index
    %250 = vector.load %arg24[%c0_91, %c0_92] : memref<1x96xf32, #tpu.memory_space<vmem>>, vector<1x96xf32>
    %251 = vector.broadcast %250 : vector<1x96xf32> to vector<8x96xf32>
    %252 = arith.addf %249, %251 : vector<8x96xf32>
    %253 = vector.extract_strided_slice %252 {offsets = [0, 0], sizes = [8, 8], strides = [1, 1]} : vector<8x96xf32> to vector<8x8xf32>
    %254 = vector.extract_strided_slice %252 {offsets = [0, 32], sizes = [8, 8], strides = [1, 1]} : vector<8x96xf32> to vector<8x8xf32>
    %255 = vector.extract_strided_slice %252 {offsets = [0, 64], sizes = [8, 8], strides = [1, 1]} : vector<8x96xf32> to vector<8x8xf32>
    %256 = tpu.transpose %254, [1, 0] : vector<8x8xf32> -> vector<8x8xf32>
    %cst_93 = arith.constant dense<0.000000e+00> : vector<8x8xf32>
    %257 = tpu.matmul %253, %256, %cst_93 {dimension_numbers = #tpu.dot_dimension_numbers<[1], [0], [0], [1], [0, 0, 1, 1], [], []>} : vector<8x8xf32>, vector<8x8xf32>, vector<8x8xf32> -> vector<8x8xf32>
    %cst_94 = arith.constant 0.353553385 : f32
    %258 = vector.broadcast %cst_94 : f32 to vector<8x8xf32>
    %259 = arith.mulf %257, %258 : vector<8x8xf32>
    %cst_95 = arith.constant dense<0xFF800000> : vector<8xf32>
    %260 = vector.multi_reduction <maximumf>, %259, %cst_95 [1] : vector<8x8xf32> to vector<8xf32>
    %261 = vector.shape_cast %260 : vector<8xf32> to vector<8x1xf32>
    %262 = vector.broadcast %261 : vector<8x1xf32> to vector<8x8xf32>
    %263 = arith.subf %259, %262 : vector<8x8xf32>
    %264 = math.exp %263 : vector<8x8xf32>
    %cst_96 = arith.constant dense<0.000000e+00> : vector<8xf32>
    %265 = vector.multi_reduction <add>, %264, %cst_96 [1] : vector<8x8xf32> to vector<8xf32>
    %266 = vector.shape_cast %265 : vector<8xf32> to vector<8x1xf32>
    %267 = tpu.reciprocal %266 {approx = true} : vector<8x1xf32> -> vector<8x1xf32>
    %268 = vector.broadcast %267 : vector<8x1xf32> to vector<8x8xf32>
    %269 = arith.mulf %264, %268 : vector<8x8xf32>
    %cst_97 = arith.constant dense<0.000000e+00> : vector<8x8xf32>
    %270 = tpu.matmul %269, %255, %cst_97 {dimension_numbers = #tpu.dot_dimension_numbers<[1], [0], [0], [1], [0, 0, 1, 1], [], []>} : vector<8x8xf32>, vector<8x8xf32>, vector<8x8xf32> -> vector<8x8xf32>
    %271 = vector.extract_strided_slice %252 {offsets = [0, 8], sizes = [8, 8], strides = [1, 1]} : vector<8x96xf32> to vector<8x8xf32>
    %272 = vector.extract_strided_slice %252 {offsets = [0, 40], sizes = [8, 8], strides = [1, 1]} : vector<8x96xf32> to vector<8x8xf32>
    %273 = vector.extract_strided_slice %252 {offsets = [0, 72], sizes = [8, 8], strides = [1, 1]} : vector<8x96xf32> to vector<8x8xf32>
    %274 = tpu.transpose %272, [1, 0] : vector<8x8xf32> -> vector<8x8xf32>
    %cst_98 = arith.constant dense<0.000000e+00> : vector<8x8xf32>
    %275 = tpu.matmul %271, %274, %cst_98 {dimension_numbers = #tpu.dot_dimension_numbers<[1], [0], [0], [1], [0, 0, 1, 1], [], []>} : vector<8x8xf32>, vector<8x8xf32>, vector<8x8xf32> -> vector<8x8xf32>
    %cst_99 = arith.constant 0.353553385 : f32
    %276 = vector.broadcast %cst_99 : f32 to vector<8x8xf32>
    %277 = arith.mulf %275, %276 : vector<8x8xf32>
    %cst_100 = arith.constant dense<0xFF800000> : vector<8xf32>
    %278 = vector.multi_reduction <maximumf>, %277, %cst_100 [1] : vector<8x8xf32> to vector<8xf32>
    %279 = vector.shape_cast %278 : vector<8xf32> to vector<8x1xf32>
    %280 = vector.broadcast %279 : vector<8x1xf32> to vector<8x8xf32>
    %281 = arith.subf %277, %280 : vector<8x8xf32>
    %282 = math.exp %281 : vector<8x8xf32>
    %cst_101 = arith.constant dense<0.000000e+00> : vector<8xf32>
    %283 = vector.multi_reduction <add>, %282, %cst_101 [1] : vector<8x8xf32> to vector<8xf32>
    %284 = vector.shape_cast %283 : vector<8xf32> to vector<8x1xf32>
    %285 = tpu.reciprocal %284 {approx = true} : vector<8x1xf32> -> vector<8x1xf32>
    %286 = vector.broadcast %285 : vector<8x1xf32> to vector<8x8xf32>
    %287 = arith.mulf %282, %286 : vector<8x8xf32>
    %cst_102 = arith.constant dense<0.000000e+00> : vector<8x8xf32>
    %288 = tpu.matmul %287, %273, %cst_102 {dimension_numbers = #tpu.dot_dimension_numbers<[1], [0], [0], [1], [0, 0, 1, 1], [], []>} : vector<8x8xf32>, vector<8x8xf32>, vector<8x8xf32> -> vector<8x8xf32>
    %289 = vector.extract_strided_slice %252 {offsets = [0, 16], sizes = [8, 8], strides = [1, 1]} : vector<8x96xf32> to vector<8x8xf32>
    %290 = vector.extract_strided_slice %252 {offsets = [0, 48], sizes = [8, 8], strides = [1, 1]} : vector<8x96xf32> to vector<8x8xf32>
    %291 = vector.extract_strided_slice %252 {offsets = [0, 80], sizes = [8, 8], strides = [1, 1]} : vector<8x96xf32> to vector<8x8xf32>
    %292 = tpu.transpose %290, [1, 0] : vector<8x8xf32> -> vector<8x8xf32>
    %cst_103 = arith.constant dense<0.000000e+00> : vector<8x8xf32>
    %293 = tpu.matmul %289, %292, %cst_103 {dimension_numbers = #tpu.dot_dimension_numbers<[1], [0], [0], [1], [0, 0, 1, 1], [], []>} : vector<8x8xf32>, vector<8x8xf32>, vector<8x8xf32> -> vector<8x8xf32>
    %cst_104 = arith.constant 0.353553385 : f32
    %294 = vector.broadcast %cst_104 : f32 to vector<8x8xf32>
    %295 = arith.mulf %293, %294 : vector<8x8xf32>
    %cst_105 = arith.constant dense<0xFF800000> : vector<8xf32>
    %296 = vector.multi_reduction <maximumf>, %295, %cst_105 [1] : vector<8x8xf32> to vector<8xf32>
    %297 = vector.shape_cast %296 : vector<8xf32> to vector<8x1xf32>
    %298 = vector.broadcast %297 : vector<8x1xf32> to vector<8x8xf32>
    %299 = arith.subf %295, %298 : vector<8x8xf32>
    %300 = math.exp %299 : vector<8x8xf32>
    %cst_106 = arith.constant dense<0.000000e+00> : vector<8xf32>
    %301 = vector.multi_reduction <add>, %300, %cst_106 [1] : vector<8x8xf32> to vector<8xf32>
    %302 = vector.shape_cast %301 : vector<8xf32> to vector<8x1xf32>
    %303 = tpu.reciprocal %302 {approx = true} : vector<8x1xf32> -> vector<8x1xf32>
    %304 = vector.broadcast %303 : vector<8x1xf32> to vector<8x8xf32>
    %305 = arith.mulf %300, %304 : vector<8x8xf32>
    %cst_107 = arith.constant dense<0.000000e+00> : vector<8x8xf32>
    %306 = tpu.matmul %305, %291, %cst_107 {dimension_numbers = #tpu.dot_dimension_numbers<[1], [0], [0], [1], [0, 0, 1, 1], [], []>} : vector<8x8xf32>, vector<8x8xf32>, vector<8x8xf32> -> vector<8x8xf32>
    %307 = vector.extract_strided_slice %252 {offsets = [0, 24], sizes = [8, 8], strides = [1, 1]} : vector<8x96xf32> to vector<8x8xf32>
    %308 = vector.extract_strided_slice %252 {offsets = [0, 56], sizes = [8, 8], strides = [1, 1]} : vector<8x96xf32> to vector<8x8xf32>
    %309 = vector.extract_strided_slice %252 {offsets = [0, 88], sizes = [8, 8], strides = [1, 1]} : vector<8x96xf32> to vector<8x8xf32>
    %310 = tpu.transpose %308, [1, 0] : vector<8x8xf32> -> vector<8x8xf32>
    %cst_108 = arith.constant dense<0.000000e+00> : vector<8x8xf32>
    %311 = tpu.matmul %307, %310, %cst_108 {dimension_numbers = #tpu.dot_dimension_numbers<[1], [0], [0], [1], [0, 0, 1, 1], [], []>} : vector<8x8xf32>, vector<8x8xf32>, vector<8x8xf32> -> vector<8x8xf32>
    %cst_109 = arith.constant 0.353553385 : f32
    %312 = vector.broadcast %cst_109 : f32 to vector<8x8xf32>
    %313 = arith.mulf %311, %312 : vector<8x8xf32>
    %cst_110 = arith.constant dense<0xFF800000> : vector<8xf32>
    %314 = vector.multi_reduction <maximumf>, %313, %cst_110 [1] : vector<8x8xf32> to vector<8xf32>
    %315 = vector.shape_cast %314 : vector<8xf32> to vector<8x1xf32>
    %316 = vector.broadcast %315 : vector<8x1xf32> to vector<8x8xf32>
    %317 = arith.subf %313, %316 : vector<8x8xf32>
    %318 = math.exp %317 : vector<8x8xf32>
    %cst_111 = arith.constant dense<0.000000e+00> : vector<8xf32>
    %319 = vector.multi_reduction <add>, %318, %cst_111 [1] : vector<8x8xf32> to vector<8xf32>
    %320 = vector.shape_cast %319 : vector<8xf32> to vector<8x1xf32>
    %321 = tpu.reciprocal %320 {approx = true} : vector<8x1xf32> -> vector<8x1xf32>
    %322 = vector.broadcast %321 : vector<8x1xf32> to vector<8x8xf32>
    %323 = arith.mulf %318, %322 : vector<8x8xf32>
    %cst_112 = arith.constant dense<0.000000e+00> : vector<8x8xf32>
    %324 = tpu.matmul %323, %309, %cst_112 {dimension_numbers = #tpu.dot_dimension_numbers<[1], [0], [0], [1], [0, 0, 1, 1], [], []>} : vector<8x8xf32>, vector<8x8xf32>, vector<8x8xf32> -> vector<8x8xf32>
    %325 = tpu.concatenate %270, %288, %306, %324 in 1 : vector<8x8xf32>, vector<8x8xf32>, vector<8x8xf32>, vector<8x8xf32> -> vector<8x32xf32>
    %c0_113 = arith.constant 0 : index
    %c0_114 = arith.constant 0 : index
    %326 = vector.load %arg25[%c0_113, %c0_114] : memref<32x32xf32, #tpu.memory_space<vmem>>, vector<32x32xf32>
    %cst_115 = arith.constant dense<0.000000e+00> : vector<8x32xf32>
    %327 = tpu.matmul %325, %326, %cst_115 {dimension_numbers = #tpu.dot_dimension_numbers<[1], [0], [0], [1], [0, 0, 1, 1], [], []>} : vector<8x32xf32>, vector<32x32xf32>, vector<8x32xf32> -> vector<8x32xf32>
    %c0_116 = arith.constant 0 : index
    %c0_117 = arith.constant 0 : index
    %328 = vector.load %arg26[%c0_116, %c0_117] : memref<1x32xf32, #tpu.memory_space<vmem>>, vector<1x32xf32>
    %329 = vector.broadcast %328 : vector<1x32xf32> to vector<8x32xf32>
    %330 = arith.addf %327, %329 : vector<8x32xf32>
    %331 = arith.addf %330, %217 : vector<8x32xf32>
    %c0_118 = arith.constant 0 : index
    %c0_119 = arith.constant 0 : index
    %332 = vector.load %arg27[%c0_118, %c0_119] : memref<1x32xf32, #tpu.memory_space<vmem>>, vector<1x32xf32>
    %c0_120 = arith.constant 0 : index
    %c0_121 = arith.constant 0 : index
    %333 = vector.load %arg28[%c0_120, %c0_121] : memref<1x32xf32, #tpu.memory_space<vmem>>, vector<1x32xf32>
    %cst_122 = arith.constant dense<0.000000e+00> : vector<8xf32>
    %334 = vector.multi_reduction <add>, %331, %cst_122 [1] : vector<8x32xf32> to vector<8xf32>
    %335 = vector.shape_cast %334 : vector<8xf32> to vector<8x1xf32>
    %cst_123 = arith.constant 3.200000e+01 : f32
    %336 = vector.broadcast %cst_123 : f32 to vector<8x1xf32>
    %337 = arith.divf %335, %336 : vector<8x1xf32>
    %338 = vector.broadcast %337 : vector<8x1xf32> to vector<8x32xf32>
    %339 = arith.subf %331, %338 : vector<8x32xf32>
    %340 = arith.mulf %339, %339 : vector<8x32xf32>
    %cst_124 = arith.constant dense<0.000000e+00> : vector<8xf32>
    %341 = vector.multi_reduction <add>, %340, %cst_124 [1] : vector<8x32xf32> to vector<8xf32>
    %342 = vector.shape_cast %341 : vector<8xf32> to vector<8x1xf32>
    %cst_125 = arith.constant 3.200000e+01 : f32
    %343 = vector.broadcast %cst_125 : f32 to vector<8x1xf32>
    %344 = arith.divf %342, %343 : vector<8x1xf32>
    %345 = vector.broadcast %337 : vector<8x1xf32> to vector<8x32xf32>
    %346 = arith.subf %331, %345 : vector<8x32xf32>
    %cst_126 = arith.constant 9.99999974E-6 : f32
    %347 = vector.broadcast %cst_126 : f32 to vector<8x1xf32>
    %348 = arith.addf %344, %347 : vector<8x1xf32>
    %349 = math.rsqrt %348 : vector<8x1xf32>
    %350 = vector.broadcast %349 : vector<8x1xf32> to vector<8x32xf32>
    %351 = arith.mulf %346, %350 : vector<8x32xf32>
    %352 = vector.broadcast %332 : vector<1x32xf32> to vector<8x32xf32>
    %353 = arith.mulf %351, %352 : vector<8x32xf32>
    %354 = vector.broadcast %333 : vector<1x32xf32> to vector<8x32xf32>
    %355 = arith.addf %353, %354 : vector<8x32xf32>
    %c0_127 = arith.constant 0 : index
    %c0_128 = arith.constant 0 : index
    %356 = vector.load %arg29[%c0_127, %c0_128] : memref<32x64xf32, #tpu.memory_space<vmem>>, vector<32x64xf32>
    %cst_129 = arith.constant dense<0.000000e+00> : vector<8x64xf32>
    %357 = tpu.matmul %355, %356, %cst_129 {dimension_numbers = #tpu.dot_dimension_numbers<[1], [0], [0], [1], [0, 0, 1, 1], [], []>} : vector<8x32xf32>, vector<32x64xf32>, vector<8x64xf32> -> vector<8x64xf32>
    %c0_130 = arith.constant 0 : index
    %c0_131 = arith.constant 0 : index
    %358 = vector.load %arg30[%c0_130, %c0_131] : memref<16x64xf32, #tpu.memory_space<vmem>>, vector<16x64xf32>
    %cst_132 = arith.constant dense<0.000000e+00> : vector<32x64xf32>
    %359 = tpu.matmul %247, %358, %cst_132 {dimension_numbers = #tpu.dot_dimension_numbers<[1], [0], [0], [1], [0, 0, 1, 1], [], []>} : vector<32x16xf32>, vector<16x64xf32>, vector<32x64xf32> -> vector<32x64xf32>
    %c0_133 = arith.constant 0 : index
    %c0_134 = arith.constant 0 : index
    %360 = vector.load %arg31[%c0_133, %c0_134] : memref<1x64xf32, #tpu.memory_space<vmem>>, vector<1x64xf32>
    %361 = vector.broadcast %360 : vector<1x64xf32> to vector<32x64xf32>
    %362 = arith.addf %359, %361 : vector<32x64xf32>
    %363 = tpu.concatenate %357, %357, %357, %357 in 0 : vector<8x64xf32>, vector<8x64xf32>, vector<8x64xf32>, vector<8x64xf32> -> vector<32x64xf32>
    %364 = arith.addf %363, %362 : vector<32x64xf32>
    %365 = arith.addf %364, %0 : vector<32x64xf32>
    %c0_135 = arith.constant 0 : index
    %c0_136 = arith.constant 0 : index
    %366 = vector.load %arg32[%c0_135, %c0_136] : memref<32x64xf32, #tpu.memory_space<vmem>>, vector<32x64xf32>
    tpu.vector_store %arg32[%c0_135, %c0_136], %365 {strides = array<i32>} : memref<32x64xf32, #tpu.memory_space<vmem>>, vector<32x64xf32>,
    return
  }
  func.func @transform_0(%arg0: i32) -> (i32, i32) {
    %c0_i32 = arith.constant 0 : i32
    %c0_i32_0 = arith.constant 0 : i32
    return %arg0, %c0_i32 : i32, i32
  }
  func.func @transform_1(%arg0: i32) -> (i32, i32) {
    %c0_i32 = arith.constant 0 : i32
    %c0_i32_0 = arith.constant 0 : i32
    return %arg0, %c0_i32 : i32, i32
  }
  func.func @transform_2(%arg0: i32) -> (i32, i32) {
    %c0_i32 = arith.constant 0 : i32
    %c0_i32_0 = arith.constant 0 : i32
    %c0_i32_1 = arith.constant 0 : i32
    return %c0_i32, %c0_i32_0 : i32, i32
  }
  func.func @transform_3(%arg0: i32) -> (i32, i32) {
    %c0_i32 = arith.constant 0 : i32
    %c0_i32_0 = arith.constant 0 : i32
    %c0_i32_1 = arith.constant 0 : i32
    return %c0_i32, %c0_i32_0 : i32, i32
  }
  func.func @transform_4(%arg0: i32) -> (i32, i32) {
    %c0_i32 = arith.constant 0 : i32
    %c0_i32_0 = arith.constant 0 : i32
    %c0_i32_1 = arith.constant 0 : i32
    return %c0_i32, %c0_i32_0 : i32, i32
  }
  func.func @transform_5(%arg0: i32) -> (i32, i32) {
    %c0_i32 = arith.constant 0 : i32
    %c0_i32_0 = arith.constant 0 : i32
    %c0_i32_1 = arith.constant 0 : i32
    return %c0_i32, %c0_i32_0 : i32, i32
  }
  func.func @transform_6(%arg0: i32) -> (i32, i32) {
    %c0_i32 = arith.constant 0 : i32
    %c0_i32_0 = arith.constant 0 : i32
    %c0_i32_1 = arith.constant 0 : i32
    return %c0_i32, %c0_i32_0 : i32, i32
  }
  func.func @transform_7(%arg0: i32) -> (i32, i32) {
    %c0_i32 = arith.constant 0 : i32
    %c0_i32_0 = arith.constant 0 : i32
    %c0_i32_1 = arith.constant 0 : i32
    return %c0_i32, %c0_i32_0 : i32, i32
  }
  func.func @transform_8(%arg0: i32) -> (i32, i32) {
    %c0_i32 = arith.constant 0 : i32
    %c0_i32_0 = arith.constant 0 : i32
    %c0_i32_1 = arith.constant 0 : i32
    return %c0_i32, %c0_i32_0 : i32, i32
  }
  func.func @transform_9(%arg0: i32) -> (i32, i32) {
    %c0_i32 = arith.constant 0 : i32
    %c0_i32_0 = arith.constant 0 : i32
    %c0_i32_1 = arith.constant 0 : i32
    return %c0_i32, %c0_i32_0 : i32, i32
  }
  func.func @transform_10(%arg0: i32) -> (i32, i32) {
    %c0_i32 = arith.constant 0 : i32
    %c0_i32_0 = arith.constant 0 : i32
    %c0_i32_1 = arith.constant 0 : i32
    return %c0_i32, %c0_i32_0 : i32, i32
  }
  func.func @transform_11(%arg0: i32) -> (i32, i32) {
    %c0_i32 = arith.constant 0 : i32
    %c0_i32_0 = arith.constant 0 : i32
    %c0_i32_1 = arith.constant 0 : i32
    return %c0_i32, %c0_i32_0 : i32, i32
  }
  func.func @transform_12(%arg0: i32) -> (i32, i32) {
    %c0_i32 = arith.constant 0 : i32
    %c0_i32_0 = arith.constant 0 : i32
    %c0_i32_1 = arith.constant 0 : i32
    return %c0_i32, %c0_i32_0 : i32, i32
  }
  func.func @transform_13(%arg0: i32) -> (i32, i32) {
    %c0_i32 = arith.constant 0 : i32
    %c0_i32_0 = arith.constant 0 : i32
    %c0_i32_1 = arith.constant 0 : i32
    return %c0_i32, %c0_i32_0 : i32, i32
  }
  func.func @transform_14(%arg0: i32) -> (i32, i32) {
    %c0_i32 = arith.constant 0 : i32
    %c0_i32_0 = arith.constant 0 : i32
    %c0_i32_1 = arith.constant 0 : i32
    return %c0_i32, %c0_i32_0 : i32, i32
  }
  func.func @transform_15(%arg0: i32) -> (i32, i32) {
    %c0_i32 = arith.constant 0 : i32
    %c0_i32_0 = arith.constant 0 : i32
    %c0_i32_1 = arith.constant 0 : i32
    return %c0_i32, %c0_i32_0 : i32, i32
  }
  func.func @transform_16(%arg0: i32) -> (i32, i32) {
    %c0_i32 = arith.constant 0 : i32
    %c0_i32_0 = arith.constant 0 : i32
    %c0_i32_1 = arith.constant 0 : i32
    return %c0_i32, %c0_i32_0 : i32, i32
  }
  func.func @transform_17(%arg0: i32) -> (i32, i32) {
    %c0_i32 = arith.constant 0 : i32
    %c0_i32_0 = arith.constant 0 : i32
    %c0_i32_1 = arith.constant 0 : i32
    return %c0_i32, %c0_i32_0 : i32, i32
  }
  func.func @transform_18(%arg0: i32) -> (i32, i32) {
    %c0_i32 = arith.constant 0 : i32
    %c0_i32_0 = arith.constant 0 : i32
    %c0_i32_1 = arith.constant 0 : i32
    return %c0_i32, %c0_i32_0 : i32, i32
  }
  func.func @transform_19(%arg0: i32) -> (i32, i32) {
    %c0_i32 = arith.constant 0 : i32
    %c0_i32_0 = arith.constant 0 : i32
    %c0_i32_1 = arith.constant 0 : i32
    return %c0_i32, %c0_i32_0 : i32, i32
  }
  func.func @transform_20(%arg0: i32) -> (i32, i32) {
    %c0_i32 = arith.constant 0 : i32
    %c0_i32_0 = arith.constant 0 : i32
    %c0_i32_1 = arith.constant 0 : i32
    return %c0_i32, %c0_i32_0 : i32, i32
  }
  func.func @transform_21(%arg0: i32) -> (i32, i32) {
    %c0_i32 = arith.constant 0 : i32
    %c0_i32_0 = arith.constant 0 : i32
    %c0_i32_1 = arith.constant 0 : i32
    return %c0_i32, %c0_i32_0 : i32, i32
  }
  func.func @transform_22(%arg0: i32) -> (i32, i32) {
    %c0_i32 = arith.constant 0 : i32
    %c0_i32_0 = arith.constant 0 : i32
    %c0_i32_1 = arith.constant 0 : i32
    return %c0_i32, %c0_i32_0 : i32, i32
  }
  func.func @transform_23(%arg0: i32) -> (i32, i32) {
    %c0_i32 = arith.constant 0 : i32
    %c0_i32_0 = arith.constant 0 : i32
    %c0_i32_1 = arith.constant 0 : i32
    return %c0_i32, %c0_i32_0 : i32, i32
  }
  func.func @transform_24(%arg0: i32) -> (i32, i32) {
    %c0_i32 = arith.constant 0 : i32
    %c0_i32_0 = arith.constant 0 : i32
    %c0_i32_1 = arith.constant 0 : i32
    return %c0_i32, %c0_i32_0 : i32, i32
  }
  func.func @transform_25(%arg0: i32) -> (i32, i32) {
    %c0_i32 = arith.constant 0 : i32
    %c0_i32_0 = arith.constant 0 : i32
    %c0_i32_1 = arith.constant 0 : i32
    return %c0_i32, %c0_i32_0 : i32, i32
  }
  func.func @transform_26(%arg0: i32) -> (i32, i32) {
    %c0_i32 = arith.constant 0 : i32
    %c0_i32_0 = arith.constant 0 : i32
    %c0_i32_1 = arith.constant 0 : i32
    return %c0_i32, %c0_i32_0 : i32, i32
  }
  func.func @transform_27(%arg0: i32) -> (i32, i32) {
    %c0_i32 = arith.constant 0 : i32
    %c0_i32_0 = arith.constant 0 : i32
    %c0_i32_1 = arith.constant 0 : i32
    return %c0_i32, %c0_i32_0 : i32, i32
  }
  func.func @transform_28(%arg0: i32) -> (i32, i32) {
    %c0_i32 = arith.constant 0 : i32
    %c0_i32_0 = arith.constant 0 : i32
    %c0_i32_1 = arith.constant 0 : i32
    return %c0_i32, %c0_i32_0 : i32, i32
  }
  func.func @transform_29(%arg0: i32) -> (i32, i32) {
    %c0_i32 = arith.constant 0 : i32
    %c0_i32_0 = arith.constant 0 : i32
    %c0_i32_1 = arith.constant 0 : i32
    return %c0_i32, %c0_i32_0 : i32, i32
  }
  func.func @transform_30(%arg0: i32) -> (i32, i32) {
    %c0_i32 = arith.constant 0 : i32
    %c0_i32_0 = arith.constant 0 : i32
    %c0_i32_1 = arith.constant 0 : i32
    return %c0_i32, %c0_i32_0 : i32, i32
  }
  func.func @transform_31(%arg0: i32) -> (i32, i32) {
    %c0_i32 = arith.constant 0 : i32
    %c0_i32_0 = arith.constant 0 : i32
    return %arg0, %c0_i32 : i32, i32
  }
}

</mosaic_0001>

<llo_original>
// kernel: tpu_custom_call.1
$region0: #{tpu_custom_call.1}
  #allocation0 [shape = 'u32[]', space=smem, size = 0x4, offset = 0x4, fixed_abs, tag = 'smem constant byte address 0x4 - core index']
  #allocation1 [shape = 'u32[144,128]{1,0:T(1,128)}', space=vmem, size = 0x12000, scoped, tag = 'internal scratch']
  %s0 = inlined_call_operand.smem [shape: u32[32], index: -1, kind: input, shape index: {}]
  %s1 = sld [smem:[%s0]]
  %s2 = scalar_lea.smem %s0, 1
  %s3 = sld [smem:[%s2]]
  %s4 = scalar_lea.smem %s0, 2
  %s5 = sld [smem:[%s4]]
  %s6 = scalar_lea.smem %s0, 3
  %s7 = sld [smem:[%s6]]
  %s8 = scalar_lea.smem %s0, 4
  %s9 = sld [smem:[%s8]]
  %s10 = scalar_lea.smem %s0, 5
  %s11 = sld [smem:[%s10]]
  %s12 = scalar_lea.smem %s0, 6
  %s13 = sld [smem:[%s12]]
  %s14 = scalar_lea.smem %s0, 7
  %s15 = sld [smem:[%s14]]
  %s16 = scalar_lea.smem %s0, 8
  %s17 = sld [smem:[%s16]]
  %s18 = scalar_lea.smem %s0, 9
  %s19 = sld [smem:[%s18]]
  %s20 = scalar_lea.smem %s0, 10
  %s21 = sld [smem:[%s20]]
  %s22 = scalar_lea.smem %s0, 11
  %s23 = sld [smem:[%s22]]
  %s24 = scalar_lea.smem %s0, 12
  %s25 = sld [smem:[%s24]]
  %s26 = scalar_lea.smem %s0, 13
  %s27 = sld [smem:[%s26]]
  %s28 = scalar_lea.smem %s0, 14
  %s29 = sld [smem:[%s28]]
  %s30 = scalar_lea.smem %s0, 15
  %s31 = sld [smem:[%s30]]
  %s32 = scalar_lea.smem %s0, 16
  %s33 = sld [smem:[%s32]]
  %s34 = scalar_lea.smem %s0, 17
  %s35 = sld [smem:[%s34]]
  %s36 = scalar_lea.smem %s0, 18
  %s37 = sld [smem:[%s36]]
  %s38 = scalar_lea.smem %s0, 19
  %s39 = sld [smem:[%s38]]
  %s40 = scalar_lea.smem %s0, 20
  %s41 = sld [smem:[%s40]]
  %s42 = scalar_lea.smem %s0, 21
  %s43 = sld [smem:[%s42]]
  %s44 = scalar_lea.smem %s0, 22
  %s45 = sld [smem:[%s44]]
  %s46 = scalar_lea.smem %s0, 23
  %s47 = sld [smem:[%s46]]
  %s48 = scalar_lea.smem %s0, 24
  %s49 = sld [smem:[%s48]]
  %s50 = scalar_lea.smem %s0, 25
  %s51 = sld [smem:[%s50]]
  %s52 = scalar_lea.smem %s0, 26
  %s53 = sld [smem:[%s52]]
  %s54 = scalar_lea.smem %s0, 27
  %s55 = sld [smem:[%s54]]
  %s56 = scalar_lea.smem %s0, 28
  %s57 = sld [smem:[%s56]]
  %s58 = scalar_lea.smem %s0, 29
  %s59 = sld [smem:[%s58]]
  %s60 = scalar_lea.smem %s0, 30
  %s61 = sld [smem:[%s60]]
  %s62 = scalar_lea.smem %s0, 31
  %s63 = sld [smem:[%s62]]
  %s64 = sld [smem:[#allocation0]]
  $region233: #{tpu_custom_call.1} parent=0
    _
  %s66 = ssub.s32 1, %s64
  %s67 = scalar_select 0, %s66, %s64
  $region1: #{tpu_custom_call.1} parent=0
    #allocation2 [shape = 'u8[8192]{0}', space=vmem, size = 0x2000, scoped, tag = 'input window, operand 0']
    #allocation3 [shape = 's32[2]{0}', space=sflag, size = 0x8, scoped, tag = 'scoped memory for tpu_custom_call.1']
    #allocation4 [shape = 's32[2]{0}', space=sflag, size = 0x8, scoped, tag = 'scoped memory for tpu_custom_call.1']
    #allocation5 [shape = 'u8[512]{0}', space=vmem, size = 0x400, scoped, tag = 'input window, operand 5, single buffered']
    #allocation6 [shape = 's32[1]{0}', space=sflag, size = 0x4, scoped, tag = 'scoped memory for tpu_custom_call.1']
    #allocation7 [shape = 'u8[512]{0}', space=vmem, size = 0x400, scoped, tag = 'input window, operand 7, single buffered']
    #allocation8 [shape = 'u8[512]{0}', space=vmem, size = 0x400, scoped, tag = 'input window, operand 8, single buffered']
    #allocation9 [shape = 's32[1]{0}', space=sflag, size = 0x4, scoped, tag = 'scoped memory for tpu_custom_call.1']
    #allocation10 [shape = 'u8[512]{0}', space=vmem, size = 0x400, scoped, tag = 'input window, operand 9, single buffered']
    #allocation11 [shape = 'u8[512]{0}', space=vmem, size = 0x400, scoped, tag = 'input window, operand 11, single buffered']
    #allocation12 [shape = 's32[1]{0}', space=sflag, size = 0x4, scoped, tag = 'scoped memory for tpu_custom_call.1']
    #allocation13 [shape = 'u8[8192]{0}', space=vmem, size = 0x2000, scoped, tag = 'input window, operand 12, single buffered']
    #allocation14 [shape = 'u8[512]{0}', space=vmem, size = 0x400, scoped, tag = 'input window, operand 15, single buffered']
    #allocation15 [shape = 's32[1]{0}', space=sflag, size = 0x4, scoped, tag = 'scoped memory for tpu_custom_call.1']
    #allocation16 [shape = 'u8[8192]{0}', space=vmem, size = 0x2000, scoped, tag = 'input window, operand 16, single buffered']
    #allocation17 [shape = 'u8[512]{0}', space=vmem, size = 0x400, scoped, tag = 'input window, operand 17, single buffered']
    #allocation18 [shape = 's32[1]{0}', space=sflag, size = 0x4, scoped, tag = 'scoped memory for tpu_custom_call.1']
    #allocation19 [shape = 'u8[512]{0}', space=vmem, size = 0x400, scoped, tag = 'input window, operand 18, single buffered']
    #allocation20 [shape = 'u8[512]{0}', space=vmem, size = 0x400, scoped, tag = 'input window, operand 19, single buffered']
    #allocation21 [shape = 's32[1]{0}', space=sflag, size = 0x4, scoped, tag = 'scoped memory for tpu_custom_call.1']
    #allocation22 [shape = 'u8[512]{0}', space=vmem, size = 0x400, scoped, tag = 'input window, operand 20, single buffered']
    #allocation23 [shape = 'u8[512]{0}', space=vmem, size = 0x400, scoped, tag = 'input window, operand 21, single buffered']
    #allocation24 [shape = 's32[1]{0}', space=sflag, size = 0x4, scoped, tag = 'scoped memory for tpu_custom_call.1']
    #allocation25 [shape = 'u8[512]{0}', space=vmem, size = 0x400, scoped, tag = 'input window, operand 23, single buffered']
    #allocation26 [shape = 'u8[512]{0}', space=vmem, size = 0x400, scoped, tag = 'input window, operand 25, single buffered']
    #allocation27 [shape = 's32[1]{0}', space=sflag, size = 0x4, scoped, tag = 'scoped memory for tpu_custom_call.1']
    #allocation28 [shape = 'u8[512]{0}', space=vmem, size = 0x400, scoped, tag = 'input window, operand 26, single buffered']
    #allocation29 [shape = 'u8[512]{0}', space=vmem, size = 0x400, scoped, tag = 'input window, operand 27, single buffered']
    #allocation30 [shape = 's32[1]{0}', space=sflag, size = 0x4, scoped, tag = 'scoped memory for tpu_custom_call.1']
    #allocation31 [shape = 'u8[8192]{0}', space=vmem, size = 0x2000, scoped, tag = 'input window, operand 29, single buffered']
    #allocation32 [shape = 'u8[32768]{0}', space=vmem, size = 0x8000, scoped, tag = 'output window, operand 0']
    %68 = vsyncpa [#allocation3], 0
    %s69 = scalar_lea.sflag [#allocation3], 1
    %70 = vsyncpa %s69, 0
    %71 = vsyncpa [#allocation6], 0
    %72 = vsyncpa [#allocation9], 0
    %73 = vsyncpa [#allocation12], 0
    %74 = vsyncpa [#allocation15], 0
    %75 = vsyncpa [#allocation18], 0
    %76 = vsyncpa [#allocation21], 0
    %77 = vsyncpa [#allocation24], 0
    %78 = vsyncpa [#allocation27], 0
    %79 = vsyncpa [#allocation30], 0
    %80 = vsyncpa [#allocation4], 0
    %s81 = scalar_lea.sflag [#allocation4], 1
    %82 = vsyncpa %s81, 0
    loop: start=0, step=1, limit=4
    $region2: #{tpu_custom_call.1} parent=1 // loop_pre_header
      _
    $region3: #{tpu_custom_call.1} parent=1 // loop_header
      %s84 = sphi 0, %s88
      %p85 = scmp.ge.s32.totalorder %s84, 4
      %s94 = sphi 0, %s96
      %s97 = sphi 0, %s94
      %s98 = sphi 0, %s97
      %s114 = sphi 0, %s98
      %s120 = sphi 0, %s122
      %s123 = sphi 0, %s120
      %s124 = sphi 0, %s123
      %s140 = sphi 0, %s124
      %s144 = sphi 0, %s144
      %s146 = sphi 0, %s144
      %s147 = sphi 0, %s146
      %s161 = sphi 0, %s147
      %s165 = sphi 0, %s165
      %s167 = sphi 0, %s165
      %s168 = sphi 0, %s167
      %s182 = sphi 0, %s168
      %s186 = sphi 0, %s186
      %s188 = sphi 0, %s186
      %s189 = sphi 0, %s188
      %s203 = sphi 0, %s189
      %s207 = sphi 0, %s207
      %s209 = sphi 0, %s207
      %s210 = sphi 0, %s209
      %s224 = sphi 0, %s210
      %s228 = sphi 0, %s228
      %s230 = sphi 0, %s228
      %s231 = sphi 0, %s230
      %s245 = sphi 0, %s231
      %s249 = sphi 0, %s249
      %s251 = sphi 0, %s249
      %s252 = sphi 0, %s251
      %s266 = sphi 0, %s252
      %s270 = sphi 0, %s270
      %s272 = sphi 0, %s270
      %s273 = sphi 0, %s272
      %s287 = sphi 0, %s273
      %s291 = sphi 0, %s291
      %s293 = sphi 0, %s291
      %s294 = sphi 0, %s293
      %s308 = sphi 0, %s294
      %s312 = sphi 0, %s312
      %s314 = sphi 0, %s312
      %s315 = sphi 0, %s314
      %s329 = sphi 0, %s315
      %s333 = sphi 0, %s333
      %s335 = sphi 0, %s333
      %s336 = sphi 0, %s335
      %s350 = sphi 0, %s336
      %s354 = sphi 0, %s354
      %s356 = sphi 0, %s354
      %s357 = sphi 0, %s356
      %s371 = sphi 0, %s357
      %s375 = sphi 0, %s375
      %s377 = sphi 0, %s375
      %s378 = sphi 0, %s377
      %s392 = sphi 0, %s378
      %s396 = sphi 0, %s396
      %s398 = sphi 0, %s396
      %s399 = sphi 0, %s398
      %s413 = sphi 0, %s399
      %s417 = sphi 0, %s417
      %s419 = sphi 0, %s417
      %s420 = sphi 0, %s419
      %s434 = sphi 0, %s420
      %s438 = sphi 0, %s438
      %s440 = sphi 0, %s438
      %s441 = sphi 0, %s440
      %s455 = sphi 0, %s441
      %s459 = sphi 0, %s459
      %s461 = sphi 0, %s459
      %s462 = sphi 0, %s461
      %s476 = sphi 0, %s462
      %s480 = sphi 0, %s480
      %s482 = sphi 0, %s480
      %s483 = sphi 0, %s482
      %s497 = sphi 0, %s483
      %s501 = sphi 0, %s501
      %s503 = sphi 0, %s501
      %s504 = sphi 0, %s503
      %s518 = sphi 0, %s504
      %s522 = sphi 0, %s522
      %s524 = sphi 0, %s522
      %s525 = sphi 0, %s524
      %s539 = sphi 0, %s525
      %s543 = sphi 0, %s543
      %s545 = sphi 0, %s543
      %s546 = sphi 0, %s545
      %s560 = sphi 0, %s546
      %s564 = sphi 0, %s564
      %s566 = sphi 0, %s564
      %s567 = sphi 0, %s566
      %s581 = sphi 0, %s567
      %s585 = sphi 0, %s585
      %s587 = sphi 0, %s585
      %s588 = sphi 0, %s587
      %s602 = sphi 0, %s588
      %s606 = sphi 0, %s606
      %s608 = sphi 0, %s606
      %s609 = sphi 0, %s608
      %s623 = sphi 0, %s609
      %s627 = sphi 0, %s627
      %s629 = sphi 0, %s627
      %s630 = sphi 0, %s629
      %s644 = sphi 0, %s630
      %s648 = sphi 0, %s648
      %s650 = sphi 0, %s648
      %s651 = sphi 0, %s650
      %s665 = sphi 0, %s651
      %s669 = sphi 0, %s669
      %s671 = sphi 0, %s669
      %s672 = sphi 0, %s671
      %s686 = sphi 0, %s672
      %s690 = sphi 0, %s690
      %s692 = sphi 0, %s690
      %s693 = sphi 0, %s692
      %s707 = sphi 0, %s693
      %s711 = sphi 0, %s711
      %s713 = sphi 0, %s711
      %s714 = sphi 0, %s713
      %s728 = sphi 0, %s714
      %s732 = sphi 0, %s732
      %s734 = sphi 0, %s732
      %s735 = sphi 0, %s734
      %s749 = sphi 0, %s735
      %s755 = sphi 0, %s757
      %s758 = sphi 0, %s755
      %s759 = sphi 0, %s758
      %s775 = sphi 0, %s759
    $region4: #{tpu_custom_call.1} parent=1 // loop_header_branch
      %87 = sbr.rel (%p85) target = $region8
    $region5: #{tpu_custom_call.1} parent=1 // loop_body
      %s89 = ssub.s32 %s84, 1
      %s90 = ssub.s32 %s84, 2
      %s91 = sadd.s32 %s84, 1
      %s92 = ssub.s32 %s84, %s91
      %p93 = scmp.eq.s32.totalorder %s92, 0
      %s95 = sadd.s32 %s94, 1
      %s96 = scalar_select %p93, %s94, %s95
      %p99 = pneg %p93
      %p100 = scmp.eq.s32.totalorder %s84, 1
      %p101 = por %p99, %p100
      %p102 = scmp.ne.s32.totalorder %s94, %s97
      %p103 = scmp.eq.s32.totalorder %s84, 0
      %p104 = por %p102, %p103
      %p105 = scmp.ne.s32.totalorder %s94, %s97
      %p106 = scmp.eq.s32.totalorder %s89, 1
      %p107 = por %p105, %p106
      %p108 = scmp.ne.s32.totalorder %s97, %s98
      %p109 = scmp.eq.s32.totalorder %s89, 0
      %p110 = por %p108, %p109
      %p111 = scmp.ne.s32.totalorder %s97, %s98
      %p112 = scmp.eq.s32.totalorder %s90, 1
      %p113 = por %p111, %p112
      %p115 = scmp.ne.s32.totalorder %s98, %s114
      %p116 = scmp.eq.s32.totalorder %s90, 0
      %p117 = por %p115, %p116
      %s118 = ssub.s32 %s84, %s91
      %p119 = scmp.eq.s32.totalorder %s118, 0
      %s121 = sadd.s32 %s120, 1
      %s122 = scalar_select %p119, %s120, %s121
      %p125 = pneg %p119
      %p126 = scmp.eq.s32.totalorder %s84, 1
      %p127 = por %p125, %p126
      %p128 = scmp.ne.s32.totalorder %s120, %s123
      %p129 = scmp.eq.s32.totalorder %s84, 0
      %p130 = por %p128, %p129
      %p131 = scmp.ne.s32.totalorder %s120, %s123
      %p132 = scmp.eq.s32.totalorder %s89, 1
      %p133 = por %p131, %p132
      %p134 = scmp.ne.s32.totalorder %s123, %s124
      %p135 = scmp.eq.s32.totalorder %s89, 0
      %p136 = por %p134, %p135
      %p137 = scmp.ne.s32.totalorder %s123, %s124
      %p138 = scmp.eq.s32.totalorder %s90, 1
      %p139 = por %p137, %p138
      %p141 = scmp.ne.s32.totalorder %s124, %s140
      %p142 = scmp.eq.s32.totalorder %s90, 0
      %p143 = por %p141, %p142
      %s145 = sadd.s32 %s144, 1
      %p148 = scmp.eq.s32.totalorder %s84, 1
      %p149 = scmp.ne.s32.totalorder %s144, %s146
      %p150 = scmp.eq.s32.totalorder %s84, 0
      %p151 = por %p149, %p150
      %p152 = scmp.ne.s32.totalorder %s144, %s146
      %p153 = scmp.eq.s32.totalorder %s89, 1
      %p154 = por %p152, %p153
      %p155 = scmp.ne.s32.totalorder %s146, %s147
      %p156 = scmp.eq.s32.totalorder %s89, 0
      %p157 = por %p155, %p156
      %p158 = scmp.ne.s32.totalorder %s146, %s147
      %p159 = scmp.eq.s32.totalorder %s90, 1
      %p160 = por %p158, %p159
      %p162 = scmp.ne.s32.totalorder %s147, %s161
      %p163 = scmp.eq.s32.totalorder %s90, 0
      %p164 = por %p162, %p163
      %s166 = sadd.s32 %s165, 1
      %p169 = scmp.eq.s32.totalorder %s84, 1
      %p170 = scmp.ne.s32.totalorder %s165, %s167
      %p171 = scmp.eq.s32.totalorder %s84, 0
      %p172 = por %p170, %p171
      %p173 = scmp.ne.s32.totalorder %s165, %s167
      %p174 = scmp.eq.s32.totalorder %s89, 1
      %p175 = por %p173, %p174
      %p176 = scmp.ne.s32.totalorder %s167, %s168
      %p177 = scmp.eq.s32.totalorder %s89, 0
      %p178 = por %p176, %p177
      %p179 = scmp.ne.s32.totalorder %s167, %s168
      %p180 = scmp.eq.s32.totalorder %s90, 1
      %p181 = por %p179, %p180
      %p183 = scmp.ne.s32.totalorder %s168, %s182
      %p184 = scmp.eq.s32.totalorder %s90, 0
      %p185 = por %p183, %p184
      %s187 = sadd.s32 %s186, 1
      %p190 = scmp.eq.s32.totalorder %s84, 1
      %p191 = scmp.ne.s32.totalorder %s186, %s188
      %p192 = scmp.eq.s32.totalorder %s84, 0
      %p193 = por %p191, %p192
      %p194 = scmp.ne.s32.totalorder %s186, %s188
      %p195 = scmp.eq.s32.totalorder %s89, 1
      %p196 = por %p194, %p195
      %p197 = scmp.ne.s32.totalorder %s188, %s189
      %p198 = scmp.eq.s32.totalorder %s89, 0
      %p199 = por %p197, %p198
      %p200 = scmp.ne.s32.totalorder %s188, %s189
      %p201 = scmp.eq.s32.totalorder %s90, 1
      %p202 = por %p200, %p201
      %p204 = scmp.ne.s32.totalorder %s189, %s203
      %p205 = scmp.eq.s32.totalorder %s90, 0
      %p206 = por %p204, %p205
      %s208 = sadd.s32 %s207, 1
      %p211 = scmp.eq.s32.totalorder %s84, 1
      %p212 = scmp.ne.s32.totalorder %s207, %s209
      %p213 = scmp.eq.s32.totalorder %s84, 0
      %p214 = por %p212, %p213
      %p215 = scmp.ne.s32.totalorder %s207, %s209
      %p216 = scmp.eq.s32.totalorder %s89, 1
      %p217 = por %p215, %p216
      %p218 = scmp.ne.s32.totalorder %s209, %s210
      %p219 = scmp.eq.s32.totalorder %s89, 0
      %p220 = por %p218, %p219
      %p221 = scmp.ne.s32.totalorder %s209, %s210
      %p222 = scmp.eq.s32.totalorder %s90, 1
      %p223 = por %p221, %p222
      %p225 = scmp.ne.s32.totalorder %s210, %s224
      %p226 = scmp.eq.s32.totalorder %s90, 0
      %p227 = por %p225, %p226
      %s229 = sadd.s32 %s228, 1
      %p232 = scmp.eq.s32.totalorder %s84, 1
      %p233 = scmp.ne.s32.totalorder %s228, %s230
      %p234 = scmp.eq.s32.totalorder %s84, 0
      %p235 = por %p233, %p234
      %p236 = scmp.ne.s32.totalorder %s228, %s230
      %p237 = scmp.eq.s32.totalorder %s89, 1
      %p238 = por %p236, %p237
      %p239 = scmp.ne.s32.totalorder %s230, %s231
      %p240 = scmp.eq.s32.totalorder %s89, 0
      %p241 = por %p239, %p240
      %p242 = scmp.ne.s32.totalorder %s230, %s231
      %p243 = scmp.eq.s32.totalorder %s90, 1
      %p244 = por %p242, %p243
      %p246 = scmp.ne.s32.totalorder %s231, %s245
      %p247 = scmp.eq.s32.totalorder %s90, 0
      %p248 = por %p246, %p247
      %s250 = sadd.s32 %s249, 1
      %p253 = scmp.eq.s32.totalorder %s84, 1
      %p254 = scmp.ne.s32.totalorder %s249, %s251
      %p255 = scmp.eq.s32.totalorder %s84, 0
      %p256 = por %p254, %p255
      %p257 = scmp.ne.s32.totalorder %s249, %s251
      %p258 = scmp.eq.s32.totalorder %s89, 1
      %p259 = por %p257, %p258
      %p260 = scmp.ne.s32.totalorder %s251, %s252
      %p261 = scmp.eq.s32.totalorder %s89, 0
      %p262 = por %p260, %p261
      %p263 = scmp.ne.s32.totalorder %s251, %s252
      %p264 = scmp.eq.s32.totalorder %s90, 1
      %p265 = por %p263, %p264
      %p267 = scmp.ne.s32.totalorder %s252, %s266
      %p268 = scmp.eq.s32.totalorder %s90, 0
      %p269 = por %p267, %p268
      %s271 = sadd.s32 %s270, 1
      %p274 = scmp.eq.s32.totalorder %s84, 1
      %p275 = scmp.ne.s32.totalorder %s270, %s272
      %p276 = scmp.eq.s32.totalorder %s84, 0
      %p277 = por %p275, %p276
      %p278 = scmp.ne.s32.totalorder %s270, %s272
      %p279 = scmp.eq.s32.totalorder %s89, 1
      %p280 = por %p278, %p279
      %p281 = scmp.ne.s32.totalorder %s272, %s273
      %p282 = scmp.eq.s32.totalorder %s89, 0
      %p283 = por %p281, %p282
      %p284 = scmp.ne.s32.totalorder %s272, %s273
      %p285 = scmp.eq.s32.totalorder %s90, 1
      %p286 = por %p284, %p285
      %p288 = scmp.ne.s32.totalorder %s273, %s287
      %p289 = scmp.eq.s32.totalorder %s90, 0
      %p290 = por %p288, %p289
      %s292 = sadd.s32 %s291, 1
      %p295 = scmp.eq.s32.totalorder %s84, 1
      %p296 = scmp.ne.s32.totalorder %s291, %s293
      %p297 = scmp.eq.s32.totalorder %s84, 0
      %p298 = por %p296, %p297
      %p299 = scmp.ne.s32.totalorder %s291, %s293
      %p300 = scmp.eq.s32.totalorder %s89, 1
      %p301 = por %p299, %p300
      %p302 = scmp.ne.s32.totalorder %s293, %s294
      %p303 = scmp.eq.s32.totalorder %s89, 0
      %p304 = por %p302, %p303
      %p305 = scmp.ne.s32.totalorder %s293, %s294
      %p306 = scmp.eq.s32.totalorder %s90, 1
      %p307 = por %p305, %p306
      %p309 = scmp.ne.s32.totalorder %s294, %s308
      %p310 = scmp.eq.s32.totalorder %s90, 0
      %p311 = por %p309, %p310
      %s313 = sadd.s32 %s312, 1
      %p316 = scmp.eq.s32.totalorder %s84, 1
      %p317 = scmp.ne.s32.totalorder %s312, %s314
      %p318 = scmp.eq.s32.totalorder %s84, 0
      %p319 = por %p317, %p318
      %p320 = scmp.ne.s32.totalorder %s312, %s314
      %p321 = scmp.eq.s32.totalorder %s89, 1
      %p322 = por %p320, %p321
      %p323 = scmp.ne.s32.totalorder %s314, %s315
      %p324 = scmp.eq.s32.totalorder %s89, 0
      %p325 = por %p323, %p324
      %p326 = scmp.ne.s32.totalorder %s314, %s315
      %p327 = scmp.eq.s32.totalorder %s90, 1
      %p328 = por %p326, %p327
      %p330 = scmp.ne.s32.totalorder %s315, %s329
      %p331 = scmp.eq.s32.totalorder %s90, 0
      %p332 = por %p330, %p331
      %s334 = sadd.s32 %s333, 1
      %p337 = scmp.eq.s32.totalorder %s84, 1
      %p338 = scmp.ne.s32.totalorder %s333, %s335
      %p339 = scmp.eq.s32.totalorder %s84, 0
      %p340 = por %p338, %p339
      %p341 = scmp.ne.s32.totalorder %s333, %s335
      %p342 = scmp.eq.s32.totalorder %s89, 1
      %p343 = por %p341, %p342
      %p344 = scmp.ne.s32.totalorder %s335, %s336
      %p345 = scmp.eq.s32.totalorder %s89, 0
      %p346 = por %p344, %p345
      %p347 = scmp.ne.s32.totalorder %s335, %s336
      %p348 = scmp.eq.s32.totalorder %s90, 1
      %p349 = por %p347, %p348
      %p351 = scmp.ne.s32.totalorder %s336, %s350
      %p352 = scmp.eq.s32.totalorder %s90, 0
      %p353 = por %p351, %p352
      %s355 = sadd.s32 %s354, 1
      %p358 = scmp.eq.s32.totalorder %s84, 1
      %p359 = scmp.ne.s32.totalorder %s354, %s356
      %p360 = scmp.eq.s32.totalorder %s84, 0
      %p361 = por %p359, %p360
      %p362 = scmp.ne.s32.totalorder %s354, %s356
      %p363 = scmp.eq.s32.totalorder %s89, 1
      %p364 = por %p362, %p363
      %p365 = scmp.ne.s32.totalorder %s356, %s357
      %p366 = scmp.eq.s32.totalorder %s89, 0
      %p367 = por %p365, %p366
      %p368 = scmp.ne.s32.totalorder %s356, %s357
      %p369 = scmp.eq.s32.totalorder %s90, 1
      %p370 = por %p368, %p369
      %p372 = scmp.ne.s32.totalorder %s357, %s371
      %p373 = scmp.eq.s32.totalorder %s90, 0
      %p374 = por %p372, %p373
      %s376 = sadd.s32 %s375, 1
      %p379 = scmp.eq.s32.totalorder %s84, 1
      %p380 = scmp.ne.s32.totalorder %s375, %s377
      %p381 = scmp.eq.s32.totalorder %s84, 0
      %p382 = por %p380, %p381
      %p383 = scmp.ne.s32.totalorder %s375, %s377
      %p384 = scmp.eq.s32.totalorder %s89, 1
      %p385 = por %p383, %p384
      %p386 = scmp.ne.s32.totalorder %s377, %s378
      %p387 = scmp.eq.s32.totalorder %s89, 0
      %p388 = por %p386, %p387
      %p389 = scmp.ne.s32.totalorder %s377, %s378
      %p390 = scmp.eq.s32.totalorder %s90, 1
      %p391 = por %p389, %p390
      %p393 = scmp.ne.s32.totalorder %s378, %s392
      %p394 = scmp.eq.s32.totalorder %s90, 0
      %p395 = por %p393, %p394
      %s397 = sadd.s32 %s396, 1
      %p400 = scmp.eq.s32.totalorder %s84, 1
      %p401 = scmp.ne.s32.totalorder %s396, %s398
      %p402 = scmp.eq.s32.totalorder %s84, 0
      %p403 = por %p401, %p402
      %p404 = scmp.ne.s32.totalorder %s396, %s398
      %p405 = scmp.eq.s32.totalorder %s89, 1
      %p406 = por %p404, %p405
      %p407 = scmp.ne.s32.totalorder %s398, %s399
      %p408 = scmp.eq.s32.totalorder %s89, 0
      %p409 = por %p407, %p408
      %p410 = scmp.ne.s32.totalorder %s398, %s399
      %p411 = scmp.eq.s32.totalorder %s90, 1
      %p412 = por %p410, %p411
      %p414 = scmp.ne.s32.totalorder %s399, %s413
      %p415 = scmp.eq.s32.totalorder %s90, 0
      %p416 = por %p414, %p415
      %s418 = sadd.s32 %s417, 1
      %p421 = scmp.eq.s32.totalorder %s84, 1
      %p422 = scmp.ne.s32.totalorder %s417, %s419
      %p423 = scmp.eq.s32.totalorder %s84, 0
      %p424 = por %p422, %p423
      %p425 = scmp.ne.s32.totalorder %s417, %s419
      %p426 = scmp.eq.s32.totalorder %s89, 1
      %p427 = por %p425, %p426
      %p428 = scmp.ne.s32.totalorder %s419, %s420
      %p429 = scmp.eq.s32.totalorder %s89, 0
      %p430 = por %p428, %p429
      %p431 = scmp.ne.s32.totalorder %s419, %s420
      %p432 = scmp.eq.s32.totalorder %s90, 1
      %p433 = por %p431, %p432
      %p435 = scmp.ne.s32.totalorder %s420, %s434
      %p436 = scmp.eq.s32.totalorder %s90, 0
      %p437 = por %p435, %p436
      %s439 = sadd.s32 %s438, 1
      %p442 = scmp.eq.s32.totalorder %s84, 1
      %p443 = scmp.ne.s32.totalorder %s438, %s440
      %p444 = scmp.eq.s32.totalorder %s84, 0
      %p445 = por %p443, %p444
      %p446 = scmp.ne.s32.totalorder %s438, %s440
      %p447 = scmp.eq.s32.totalorder %s89, 1
      %p448 = por %p446, %p447
      %p449 = scmp.ne.s32.totalorder %s440, %s441
      %p450 = scmp.eq.s32.totalorder %s89, 0
      %p451 = por %p449, %p450
      %p452 = scmp.ne.s32.totalorder %s440, %s441
      %p453 = scmp.eq.s32.totalorder %s90, 1
      %p454 = por %p452, %p453
      %p456 = scmp.ne.s32.totalorder %s441, %s455
      %p457 = scmp.eq.s32.totalorder %s90, 0
      %p458 = por %p456, %p457
      %s460 = sadd.s32 %s459, 1
      %p463 = scmp.eq.s32.totalorder %s84, 1
      %p464 = scmp.ne.s32.totalorder %s459, %s461
      %p465 = scmp.eq.s32.totalorder %s84, 0
      %p466 = por %p464, %p465
      %p467 = scmp.ne.s32.totalorder %s459, %s461
      %p468 = scmp.eq.s32.totalorder %s89, 1
      %p469 = por %p467, %p468
      %p470 = scmp.ne.s32.totalorder %s461, %s462
      %p471 = scmp.eq.s32.totalorder %s89, 0
      %p472 = por %p470, %p471
      %p473 = scmp.ne.s32.totalorder %s461, %s462
      %p474 = scmp.eq.s32.totalorder %s90, 1
      %p475 = por %p473, %p474
      %p477 = scmp.ne.s32.totalorder %s462, %s476
      %p478 = scmp.eq.s32.totalorder %s90, 0
      %p479 = por %p477, %p478
      %s481 = sadd.s32 %s480, 1
      %p484 = scmp.eq.s32.totalorder %s84, 1
      %p485 = scmp.ne.s32.totalorder %s480, %s482
      %p486 = scmp.eq.s32.totalorder %s84, 0
      %p487 = por %p485, %p486
      %p488 = scmp.ne.s32.totalorder %s480, %s482
      %p489 = scmp.eq.s32.totalorder %s89, 1
      %p490 = por %p488, %p489
      %p491 = scmp.ne.s32.totalorder %s482, %s483
      %p492 = scmp.eq.s32.totalorder %s89, 0
      %p493 = por %p491, %p492
      %p494 = scmp.ne.s32.totalorder %s482, %s483
      %p495 = scmp.eq.s32.totalorder %s90, 1
      %p496 = por %p494, %p495
      %p498 = scmp.ne.s32.totalorder %s483, %s497
      %p499 = scmp.eq.s32.totalorder %s90, 0
      %p500 = por %p498, %p499
      %s502 = sadd.s32 %s501, 1
      %p505 = scmp.eq.s32.totalorder %s84, 1
      %p506 = scmp.ne.s32.totalorder %s501, %s503
      %p507 = scmp.eq.s32.totalorder %s84, 0
      %p508 = por %p506, %p507
      %p509 = scmp.ne.s32.totalorder %s501, %s503
      %p510 = scmp.eq.s32.totalorder %s89, 1
      %p511 = por %p509, %p510
      %p512 = scmp.ne.s32.totalorder %s503, %s504
      %p513 = scmp.eq.s32.totalorder %s89, 0
      %p514 = por %p512, %p513
      %p515 = scmp.ne.s32.totalorder %s503, %s504
      %p516 = scmp.eq.s32.totalorder %s90, 1
      %p517 = por %p515, %p516
      %p519 = scmp.ne.s32.totalorder %s504, %s518
      %p520 = scmp.eq.s32.totalorder %s90, 0
      %p521 = por %p519, %p520
      %s523 = sadd.s32 %s522, 1
      %p526 = scmp.eq.s32.totalorder %s84, 1
      %p527 = scmp.ne.s32.totalorder %s522, %s524
      %p528 = scmp.eq.s32.totalorder %s84, 0
      %p529 = por %p527, %p528
      %p530 = scmp.ne.s32.totalorder %s522, %s524
      %p531 = scmp.eq.s32.totalorder %s89, 1
      %p532 = por %p530, %p531
      %p533 = scmp.ne.s32.totalorder %s524, %s525
      %p534 = scmp.eq.s32.totalorder %s89, 0
      %p535 = por %p533, %p534
      %p536 = scmp.ne.s32.totalorder %s524, %s525
      %p537 = scmp.eq.s32.totalorder %s90, 1
      %p538 = por %p536, %p537
      %p540 = scmp.ne.s32.totalorder %s525, %s539
      %p541 = scmp.eq.s32.totalorder %s90, 0
      %p542 = por %p540, %p541
      %s544 = sadd.s32 %s543, 1
      %p547 = scmp.eq.s32.totalorder %s84, 1
      %p548 = scmp.ne.s32.totalorder %s543, %s545
      %p549 = scmp.eq.s32.totalorder %s84, 0
      %p550 = por %p548, %p549
      %p551 = scmp.ne.s32.totalorder %s543, %s545
      %p552 = scmp.eq.s32.totalorder %s89, 1
      %p553 = por %p551, %p552
      %p554 = scmp.ne.s32.totalorder %s545, %s546
      %p555 = scmp.eq.s32.totalorder %s89, 0
      %p556 = por %p554, %p555
      %p557 = scmp.ne.s32.totalorder %s545, %s546
      %p558 = scmp.eq.s32.totalorder %s90, 1
      %p559 = por %p557, %p558
      %p561 = scmp.ne.s32.totalorder %s546, %s560
      %p562 = scmp.eq.s32.totalorder %s90, 0
      %p563 = por %p561, %p562
      %s565 = sadd.s32 %s564, 1
      %p568 = scmp.eq.s32.totalorder %s84, 1
      %p569 = scmp.ne.s32.totalorder %s564, %s566
      %p570 = scmp.eq.s32.totalorder %s84, 0
      %p571 = por %p569, %p570
      %p572 = scmp.ne.s32.totalorder %s564, %s566
      %p573 = scmp.eq.s32.totalorder %s89, 1
      %p574 = por %p572, %p573
      %p575 = scmp.ne.s32.totalorder %s566, %s567
      %p576 = scmp.eq.s32.totalorder %s89, 0
      %p577 = por %p575, %p576
      %p578 = scmp.ne.s32.totalorder %s566, %s567
      %p579 = scmp.eq.s32.totalorder %s90, 1
      %p580 = por %p578, %p579
      %p582 = scmp.ne.s32.totalorder %s567, %s581
      %p583 = scmp.eq.s32.totalorder %s90, 0
      %p584 = por %p582, %p583
      %s586 = sadd.s32 %s585, 1
      %p589 = scmp.eq.s32.totalorder %s84, 1
      %p590 = scmp.ne.s32.totalorder %s585, %s587
      %p591 = scmp.eq.s32.totalorder %s84, 0
      %p592 = por %p590, %p591
      %p593 = scmp.ne.s32.totalorder %s585, %s587
      %p594 = scmp.eq.s32.totalorder %s89, 1
      %p595 = por %p593, %p594
      %p596 = scmp.ne.s32.totalorder %s587, %s588
      %p597 = scmp.eq.s32.totalorder %s89, 0
      %p598 = por %p596, %p597
      %p599 = scmp.ne.s32.totalorder %s587, %s588
      %p600 = scmp.eq.s32.totalorder %s90, 1
      %p601 = por %p599, %p600
      %p603 = scmp.ne.s32.totalorder %s588, %s602
      %p604 = scmp.eq.s32.totalorder %s90, 0
      %p605 = por %p603, %p604
      %s607 = sadd.s32 %s606, 1
      %p610 = scmp.eq.s32.totalorder %s84, 1
      %p611 = scmp.ne.s32.totalorder %s606, %s608
      %p612 = scmp.eq.s32.totalorder %s84, 0
      %p613 = por %p611, %p612
      %p614 = scmp.ne.s32.totalorder %s606, %s608
      %p615 = scmp.eq.s32.totalorder %s89, 1
      %p616 = por %p614, %p615
      %p617 = scmp.ne.s32.totalorder %s608, %s609
      %p618 = scmp.eq.s32.totalorder %s89, 0
      %p619 = por %p617, %p618
      %p620 = scmp.ne.s32.totalorder %s608, %s609
      %p621 = scmp.eq.s32.totalorder %s90, 1
      %p622 = por %p620, %p621
      %p624 = scmp.ne.s32.totalorder %s609, %s623
      %p625 = scmp.eq.s32.totalorder %s90, 0
      %p626 = por %p624, %p625
      %s628 = sadd.s32 %s627, 1
      %p631 = scmp.eq.s32.totalorder %s84, 1
      %p632 = scmp.ne.s32.totalorder %s627, %s629
      %p633 = scmp.eq.s32.totalorder %s84, 0
      %p634 = por %p632, %p633
      %p635 = scmp.ne.s32.totalorder %s627, %s629
      %p636 = scmp.eq.s32.totalorder %s89, 1
      %p637 = por %p635, %p636
      %p638 = scmp.ne.s32.totalorder %s629, %s630
      %p639 = scmp.eq.s32.totalorder %s89, 0
      %p640 = por %p638, %p639
      %p641 = scmp.ne.s32.totalorder %s629, %s630
      %p642 = scmp.eq.s32.totalorder %s90, 1
      %p643 = por %p641, %p642
      %p645 = scmp.ne.s32.totalorder %s630, %s644
      %p646 = scmp.eq.s32.totalorder %s90, 0
      %p647 = por %p645, %p646
      %s649 = sadd.s32 %s648, 1
      %p652 = scmp.eq.s32.totalorder %s84, 1
      %p653 = scmp.ne.s32.totalorder %s648, %s650
      %p654 = scmp.eq.s32.totalorder %s84, 0
      %p655 = por %p653, %p654
      %p656 = scmp.ne.s32.totalorder %s648, %s650
      %p657 = scmp.eq.s32.totalorder %s89, 1
      %p658 = por %p656, %p657
      %p659 = scmp.ne.s32.totalorder %s650, %s651
      %p660 = scmp.eq.s32.totalorder %s89, 0
      %p661 = por %p659, %p660
      %p662 = scmp.ne.s32.totalorder %s650, %s651
      %p663 = scmp.eq.s32.totalorder %s90, 1
      %p664 = por %p662, %p663
      %p666 = scmp.ne.s32.totalorder %s651, %s665
      %p667 = scmp.eq.s32.totalorder %s90, 0
      %p668 = por %p666, %p667
      %s670 = sadd.s32 %s669, 1
      %p673 = scmp.eq.s32.totalorder %s84, 1
      %p674 = scmp.ne.s32.totalorder %s669, %s671
      %p675 = scmp.eq.s32.totalorder %s84, 0
      %p676 = por %p674, %p675
      %p677 = scmp.ne.s32.totalorder %s669, %s671
      %p678 = scmp.eq.s32.totalorder %s89, 1
      %p679 = por %p677, %p678
      %p680 = scmp.ne.s32.totalorder %s671, %s672
      %p681 = scmp.eq.s32.totalorder %s89, 0
      %p682 = por %p680, %p681
      %p683 = scmp.ne.s32.totalorder %s671, %s672
      %p684 = scmp.eq.s32.totalorder %s90, 1
      %p685 = por %p683, %p684
      %p687 = scmp.ne.s32.totalorder %s672, %s686
      %p688 = scmp.eq.s32.totalorder %s90, 0
      %p689 = por %p687, %p688
      %s691 = sadd.s32 %s690, 1
      %p694 = scmp.eq.s32.totalorder %s84, 1
      %p695 = scmp.ne.s32.totalorder %s690, %s692
      %p696 = scmp.eq.s32.totalorder %s84, 0
      %p697 = por %p695, %p696
      %p698 = scmp.ne.s32.totalorder %s690, %s692
      %p699 = scmp.eq.s32.totalorder %s89, 1
      %p700 = por %p698, %p699
      %p701 = scmp.ne.s32.totalorder %s692, %s693
      %p702 = scmp.eq.s32.totalorder %s89, 0
      %p703 = por %p701, %p702
      %p704 = scmp.ne.s32.totalorder %s692, %s693
      %p705 = scmp.eq.s32.totalorder %s90, 1
      %p706 = por %p704, %p705
      %p708 = scmp.ne.s32.totalorder %s693, %s707
      %p709 = scmp.eq.s32.totalorder %s90, 0
      %p710 = por %p708, %p709
      %s712 = sadd.s32 %s711, 1
      %p715 = scmp.eq.s32.totalorder %s84, 1
      %p716 = scmp.ne.s32.totalorder %s711, %s713
      %p717 = scmp.eq.s32.totalorder %s84, 0
      %p718 = por %p716, %p717
      %p719 = scmp.ne.s32.totalorder %s711, %s713
      %p720 = scmp.eq.s32.totalorder %s89, 1
      %p721 = por %p719, %p720
      %p722 = scmp.ne.s32.totalorder %s713, %s714
      %p723 = scmp.eq.s32.totalorder %s89, 0
      %p724 = por %p722, %p723
      %p725 = scmp.ne.s32.totalorder %s713, %s714
      %p726 = scmp.eq.s32.totalorder %s90, 1
      %p727 = por %p725, %p726
      %p729 = scmp.ne.s32.totalorder %s714, %s728
      %p730 = scmp.eq.s32.totalorder %s90, 0
      %p731 = por %p729, %p730
      %s733 = sadd.s32 %s732, 1
      %p736 = scmp.eq.s32.totalorder %s84, 1
      %p737 = scmp.ne.s32.totalorder %s732, %s734
      %p738 = scmp.eq.s32.totalorder %s84, 0
      %p739 = por %p737, %p738
      %p740 = scmp.ne.s32.totalorder %s732, %s734
      %p741 = scmp.eq.s32.totalorder %s89, 1
      %p742 = por %p740, %p741
      %p743 = scmp.ne.s32.totalorder %s734, %s735
      %p744 = scmp.eq.s32.totalorder %s89, 0
      %p745 = por %p743, %p744
      %p746 = scmp.ne.s32.totalorder %s734, %s735
      %p747 = scmp.eq.s32.totalorder %s90, 1
      %p748 = por %p746, %p747
      %p750 = scmp.ne.s32.totalorder %s735, %s749
      %p751 = scmp.eq.s32.totalorder %s90, 0
      %p752 = por %p750, %p751
      %s753 = ssub.s32 %s84, %s91
      %p754 = scmp.eq.s32.totalorder %s753, 0
      %s756 = sadd.s32 %s755, 1
      %s757 = scalar_select %p754, %s755, %s756
      %p760 = pneg %p754
      %p761 = scmp.eq.s32.totalorder %s84, 1
      %p762 = por %p760, %p761
      %p763 = scmp.ne.s32.totalorder %s755, %s758
      %p764 = scmp.eq.s32.totalorder %s84, 0
      %p765 = por %p763, %p764
      %p766 = scmp.ne.s32.totalorder %s755, %s758
      %p767 = scmp.eq.s32.totalorder %s89, 1
      %p768 = por %p766, %p767
      %p769 = scmp.ne.s32.totalorder %s758, %s759
      %p770 = scmp.eq.s32.totalorder %s89, 0
      %p771 = por %p769, %p770
      %p772 = scmp.ne.s32.totalorder %s758, %s759
      %p773 = scmp.eq.s32.totalorder %s90, 1
      %p774 = por %p772, %p773
      %p776 = scmp.ne.s32.totalorder %s759, %s775
      %p777 = scmp.eq.s32.totalorder %s90, 0
      %p778 = por %p776, %p777
      %p779 = scmp.le.s32.totalorder 1, %s84
      %p780 = scmp.lt.s32.totalorder %s84, 3
      %p781 = pnand %p779, %p780
      %p782 = pneg %p781
      // Predicated region
      $region9: #{tpu_custom_call.1} parent=5 // pred_check
        _
      $region10: #{tpu_custom_call.1} parent=5 // pred_check_branch
        %784 = sbr.rel (%p781) target = $region12
      $region11: #{tpu_custom_call.1} parent=5 // pred_region
        %s785 = ssub.s32 %s84, 1
        // Predicated region
        $region13: #{tpu_custom_call.1} parent=11 // pred_check
          %p786 = pneg %p157
        $region14: #{tpu_custom_call.1} parent=11 // pred_check_branch
          %788 = sbr.rel (%p786) target = $region16
        $region15: #{tpu_custom_call.1} parent=11 // pred_region
          _
        $region16: #{tpu_custom_call.1} parent=11 // pred_fallthru
          _
        // Predicated region
        $region17: #{tpu_custom_call.1} parent=11 // pred_check
          %p789 = pneg %p178
        $region18: #{tpu_custom_call.1} parent=11 // pred_check_branch
          %791 = sbr.rel (%p789) target = $region20
        $region19: #{tpu_custom_call.1} parent=11 // pred_region
          _
        $region20: #{tpu_custom_call.1} parent=11 // pred_fallthru
          _
        // Predicated region
        $region21: #{tpu_custom_call.1} parent=11 // pred_check
          %p792 = pneg %p199
        $region22: #{tpu_custom_call.1} parent=11 // pred_check_branch
          %794 = sbr.rel (%p792) target = $region24
        $region23: #{tpu_custom_call.1} parent=11 // pred_region
          _
        $region24: #{tpu_custom_call.1} parent=11 // pred_fallthru
          _
        // Predicated region
        $region25: #{tpu_custom_call.1} parent=11 // pred_check
          %p795 = pneg %p220
        $region26: #{tpu_custom_call.1} parent=11 // pred_check_branch
          %797 = sbr.rel (%p795) target = $region28
        $region27: #{tpu_custom_call.1} parent=11 // pred_region
          %s799 = ssub.s32 16, 16
          %800 = vsyncadd [#allocation6], %s799
          %s802 = sshll.u32 [#allocation5], 4
          %s803 = int_to_ptr.vmem [resolvable:$true] %s802
          %805 = dma.hbm_to_vmem [thread:$0]  %s11, 16, %s803, [#allocation6]
        $region28: #{tpu_custom_call.1} parent=11 // pred_fallthru
          _
        // Predicated region
        $region29: #{tpu_custom_call.1} parent=11 // pred_check
          %p806 = pneg %p241
        $region30: #{tpu_custom_call.1} parent=11 // pred_check_branch
          %808 = sbr.rel (%p806) target = $region32
        $region31: #{tpu_custom_call.1} parent=11 // pred_region
          _
        $region32: #{tpu_custom_call.1} parent=11 // pred_fallthru
          _
        // Predicated region
        $region33: #{tpu_custom_call.1} parent=11 // pred_check
          %p809 = pneg %p262
        $region34: #{tpu_custom_call.1} parent=11 // pred_check_branch
          %811 = sbr.rel (%p809) target = $region36
        $region35: #{tpu_custom_call.1} parent=11 // pred_region
          %s813 = ssub.s32 16, 16
          %814 = vsyncadd [#allocation6], %s813
          %s816 = sshll.u32 [#allocation7], 4
          %s817 = int_to_ptr.vmem [resolvable:$true] %s816
          %819 = dma.hbm_to_vmem [thread:$0]  %s15, 16, %s817, [#allocation6]
        $region36: #{tpu_custom_call.1} parent=11 // pred_fallthru
          _
        // Predicated region
        $region37: #{tpu_custom_call.1} parent=11 // pred_check
          %p820 = pneg %p283
        $region38: #{tpu_custom_call.1} parent=11 // pred_check_branch
          %822 = sbr.rel (%p820) target = $region40
        $region39: #{tpu_custom_call.1} parent=11 // pred_region
          %s824 = ssub.s32 16, 16
          %825 = vsyncadd [#allocation9], %s824
          %s827 = sshll.u32 [#allocation8], 4
          %s828 = int_to_ptr.vmem [resolvable:$true] %s827
          %830 = dma.hbm_to_vmem [thread:$0]  %s17, 16, %s828, [#allocation9]
        $region40: #{tpu_custom_call.1} parent=11 // pred_fallthru
          _
        // Predicated region
        $region41: #{tpu_custom_call.1} parent=11 // pred_check
          %p831 = pneg %p304
        $region42: #{tpu_custom_call.1} parent=11 // pred_check_branch
          %833 = sbr.rel (%p831) target = $region44
        $region43: #{tpu_custom_call.1} parent=11 // pred_region
          %s835 = ssub.s32 16, 16
          %836 = vsyncadd [#allocation9], %s835
          %s838 = sshll.u32 [#allocation10], 4
          %s839 = int_to_ptr.vmem [resolvable:$true] %s838
          %841 = dma.hbm_to_vmem [thread:$0]  %s19, 16, %s839, [#allocation9]
        $region44: #{tpu_custom_call.1} parent=11 // pred_fallthru
          _
        // Predicated region
        $region45: #{tpu_custom_call.1} parent=11 // pred_check
          %p842 = pneg %p325
        $region46: #{tpu_custom_call.1} parent=11 // pred_check_branch
          %844 = sbr.rel (%p842) target = $region48
        $region47: #{tpu_custom_call.1} parent=11 // pred_region
          _
        $region48: #{tpu_custom_call.1} parent=11 // pred_fallthru
          _
        // Predicated region
        $region49: #{tpu_custom_call.1} parent=11 // pred_check
          %p845 = pneg %p346
        $region50: #{tpu_custom_call.1} parent=11 // pred_check_branch
          %847 = sbr.rel (%p845) target = $region52
        $region51: #{tpu_custom_call.1} parent=11 // pred_region
          %s849 = ssub.s32 16, 16
          %850 = vsyncadd [#allocation12], %s849
          %s852 = sshll.u32 [#allocation11], 4
          %s853 = int_to_ptr.vmem [resolvable:$true] %s852
          %855 = dma.hbm_to_vmem [thread:$0]  %s23, 16, %s853, [#allocation12]
        $region52: #{tpu_custom_call.1} parent=11 // pred_fallthru
          _
        // Predicated region
        $region53: #{tpu_custom_call.1} parent=11 // pred_check
          %p856 = pneg %p367
        $region54: #{tpu_custom_call.1} parent=11 // pred_check_branch
          %858 = sbr.rel (%p856) target = $region56
        $region55: #{tpu_custom_call.1} parent=11 // pred_region
          %s860 = ssub.s32 256, 256
          %861 = vsyncadd [#allocation12], %s860
          %s862 = sshll.u32 [#allocation13], 4
          %s863 = int_to_ptr.vmem [resolvable:$true] %s862
          %868 = dma.hbm_to_vmem [thread:$0]  %s25, 256, %s863, [#allocation12], 128, 128, 8
        $region56: #{tpu_custom_call.1} parent=11 // pred_fallthru
          _
        // Predicated region
        $region57: #{tpu_custom_call.1} parent=11 // pred_check
          %p869 = pneg %p388
        $region58: #{tpu_custom_call.1} parent=11 // pred_check_branch
          %871 = sbr.rel (%p869) target = $region60
        $region59: #{tpu_custom_call.1} parent=11 // pred_region
          _
        $region60: #{tpu_custom_call.1} parent=11 // pred_fallthru
          _
        // Predicated region
        $region61: #{tpu_custom_call.1} parent=11 // pred_check
          %p872 = pneg %p409
        $region62: #{tpu_custom_call.1} parent=11 // pred_check_branch
          %874 = sbr.rel (%p872) target = $region64
        $region63: #{tpu_custom_call.1} parent=11 // pred_region
          _
        $region64: #{tpu_custom_call.1} parent=11 // pred_fallthru
          _
        // Predicated region
        $region65: #{tpu_custom_call.1} parent=11 // pred_check
          %p875 = pneg %p430
        $region66: #{tpu_custom_call.1} parent=11 // pred_check_branch
          %877 = sbr.rel (%p875) target = $region68
        $region67: #{tpu_custom_call.1} parent=11 // pred_region
          %s879 = ssub.s32 16, 16
          %880 = vsyncadd [#allocation15], %s879
          %s882 = sshll.u32 [#allocation14], 4
          %s883 = int_to_ptr.vmem [resolvable:$true] %s882
          %885 = dma.hbm_to_vmem [thread:$0]  %s31, 16, %s883, [#allocation15]
        $region68: #{tpu_custom_call.1} parent=11 // pred_fallthru
          _
        // Predicated region
        $region69: #{tpu_custom_call.1} parent=11 // pred_check
          %p886 = pneg %p451
        $region70: #{tpu_custom_call.1} parent=11 // pred_check_branch
          %888 = sbr.rel (%p886) target = $region72
        $region71: #{tpu_custom_call.1} parent=11 // pred_region
          %s890 = ssub.s32 256, 256
          %891 = vsyncadd [#allocation15], %s890
          %s892 = sshll.u32 [#allocation16], 4
          %s893 = int_to_ptr.vmem [resolvable:$true] %s892
          %898 = dma.hbm_to_vmem [thread:$0]  %s33, 256, %s893, [#allocation15], 128, 128, 8
        $region72: #{tpu_custom_call.1} parent=11 // pred_fallthru
          _
        // Predicated region
        $region73: #{tpu_custom_call.1} parent=11 // pred_check
          %p899 = pneg %p472
        $region74: #{tpu_custom_call.1} parent=11 // pred_check_branch
          %901 = sbr.rel (%p899) target = $region76
        $region75: #{tpu_custom_call.1} parent=11 // pred_region
          %s903 = ssub.s32 16, 16
          %904 = vsyncadd [#allocation18], %s903
          %s906 = sshll.u32 [#allocation17], 4
          %s907 = int_to_ptr.vmem [resolvable:$true] %s906
          %909 = dma.hbm_to_vmem [thread:$0]  %s35, 16, %s907, [#allocation18]
        $region76: #{tpu_custom_call.1} parent=11 // pred_fallthru
          _
        // Predicated region
        $region77: #{tpu_custom_call.1} parent=11 // pred_check
          %p910 = pneg %p493
        $region78: #{tpu_custom_call.1} parent=11 // pred_check_branch
          %912 = sbr.rel (%p910) target = $region80
        $region79: #{tpu_custom_call.1} parent=11 // pred_region
          %s914 = ssub.s32 16, 16
          %915 = vsyncadd [#allocation18], %s914
          %s917 = sshll.u32 [#allocation19], 4
          %s918 = int_to_ptr.vmem [resolvable:$true] %s917
          %920 = dma.hbm_to_vmem [thread:$0]  %s37, 16, %s918, [#allocation18]
        $region80: #{tpu_custom_call.1} parent=11 // pred_fallthru
          _
        // Predicated region
        $region81: #{tpu_custom_call.1} parent=11 // pred_check
          %p921 = pneg %p514
        $region82: #{tpu_custom_call.1} parent=11 // pred_check_branch
          %923 = sbr.rel (%p921) target = $region84
        $region83: #{tpu_custom_call.1} parent=11 // pred_region
          %s925 = ssub.s32 16, 16
          %926 = vsyncadd [#allocation21], %s925
          %s928 = sshll.u32 [#allocation20], 4
          %s929 = int_to_ptr.vmem [resolvable:$true] %s928
          %931 = dma.hbm_to_vmem [thread:$0]  %s39, 16, %s929, [#allocation21]
        $region84: #{tpu_custom_call.1} parent=11 // pred_fallthru
          _
        // Predicated region
        $region85: #{tpu_custom_call.1} parent=11 // pred_check
          %p932 = pneg %p535
        $region86: #{tpu_custom_call.1} parent=11 // pred_check_branch
          %934 = sbr.rel (%p932) target = $region88
        $region87: #{tpu_custom_call.1} parent=11 // pred_region
          %s936 = ssub.s32 16, 16
          %937 = vsyncadd [#allocation21], %s936
          %s939 = sshll.u32 [#allocation22], 4
          %s940 = int_to_ptr.vmem [resolvable:$true] %s939
          %942 = dma.hbm_to_vmem [thread:$0]  %s41, 16, %s940, [#allocation21]
        $region88: #{tpu_custom_call.1} parent=11 // pred_fallthru
          _
        // Predicated region
        $region89: #{tpu_custom_call.1} parent=11 // pred_check
          %p943 = pneg %p556
        $region90: #{tpu_custom_call.1} parent=11 // pred_check_branch
          %945 = sbr.rel (%p943) target = $region92
        $region91: #{tpu_custom_call.1} parent=11 // pred_region
          %s947 = ssub.s32 16, 16
          %948 = vsyncadd [#allocation24], %s947
          %s950 = sshll.u32 [#allocation23], 4
          %s951 = int_to_ptr.vmem [resolvable:$true] %s950
          %953 = dma.hbm_to_vmem [thread:$0]  %s43, 16, %s951, [#allocation24]
        $region92: #{tpu_custom_call.1} parent=11 // pred_fallthru
          _
        // Predicated region
        $region93: #{tpu_custom_call.1} parent=11 // pred_check
          %p954 = pneg %p577
        $region94: #{tpu_custom_call.1} parent=11 // pred_check_branch
          %956 = sbr.rel (%p954) target = $region96
        $region95: #{tpu_custom_call.1} parent=11 // pred_region
          _
        $region96: #{tpu_custom_call.1} parent=11 // pred_fallthru
          _
        // Predicated region
        $region97: #{tpu_custom_call.1} parent=11 // pred_check
          %p957 = pneg %p598
        $region98: #{tpu_custom_call.1} parent=11 // pred_check_branch
          %959 = sbr.rel (%p957) target = $region100
        $region99: #{tpu_custom_call.1} parent=11 // pred_region
          %s961 = ssub.s32 16, 16
          %962 = vsyncadd [#allocation24], %s961
          %s964 = sshll.u32 [#allocation25], 4
          %s965 = int_to_ptr.vmem [resolvable:$true] %s964
          %967 = dma.hbm_to_vmem [thread:$0]  %s47, 16, %s965, [#allocation24]
        $region100: #{tpu_custom_call.1} parent=11 // pred_fallthru
          _
        // Predicated region
        $region101: #{tpu_custom_call.1} parent=11 // pred_check
          %p968 = pneg %p619
        $region102: #{tpu_custom_call.1} parent=11 // pred_check_branch
          %970 = sbr.rel (%p968) target = $region104
        $region103: #{tpu_custom_call.1} parent=11 // pred_region
          _
        $region104: #{tpu_custom_call.1} parent=11 // pred_fallthru
          _
        // Predicated region
        $region105: #{tpu_custom_call.1} parent=11 // pred_check
          %p971 = pneg %p640
        $region106: #{tpu_custom_call.1} parent=11 // pred_check_branch
          %973 = sbr.rel (%p971) target = $region108
        $region107: #{tpu_custom_call.1} parent=11 // pred_region
          %s975 = ssub.s32 16, 16
          %976 = vsyncadd [#allocation27], %s975
          %s978 = sshll.u32 [#allocation26], 4
          %s979 = int_to_ptr.vmem [resolvable:$true] %s978
          %981 = dma.hbm_to_vmem [thread:$0]  %s51, 16, %s979, [#allocation27]
        $region108: #{tpu_custom_call.1} parent=11 // pred_fallthru
          _
        // Predicated region
        $region109: #{tpu_custom_call.1} parent=11 // pred_check
          %p982 = pneg %p661
        $region110: #{tpu_custom_call.1} parent=11 // pred_check_branch
          %984 = sbr.rel (%p982) target = $region112
        $region111: #{tpu_custom_call.1} parent=11 // pred_region
          %s986 = ssub.s32 16, 16
          %987 = vsyncadd [#allocation27], %s986
          %s989 = sshll.u32 [#allocation28], 4
          %s990 = int_to_ptr.vmem [resolvable:$true] %s989
          %992 = dma.hbm_to_vmem [thread:$0]  %s53, 16, %s990, [#allocation27]
        $region112: #{tpu_custom_call.1} parent=11 // pred_fallthru
          _
        // Predicated region
        $region113: #{tpu_custom_call.1} parent=11 // pred_check
          %p993 = pneg %p682
        $region114: #{tpu_custom_call.1} parent=11 // pred_check_branch
          %995 = sbr.rel (%p993) target = $region116
        $region115: #{tpu_custom_call.1} parent=11 // pred_region
          %s997 = ssub.s32 16, 16
          %998 = vsyncadd [#allocation30], %s997
          %s1000 = sshll.u32 [#allocation29], 4
          %s1001 = int_to_ptr.vmem [resolvable:$true] %s1000
          %1003 = dma.hbm_to_vmem [thread:$0]  %s55, 16, %s1001, [#allocation30]
        $region116: #{tpu_custom_call.1} parent=11 // pred_fallthru
          _
        // Predicated region
        $region117: #{tpu_custom_call.1} parent=11 // pred_check
          %p1004 = pneg %p703
        $region118: #{tpu_custom_call.1} parent=11 // pred_check_branch
          %1006 = sbr.rel (%p1004) target = $region120
        $region119: #{tpu_custom_call.1} parent=11 // pred_region
          _
        $region120: #{tpu_custom_call.1} parent=11 // pred_fallthru
          _
        // Predicated region
        $region121: #{tpu_custom_call.1} parent=11 // pred_check
          %p1007 = pneg %p724
        $region122: #{tpu_custom_call.1} parent=11 // pred_check_branch
          %1009 = sbr.rel (%p1007) target = $region124
        $region123: #{tpu_custom_call.1} parent=11 // pred_region
          %s1011 = ssub.s32 256, 256
          %1012 = vsyncadd [#allocation30], %s1011
          %s1013 = sshll.u32 [#allocation31], 4
          %s1014 = int_to_ptr.vmem [resolvable:$true] %s1013
          %1019 = dma.hbm_to_vmem [thread:$0]  %s59, 256, %s1014, [#allocation30], 128, 128, 8
        $region124: #{tpu_custom_call.1} parent=11 // pred_fallthru
          _
        // Predicated region
        $region125: #{tpu_custom_call.1} parent=11 // pred_check
          %p1020 = pneg %p745
        $region126: #{tpu_custom_call.1} parent=11 // pred_check_branch
          %1022 = sbr.rel (%p1020) target = $region128
        $region127: #{tpu_custom_call.1} parent=11 // pred_region
          _
        $region128: #{tpu_custom_call.1} parent=11 // pred_fallthru
          _
      $region12: #{tpu_custom_call.1} parent=5 // pred_fallthru
        _
      %p1023 = scmp.lt.s32.totalorder %s84, 2
      // Predicated region
      $region129: #{tpu_custom_call.1} parent=5 // pred_check
        %p1024 = pneg %p1023
      $region130: #{tpu_custom_call.1} parent=5 // pred_check_branch
        %1026 = sbr.rel (%p1024) target = $region132
      $region131: #{tpu_custom_call.1} parent=5 // pred_region
        // Predicated region
        $region133: #{tpu_custom_call.1} parent=131 // pred_check
          %p1027 = pneg %p104
        $region134: #{tpu_custom_call.1} parent=131 // pred_check_branch
          %1029 = sbr.rel (%p1027) target = $region136
        $region135: #{tpu_custom_call.1} parent=131 // pred_region
          %s1030 = sand.u32 %s94, 1
          %s1031 = scalar_lea.sflag [#allocation3], %s1030
          %s1032 = sand.u32 %s94, 1
          %s1033 = smul.addr %s1032, 8
          %s1034 = scalar_lea.vmem [#allocation2], %s1033
          %s1036 = ssub.s32 128, 128
          %1037 = vsyncadd %s1031, %s1036
          %s1038 = smul.addr %s84, 128
          %s1039 = scalar_lea.hbm %s1, %s1038
          %s1041 = sshll.u32 %s1034, 4
          %s1042 = int_to_ptr.vmem [resolvable:$true] %s1041
          %1044 = dma.hbm_to_vmem [thread:$0]  %s1039, 128, %s1042, %s1031
        $region136: #{tpu_custom_call.1} parent=131 // pred_fallthru
          _
        // Predicated region
        $region137: #{tpu_custom_call.1} parent=131 // pred_check
          %p1045 = pneg %p130
        $region138: #{tpu_custom_call.1} parent=131 // pred_check_branch
          %1047 = sbr.rel (%p1045) target = $region140
        $region139: #{tpu_custom_call.1} parent=131 // pred_region
          %s1048 = smul.u32 4, %s84
          %p1049 = scmp.lt.s32.totalorder %s1048, 7
          %s1050 = scalar_select %p1049, %s1048, 7
          %s1051 = smul.addr %s1050, 8
          %s1052 = scalar_lea.vmem %s3, %s1051
          %s1053 = smul.u32 4, %s84
        $region140: #{tpu_custom_call.1} parent=131 // pred_fallthru
          _
      $region132: #{tpu_custom_call.1} parent=5 // pred_fallthru
        _
      %p1054 = scmp.le.s32.totalorder 1, %s84
      %p1055 = scmp.lt.s32.totalorder %s84, 3
      %p1056 = pnand %p1054, %p1055
      %p1057 = pneg %p1056
      // Predicated region
      $region141: #{tpu_custom_call.1} parent=5 // pred_check
        _
      $region142: #{tpu_custom_call.1} parent=5 // pred_check_branch
        %1059 = sbr.rel (%p1056) target = $region144
      $region143: #{tpu_custom_call.1} parent=5 // pred_region
        %s1060 = ssub.s32 %s84, 1
        %s1061 = sand.u32 %s97, 1
        %s1062 = scalar_lea.sflag [#allocation3], %s1061
        %s1063 = sand.u32 %s97, 1
        %s1064 = smul.addr %s1063, 8
        %s1065 = scalar_lea.vmem [#allocation2], %s1064
        // Predicated region
        $region145: #{tpu_custom_call.1} parent=143 // pred_check
          %p1066 = pneg %p110
        $region146: #{tpu_custom_call.1} parent=143 // pred_check_branch
          %1068 = sbr.rel (%p1066) target = $region148
        $region147: #{tpu_custom_call.1} parent=143 // pred_region
          %1069 = dma.done %s1062, 128
        $region148: #{tpu_custom_call.1} parent=143 // pred_fallthru
          _
        // Predicated region
        $region149: #{tpu_custom_call.1} parent=143 // pred_check
          %p1070 = pneg %p220
        $region150: #{tpu_custom_call.1} parent=143 // pred_check_branch
          %1072 = sbr.rel (%p1070) target = $region152
        $region151: #{tpu_custom_call.1} parent=143 // pred_region
          %1073 = dma.done [#allocation6], 16
        $region152: #{tpu_custom_call.1} parent=143 // pred_fallthru
          _
        // Predicated region
        $region153: #{tpu_custom_call.1} parent=143 // pred_check
          %p1074 = pneg %p262
        $region154: #{tpu_custom_call.1} parent=143 // pred_check_branch
          %1076 = sbr.rel (%p1074) target = $region156
        $region155: #{tpu_custom_call.1} parent=143 // pred_region
          %1077 = dma.done [#allocation6], 16
        $region156: #{tpu_custom_call.1} parent=143 // pred_fallthru
          _
        // Predicated region
        $region157: #{tpu_custom_call.1} parent=143 // pred_check
          %p1078 = pneg %p283
        $region158: #{tpu_custom_call.1} parent=143 // pred_check_branch
          %1080 = sbr.rel (%p1078) target = $region160
        $region159: #{tpu_custom_call.1} parent=143 // pred_region
          %1081 = dma.done [#allocation9], 16
        $region160: #{tpu_custom_call.1} parent=143 // pred_fallthru
          _
        // Predicated region
        $region161: #{tpu_custom_call.1} parent=143 // pred_check
          %p1082 = pneg %p304
        $region162: #{tpu_custom_call.1} parent=143 // pred_check_branch
          %1084 = sbr.rel (%p1082) target = $region164
        $region163: #{tpu_custom_call.1} parent=143 // pred_region
          %1085 = dma.done [#allocation9], 16
        $region164: #{tpu_custom_call.1} parent=143 // pred_fallthru
          _
        // Predicated region
        $region165: #{tpu_custom_call.1} parent=143 // pred_check
          %p1086 = pneg %p346
        $region166: #{tpu_custom_call.1} parent=143 // pred_check_branch
          %1088 = sbr.rel (%p1086) target = $region168
        $region167: #{tpu_custom_call.1} parent=143 // pred_region
          %1089 = dma.done [#allocation12], 16
        $region168: #{tpu_custom_call.1} parent=143 // pred_fallthru
          _
        // Predicated region
        $region169: #{tpu_custom_call.1} parent=143 // pred_check
          %p1090 = pneg %p367
        $region170: #{tpu_custom_call.1} parent=143 // pred_check_branch
          %1092 = sbr.rel (%p1090) target = $region172
        $region171: #{tpu_custom_call.1} parent=143 // pred_region
          %1093 = dma.done [#allocation12], 256
        $region172: #{tpu_custom_call.1} parent=143 // pred_fallthru
          _
        // Predicated region
        $region173: #{tpu_custom_call.1} parent=143 // pred_check
          %p1094 = pneg %p430
        $region174: #{tpu_custom_call.1} parent=143 // pred_check_branch
          %1096 = sbr.rel (%p1094) target = $region176
        $region175: #{tpu_custom_call.1} parent=143 // pred_region
          %1097 = dma.done [#allocation15], 16
        $region176: #{tpu_custom_call.1} parent=143 // pred_fallthru
          _
        // Predicated region
        $region177: #{tpu_custom_call.1} parent=143 // pred_check
          %p1098 = pneg %p451
        $region178: #{tpu_custom_call.1} parent=143 // pred_check_branch
          %1100 = sbr.rel (%p1098) target = $region180
        $region179: #{tpu_custom_call.1} parent=143 // pred_region
          %1101 = dma.done [#allocation15], 256
        $region180: #{tpu_custom_call.1} parent=143 // pred_fallthru
          _
        // Predicated region
        $region181: #{tpu_custom_call.1} parent=143 // pred_check
          %p1102 = pneg %p472
        $region182: #{tpu_custom_call.1} parent=143 // pred_check_branch
          %1104 = sbr.rel (%p1102) target = $region184
        $region183: #{tpu_custom_call.1} parent=143 // pred_region
          %1105 = dma.done [#allocation18], 16
        $region184: #{tpu_custom_call.1} parent=143 // pred_fallthru
          _
        // Predicated region
        $region185: #{tpu_custom_call.1} parent=143 // pred_check
          %p1106 = pneg %p493
        $region186: #{tpu_custom_call.1} parent=143 // pred_check_branch
          %1108 = sbr.rel (%p1106) target = $region188
        $region187: #{tpu_custom_call.1} parent=143 // pred_region
          %1109 = dma.done [#allocation18], 16
        $region188: #{tpu_custom_call.1} parent=143 // pred_fallthru
          _
        // Predicated region
        $region189: #{tpu_custom_call.1} parent=143 // pred_check
          %p1110 = pneg %p514
        $region190: #{tpu_custom_call.1} parent=143 // pred_check_branch
          %1112 = sbr.rel (%p1110) target = $region192
        $region191: #{tpu_custom_call.1} parent=143 // pred_region
          %1113 = dma.done [#allocation21], 16
        $region192: #{tpu_custom_call.1} parent=143 // pred_fallthru
          _
        // Predicated region
        $region193: #{tpu_custom_call.1} parent=143 // pred_check
          %p1114 = pneg %p535
        $region194: #{tpu_custom_call.1} parent=143 // pred_check_branch
          %1116 = sbr.rel (%p1114) target = $region196
        $region195: #{tpu_custom_call.1} parent=143 // pred_region
          %1117 = dma.done [#allocation21], 16
        $region196: #{tpu_custom_call.1} parent=143 // pred_fallthru
          _
        // Predicated region
        $region197: #{tpu_custom_call.1} parent=143 // pred_check
          %p1118 = pneg %p556
        $region198: #{tpu_custom_call.1} parent=143 // pred_check_branch
          %1120 = sbr.rel (%p1118) target = $region200
        $region199: #{tpu_custom_call.1} parent=143 // pred_region
          %1121 = dma.done [#allocation24], 16
        $region200: #{tpu_custom_call.1} parent=143 // pred_fallthru
          _
        // Predicated region
        $region201: #{tpu_custom_call.1} parent=143 // pred_check
          %p1122 = pneg %p598
        $region202: #{tpu_custom_call.1} parent=143 // pred_check_branch
          %1124 = sbr.rel (%p1122) target = $region204
        $region203: #{tpu_custom_call.1} parent=143 // pred_region
          %1125 = dma.done [#allocation24], 16
        $region204: #{tpu_custom_call.1} parent=143 // pred_fallthru
          _
        // Predicated region
        $region205: #{tpu_custom_call.1} parent=143 // pred_check
          %p1126 = pneg %p640
        $region206: #{tpu_custom_call.1} parent=143 // pred_check_branch
          %1128 = sbr.rel (%p1126) target = $region208
        $region207: #{tpu_custom_call.1} parent=143 // pred_region
          %1129 = dma.done [#allocation27], 16
        $region208: #{tpu_custom_call.1} parent=143 // pred_fallthru
          _
        // Predicated region
        $region209: #{tpu_custom_call.1} parent=143 // pred_check
          %p1130 = pneg %p661
        $region210: #{tpu_custom_call.1} parent=143 // pred_check_branch
          %1132 = sbr.rel (%p1130) target = $region212
        $region211: #{tpu_custom_call.1} parent=143 // pred_region
          %1133 = dma.done [#allocation27], 16
        $region212: #{tpu_custom_call.1} parent=143 // pred_fallthru
          _
        // Predicated region
        $region213: #{tpu_custom_call.1} parent=143 // pred_check
          %p1134 = pneg %p682
        $region214: #{tpu_custom_call.1} parent=143 // pred_check_branch
          %1136 = sbr.rel (%p1134) target = $region216
        $region215: #{tpu_custom_call.1} parent=143 // pred_region
          %1137 = dma.done [#allocation30], 16
        $region216: #{tpu_custom_call.1} parent=143 // pred_fallthru
          _
        // Predicated region
        $region217: #{tpu_custom_call.1} parent=143 // pred_check
          %p1138 = pneg %p724
        $region218: #{tpu_custom_call.1} parent=143 // pred_check_branch
          %1140 = sbr.rel (%p1138) target = $region220
        $region219: #{tpu_custom_call.1} parent=143 // pred_region
          %1141 = dma.done [#allocation30], 256
        $region220: #{tpu_custom_call.1} parent=143 // pred_fallthru
          _
        %s1142 = sand.u32 %s97, 1
        %s1143 = scalar_lea.sflag [#allocation3], %s1142
        %s1144 = sand.u32 %s97, 1
        %s1145 = smul.addr %s1144, 8
        %s1146 = scalar_lea.vmem [#allocation2], %s1145
        %p1147 = pneg %p110
        %p1148 = pneg %p107
        %s1149 = smul.u32 4, %s89
        %p1150 = scmp.lt.s32.totalorder %s1149, 7
        %s1151 = scalar_select %p1150, %s1149, 7
        %s1152 = smul.addr %s1151, 8
        %s1153 = scalar_lea.vmem %s3, %s1152
        %p1154 = pneg %p136
        %p1155 = pneg %p133
        %p1156 = pneg %p157
        %p1157 = pneg %p154
        %p1158 = pneg %p178
        %p1159 = pneg %p175
        %p1160 = pneg %p199
        %p1161 = pneg %p196
        %p1162 = pneg %p220
        %p1163 = pneg %p217
        %p1164 = pneg %p241
        %p1165 = pneg %p238
        %p1166 = pneg %p262
        %p1167 = pneg %p259
        %p1168 = pneg %p283
        %p1169 = pneg %p280
        %p1170 = pneg %p304
        %p1171 = pneg %p301
        %p1172 = pneg %p325
        %p1173 = pneg %p322
        %p1174 = pneg %p346
        %p1175 = pneg %p343
        %p1176 = pneg %p367
        %p1177 = pneg %p364
        %p1178 = pneg %p388
        %p1179 = pneg %p385
        %p1180 = pneg %p409
        %p1181 = pneg %p406
        %p1182 = pneg %p430
        %p1183 = pneg %p427
        %p1184 = pneg %p451
        %p1185 = pneg %p448
        %p1186 = pneg %p472
        %p1187 = pneg %p469
        %p1188 = pneg %p493
        %p1189 = pneg %p490
        %p1190 = pneg %p514
        %p1191 = pneg %p511
        %p1192 = pneg %p535
        %p1193 = pneg %p532
        %p1194 = pneg %p556
        %p1195 = pneg %p553
        %p1196 = pneg %p577
        %p1197 = pneg %p574
        %p1198 = pneg %p598
        %p1199 = pneg %p595
        %p1200 = pneg %p619
        %p1201 = pneg %p616
        %p1202 = pneg %p640
        %p1203 = pneg %p637
        %p1204 = pneg %p661
        %p1205 = pneg %p658
        %p1206 = pneg %p682
        %p1207 = pneg %p679
        %p1208 = pneg %p703
        %p1209 = pneg %p700
        %p1210 = pneg %p724
        %p1211 = pneg %p721
        %p1212 = pneg %p745
        %p1213 = pneg %p742
        %p1214 = pneg %p771
        %p1215 = pneg %p768
        %s1216 = sand.u32 %s758, 1
        %s1217 = scalar_lea.sflag [#allocation4], %s1216
        %s1218 = sand.u32 %s758, 1
        %s1219 = smul.addr %s1218, 32
        %s1220 = scalar_lea.vmem [#allocation32], %s1219
        %s1221 = smul.u32 4, %s89
        %p1222 = scmp.lt.s32.totalorder %s1221, 7
        %s1223 = scalar_select %p1222, %s1221, 7
        %s1224 = smul.addr %s1223, 8
        %s1225 = scalar_lea.vmem %s3, %s1224
        %s1226 = smul.u32 4, %s89
        %s1227 = smul.u32 4, %s89
        %v1228 = vld [vmem:[%s1225] sm:$0xff]
        %v1229 = vld [vmem:[%s1225 + $0x8] sm:$0xff]
        %v1230 = vld [vmem:[%s1225 + $0x10] sm:$0xff]
        %v1231 = vld [vmem:[%s1225 + $0x18] sm:$0xff]
        %v1232 = vld [vmem:[%s1065] sm:$0xff]
        %v1233 = vld [vmem:[%s5] sm:$0xff]
        %v1234 = vld [vmem:[%s5 + $0x8] sm:$0xff]
        %v1235 = vld [vmem:[%s5 + $0x10] sm:$0xff]
        %v1236 = vld [vmem:[%s5 + $0x18] sm:$0xff]
        %v1237 = vld [vmem:[%s5 + $0x20] sm:$0xff]
        %v1238 = vld [vmem:[%s5 + $0x28] sm:$0xff]
        %v1239 = vld [vmem:[%s5 + $0x30] sm:$0xff]
        %v1240 = vld [vmem:[%s5 + $0x38] sm:$0xff]
        %v1241 = vld [vmem:[%s7] sm:$0x1]
        %v1243 = vlaneseq
        %v1244 = vshrl.u32 %v1243, 7
        %v1245 = vsub.s32 0, %v1244
        %v1246 = vrot.slane %v1241, %v1245
        %vm1248 = vcmask 523264
        %v1250 = vsel %vm1248, %v1232, 0
        %1252 = vmatprep.subr.mxu0 0.0
        %1253 = vmatpush1.msra.mxu0 0.0
        %1254 = vmatprep.subr.mxu0 0.0
        %1255 = vmatpush1.msra.mxu0 0.0
        %1256 = vmatprep.subr.mxu0 0.0
        %1257 = vmatpush1.msra.mxu0 0.0
        %1258 = vmatprep.subr.mxu0 0.0
        %1259 = vmatpush1.msra.mxu0 0.0
        %1260 = vmatprep.subr.mxu0 0.0
        %1261 = vmatpush1.msra.mxu0 0.0
        %1262 = vmatprep.subr.mxu0 0.0
        %1263 = vmatpush1.msra.mxu0 0.0
        %1264 = vmatprep.subr.mxu0 0.0
        %1265 = vmatpush1.msra.mxu0 0.0
        %1266 = vmatprep.subr.mxu0 0.0
        %1267 = vmatpush1.msra.mxu0 0.0
        %1268 = vmatprep.subr.mxu0 0.0
        %1269 = vmatpush1.msra.mxu0 %v1240
        %1270 = vmatprep.subr.mxu0 0.0
        %1271 = vmatpush1.msra.mxu0 %v1239
        %1272 = vmatprep.subr.mxu0 0.0
        %1273 = vmatpush1.msra.mxu0 %v1238
        %1274 = vmatprep.subr.mxu0 0.0
        %1275 = vmatpush1.msra.mxu0 %v1237
        %1276 = vmatprep.subr.mxu0 0.0
        %1277 = vmatpush1.msra.mxu0 %v1236
        %1278 = vmatprep.subr.mxu0 0.0
        %1279 = vmatpush1.msra.mxu0 %v1235
        %1280 = vmatprep.subr.mxu0 0.0
        %1281 = vmatpush1.msra.mxu0 %v1234
        %1282 = vmatprep.subr.mxu0 0.0
        %1283 = vmatpush1.msra.mxu0 %v1233
        %1284 = vmatprep.subr.mxu0 0.0
        %1285 = vmatpush2.msra.mxu0 0.0
        %1286 = vmatprep.subr.mxu0 0.0
        %1287 = vmatpush2.msra.mxu0 0.0
        %1288 = vmatprep.subr.mxu0 0.0
        %1289 = vmatpush2.msra.mxu0 0.0
        %1290 = vmatprep.subr.mxu0 0.0
        %1291 = vmatpush2.msra.mxu0 0.0
        %1292 = vmatprep.subr.mxu0 0.0
        %1293 = vmatpush2.msra.mxu0 0.0
        %1294 = vmatprep.subr.mxu0 0.0
        %1295 = vmatpush2.msra.mxu0 0.0
        %1296 = vmatprep.subr.mxu0 0.0
        %1297 = vmatpush2.msra.mxu0 0.0
        %1298 = vmatprep.subr.mxu0 0.0
        %1299 = vmatpush2.msra.mxu0 0.0
        %1300 = vmatprep.subr.mxu0 0.0
        %1301 = vmatpush2.msra.mxu0 0.0
        %1302 = vmatprep.subr.mxu0 0.0
        %1303 = vmatpush2.msra.mxu0 0.0
        %1304 = vmatprep.subr.mxu0 0.0
        %1305 = vmatpush2.msra.mxu0 0.0
        %1306 = vmatprep.subr.mxu0 0.0
        %1307 = vmatpush2.msra.mxu0 0.0
        %1308 = vmatprep.subr.mxu0 0.0
        %1309 = vmatpush2.msra.mxu0 0.0
        %1310 = vmatprep.subr.mxu0 0.0
        %1311 = vmatpush2.msra.mxu0 0.0
        %1312 = vmatprep.subr.mxu0 0.0
        %1313 = vmatpush2.msra.mxu0 0.0
        %1314 = vmatprep.subr.mxu0 0.0
        %1315 = vmatpush2.msra.mxu0 0.0
        %1316 = vmatprep.mubr.f32.mxu0 0.0
        %1317 = vmatmul.mubr.f32.gmra.mxu0 %v1250
        %v1318 = vpop.f32.mrf.mxu0
        %v1319 = vadd.f32 %v1246, %v1318
        %v1320 = vpop.f32.mrf.mxu0
        %1321 = vdwg.mxu0
        %v1322 = vld [vmem:[%s9] sm:$0x1]
        %v1323 = vld [vmem:[#allocation5] sm:$0x1]
        %vm1324 = vcmask 261120
        %v1325 = vsel %vm1324, %v1319, 0.0
        %1326 = vadd.xlane.f32.xlu0 %v1325
        %v1327 = vpop.xlane.xlu0 %1326
        %v1328 = vrcp.pop 32.0
        %v1329 = vmul.f32 %v1327, %v1328
        %v1330 = vsub.f32 %v1319, %v1329
        %v1331 = vmul.f32 %v1330, %v1330
        %v1332 = vsel %vm1324, %v1331, 0.0
        %1333 = vadd.xlane.f32.xlu0 %v1332
        %v1334 = vpop.xlane.xlu0 %1333
        %v1335 = vmul.f32 %v1334, %v1328
        %v1336 = vadd.f32 %v1335, 1e-05
        %v1337 = vrsqrt.pop %v1336
        %v1338 = vmul.f32 %v1330, %v1337
        %v1340 = vlaneseq
        %v1341 = vshrl.u32 %v1340, 7
        %v1342 = vsub.s32 0, %v1341
        %v1343 = vrot.slane %v1322, %v1342
        %v1345 = vmul.f32 %v1338, %v1343
        %v1347 = vlaneseq
        %v1348 = vshrl.u32 %v1347, 7
        %v1349 = vsub.s32 0, %v1348
        %v1350 = vrot.slane %v1323, %v1349
        %v1352 = vadd.f32 %v1345, %v1350
        %v1353 = vld [vmem:[%s13] sm:$0xff]
        %v1354 = vld [vmem:[%s13 + $0x8] sm:$0xff]
        %v1355 = vld [vmem:[%s13 + $0x10] sm:$0xff]
        %v1356 = vld [vmem:[%s13 + $0x18] sm:$0xff]
        %v1357 = vld [vmem:[%s13 + $0x20] sm:$0xff]
        %v1358 = vld [vmem:[%s13 + $0x28] sm:$0xff]
        %v1359 = vld [vmem:[%s13 + $0x30] sm:$0xff]
        %v1360 = vld [vmem:[%s13 + $0x38] sm:$0xff]
        %v1361 = vld [vmem:[#allocation7] sm:$0x1]
        %v1363 = vlaneseq
        %v1364 = vshrl.u32 %v1363, 7
        %v1365 = vsub.s32 0, %v1364
        %v1366 = vrot.slane %v1361, %v1365
        %v1369 = vsel %vm1248, %v1228, 0
        %v1372 = vsel %vm1248, %v1229, 0
        %v1375 = vsel %vm1248, %v1230, 0
        %v1378 = vsel %vm1248, %v1231, 0
        %1380 = vmatprep.subr.mxu0 0.0
        %1381 = vmatpush1.msra.mxu0 0.0
        %1382 = vmatprep.subr.mxu0 0.0
        %1383 = vmatpush1.msra.mxu0 0.0
        %1384 = vmatprep.subr.mxu0 0.0
        %1385 = vmatpush1.msra.mxu0 0.0
        %1386 = vmatprep.subr.mxu0 0.0
        %1387 = vmatpush1.msra.mxu0 0.0
        %1388 = vmatprep.subr.mxu0 0.0
        %1389 = vmatpush1.msra.mxu0 0.0
        %1390 = vmatprep.subr.mxu0 0.0
        %1391 = vmatpush1.msra.mxu0 0.0
        %1392 = vmatprep.subr.mxu0 0.0
        %1393 = vmatpush1.msra.mxu0 0.0
        %1394 = vmatprep.subr.mxu0 0.0
        %1395 = vmatpush1.msra.mxu0 0.0
        %1396 = vmatprep.subr.mxu0 0.0
        %1397 = vmatpush1.msra.mxu0 %v1360
        %1398 = vmatprep.subr.mxu0 0.0
        %1399 = vmatpush1.msra.mxu0 %v1359
        %1400 = vmatprep.subr.mxu0 0.0
        %1401 = vmatpush1.msra.mxu0 %v1358
        %1402 = vmatprep.subr.mxu0 0.0
        %1403 = vmatpush1.msra.mxu0 %v1357
        %1404 = vmatprep.subr.mxu0 0.0
        %1405 = vmatpush1.msra.mxu0 %v1356
        %1406 = vmatprep.subr.mxu0 0.0
        %1407 = vmatpush1.msra.mxu0 %v1355
        %1408 = vmatprep.subr.mxu0 0.0
        %1409 = vmatpush1.msra.mxu0 %v1354
        %1410 = vmatprep.subr.mxu0 0.0
        %1411 = vmatpush1.msra.mxu0 %v1353
        %1412 = vmatprep.subr.mxu0 0.0
        %1413 = vmatpush2.msra.mxu0 0.0
        %1414 = vmatprep.subr.mxu0 0.0
        %1415 = vmatpush2.msra.mxu0 0.0
        %1416 = vmatprep.subr.mxu0 0.0
        %1417 = vmatpush2.msra.mxu0 0.0
        %1418 = vmatprep.subr.mxu0 0.0
        %1419 = vmatpush2.msra.mxu0 0.0
        %1420 = vmatprep.subr.mxu0 0.0
        %1421 = vmatpush2.msra.mxu0 0.0
        %1422 = vmatprep.subr.mxu0 0.0
        %1423 = vmatpush2.msra.mxu0 0.0
        %1424 = vmatprep.subr.mxu0 0.0
        %1425 = vmatpush2.msra.mxu0 0.0
        %1426 = vmatprep.subr.mxu0 0.0
        %1427 = vmatpush2.msra.mxu0 0.0
        %1428 = vmatprep.subr.mxu0 0.0
        %1429 = vmatpush2.msra.mxu0 0.0
        %1430 = vmatprep.subr.mxu0 0.0
        %1431 = vmatpush2.msra.mxu0 0.0
        %1432 = vmatprep.subr.mxu0 0.0
        %1433 = vmatpush2.msra.mxu0 0.0
        %1434 = vmatprep.subr.mxu0 0.0
        %1435 = vmatpush2.msra.mxu0 0.0
        %1436 = vmatprep.subr.mxu0 0.0
        %1437 = vmatpush2.msra.mxu0 0.0
        %1438 = vmatprep.subr.mxu0 0.0
        %1439 = vmatpush2.msra.mxu0 0.0
        %1440 = vmatprep.subr.mxu0 0.0
        %1441 = vmatpush2.msra.mxu0 0.0
        %1442 = vmatprep.subr.mxu0 0.0
        %1443 = vmatpush2.msra.mxu0 0.0
        %1444 = vmatprep.mubr.f32.mxu0 0.0
        %1445 = vmatmul.mubr.f32.gmra.mxu0 %v1369
        %v1446 = vpop.f32.mrf.mxu0
        %v1447 = vadd.f32 %v1366, %v1446
        %v1448 = vpop.f32.mrf.mxu0
        %1449 = vmatprep.mubr.f32.mxu0 0.0
        %1450 = vmatmul.mubr.f32.gmra.mxu0 %v1372
        %v1451 = vpop.f32.mrf.mxu0
        %v1452 = vadd.f32 %v1366, %v1451
        %v1453 = vpop.f32.mrf.mxu0
        %1454 = vmatprep.mubr.f32.mxu0 0.0
        %1455 = vmatmul.mubr.f32.gmra.mxu0 %v1375
        %v1456 = vpop.f32.mrf.mxu0
        %v1457 = vadd.f32 %v1366, %v1456
        %v1458 = vpop.f32.mrf.mxu0
        %1459 = vmatprep.mubr.f32.mxu0 0.0
        %1460 = vmatmul.mubr.f32.gmra.mxu0 %v1378
        %v1461 = vpop.f32.mrf.mxu0
        %v1462 = vadd.f32 %v1366, %v1461
        %v1463 = vpop.f32.mrf.mxu0
        %1464 = vdwg.mxu0
        %v1465 = vld [vmem:[#allocation8] sm:$0x1]
        %v1466 = vld [vmem:[#allocation10] sm:$0x1]
        %vm1467 = vcmask 130048
        %v1468 = vsel %vm1467, %v1447, 0.0
        %1469 = vadd.xlane.f32.xlu0 %v1468
        %v1470 = vpop.xlane.xlu0 %1469
        %v1471 = vsel %vm1467, %v1452, 0.0
        %1472 = vadd.xlane.f32.xlu0 %v1471
        %v1473 = vpop.xlane.xlu0 %1472
        %v1474 = vsel %vm1467, %v1457, 0.0
        %1475 = vadd.xlane.f32.xlu0 %v1474
        %v1476 = vpop.xlane.xlu0 %1475
        %v1477 = vsel %vm1467, %v1462, 0.0
        %1478 = vadd.xlane.f32.xlu0 %v1477
        %v1479 = vpop.xlane.xlu0 %1478
        %v1480 = vrcp.pop 16.0
        %v1481 = vmul.f32 %v1470, %v1480
        %v1482 = vmul.f32 %v1473, %v1480
        %v1483 = vmul.f32 %v1476, %v1480
        %v1484 = vmul.f32 %v1479, %v1480
        %v1485 = vsub.f32 %v1447, %v1481
        %v1486 = vsub.f32 %v1452, %v1482
        %v1487 = vsub.f32 %v1457, %v1483
        %v1488 = vsub.f32 %v1462, %v1484
        %v1489 = vmul.f32 %v1485, %v1485
        %v1490 = vmul.f32 %v1486, %v1486
        %v1491 = vmul.f32 %v1487, %v1487
        %v1492 = vmul.f32 %v1488, %v1488
        %v1493 = vsel %vm1467, %v1489, 0.0
        %1494 = vadd.xlane.f32.xlu0 %v1493
        %v1495 = vpop.xlane.xlu0 %1494
        %v1496 = vsel %vm1467, %v1490, 0.0
        %1497 = vadd.xlane.f32.xlu0 %v1496
        %v1498 = vpop.xlane.xlu0 %1497
        %v1499 = vsel %vm1467, %v1491, 0.0
        %1500 = vadd.xlane.f32.xlu0 %v1499
        %v1501 = vpop.xlane.xlu0 %1500
        %v1502 = vsel %vm1467, %v1492, 0.0
        %1503 = vadd.xlane.f32.xlu0 %v1502
        %v1504 = vpop.xlane.xlu0 %1503
        %v1505 = vmul.f32 %v1495, %v1480
        %v1506 = vmul.f32 %v1498, %v1480
        %v1507 = vmul.f32 %v1501, %v1480
        %v1508 = vmul.f32 %v1504, %v1480
        %v1509 = vadd.f32 %v1505, 1e-05
        %v1510 = vadd.f32 %v1506, 1e-05
        %v1511 = vadd.f32 %v1507, 1e-05
        %v1512 = vadd.f32 %v1508, 1e-05
        %v1513 = vrsqrt.pop %v1509
        %v1514 = vrsqrt.pop %v1510
        %v1515 = vrsqrt.pop %v1511
        %v1516 = vrsqrt.pop %v1512
        %v1517 = vmul.f32 %v1485, %v1513
        %v1518 = vmul.f32 %v1486, %v1514
        %v1519 = vmul.f32 %v1487, %v1515
        %v1520 = vmul.f32 %v1488, %v1516
        %v1522 = vlaneseq
        %v1523 = vshrl.u32 %v1522, 7
        %v1524 = vsub.s32 0, %v1523
        %v1525 = vrot.slane %v1465, %v1524
        %v1527 = vmul.f32 %v1517, %v1525
        %v1528 = vmul.f32 %v1518, %v1525
        %v1529 = vmul.f32 %v1519, %v1525
        %v1530 = vmul.f32 %v1520, %v1525
        %v1532 = vlaneseq
        %v1533 = vshrl.u32 %v1532, 7
        %v1534 = vsub.s32 0, %v1533
        %v1535 = vrot.slane %v1466, %v1534
        %v1537 = vadd.f32 %v1527, %v1535
        %v1538 = vadd.f32 %v1528, %v1535
        %v1539 = vadd.f32 %v1529, %v1535
        %v1540 = vadd.f32 %v1530, %v1535
        %v1541 = vld [vmem:[%s21] sm:$0xff]
        %v1542 = vld [vmem:[%s21 + $0x8] sm:$0xff]
        %v1543 = vld [vmem:[%s21 + $0x10] sm:$0xff]
        %v1544 = vld [vmem:[%s21 + $0x18] sm:$0xff]
        %v1545 = vld [vmem:[#allocation11] sm:$0x1]
        %v1547 = vlaneseq
        %v1548 = vshrl.u32 %v1547, 7
        %v1549 = vsub.s32 0, %v1548
        %v1550 = vrot.slane %v1545, %v1549
        %v1553 = vsel %vm1324, %v1352, 0
        %1555 = vmatprep.subr.mxu0 0.0
        %1556 = vmatpush1.msra.mxu0 0.0
        %1557 = vmatprep.subr.mxu0 0.0
        %1558 = vmatpush1.msra.mxu0 0.0
        %1559 = vmatprep.subr.mxu0 0.0
        %1560 = vmatpush1.msra.mxu0 0.0
        %1561 = vmatprep.subr.mxu0 0.0
        %1562 = vmatpush1.msra.mxu0 0.0
        %1563 = vmatprep.subr.mxu0 0.0
        %1564 = vmatpush1.msra.mxu0 0.0
        %1565 = vmatprep.subr.mxu0 0.0
        %1566 = vmatpush1.msra.mxu0 0.0
        %1567 = vmatprep.subr.mxu0 0.0
        %1568 = vmatpush1.msra.mxu0 0.0
        %1569 = vmatprep.subr.mxu0 0.0
        %1570 = vmatpush1.msra.mxu0 0.0
        %1571 = vmatprep.subr.mxu0 0.0
        %1572 = vmatpush1.msra.mxu0 0.0
        %1573 = vmatprep.subr.mxu0 0.0
        %1574 = vmatpush1.msra.mxu0 0.0
        %1575 = vmatprep.subr.mxu0 0.0
        %1576 = vmatpush1.msra.mxu0 0.0
        %1577 = vmatprep.subr.mxu0 0.0
        %1578 = vmatpush1.msra.mxu0 0.0
        %1579 = vmatprep.subr.mxu0 0.0
        %1580 = vmatpush1.msra.mxu0 %v1544
        %1581 = vmatprep.subr.mxu0 0.0
        %1582 = vmatpush1.msra.mxu0 %v1543
        %1583 = vmatprep.subr.mxu0 0.0
        %1584 = vmatpush1.msra.mxu0 %v1542
        %1585 = vmatprep.subr.mxu0 0.0
        %1586 = vmatpush1.msra.mxu0 %v1541
        %1587 = vmatprep.subr.mxu0 0.0
        %1588 = vmatpush2.msra.mxu0 0.0
        %1589 = vmatprep.subr.mxu0 0.0
        %1590 = vmatpush2.msra.mxu0 0.0
        %1591 = vmatprep.subr.mxu0 0.0
        %1592 = vmatpush2.msra.mxu0 0.0
        %1593 = vmatprep.subr.mxu0 0.0
        %1594 = vmatpush2.msra.mxu0 0.0
        %1595 = vmatprep.subr.mxu0 0.0
        %1596 = vmatpush2.msra.mxu0 0.0
        %1597 = vmatprep.subr.mxu0 0.0
        %1598 = vmatpush2.msra.mxu0 0.0
        %1599 = vmatprep.subr.mxu0 0.0
        %1600 = vmatpush2.msra.mxu0 0.0
        %1601 = vmatprep.subr.mxu0 0.0
        %1602 = vmatpush2.msra.mxu0 0.0
        %1603 = vmatprep.subr.mxu0 0.0
        %1604 = vmatpush2.msra.mxu0 0.0
        %1605 = vmatprep.subr.mxu0 0.0
        %1606 = vmatpush2.msra.mxu0 0.0
        %1607 = vmatprep.subr.mxu0 0.0
        %1608 = vmatpush2.msra.mxu0 0.0
        %1609 = vmatprep.subr.mxu0 0.0
        %1610 = vmatpush2.msra.mxu0 0.0
        %1611 = vmatprep.subr.mxu0 0.0
        %1612 = vmatpush2.msra.mxu0 0.0
        %1613 = vmatprep.subr.mxu0 0.0
        %1614 = vmatpush2.msra.mxu0 0.0
        %1615 = vmatprep.subr.mxu0 0.0
        %1616 = vmatpush2.msra.mxu0 0.0
        %1617 = vmatprep.subr.mxu0 0.0
        %1618 = vmatpush2.msra.mxu0 0.0
        %1619 = vmatprep.mubr.f32.mxu0 0.0
        %1620 = vmatmul.mubr.f32.gmra.mxu0 %v1553
        %v1621 = vpop.f32.mrf.mxu0
        %v1622 = vadd.f32 %v1550, %v1621
        %v1623 = vpop.f32.mrf.mxu0
        %1624 = vdwg.mxu0
        %v1625 = vld [vmem:[#allocation13] sm:$0xff]
        %v1626 = vld [vmem:[#allocation13 + $0x8] sm:$0xff]
        %v1627 = vld [vmem:[%s27] sm:$0x1]
        %v1629 = vlaneseq
        %v1630 = vshrl.u32 %v1629, 7
        %v1631 = vsub.s32 0, %v1630
        %v1632 = vrot.slane %v1627, %v1631
        %v1635 = vsel %vm1467, %v1537, 0
        %v1638 = vsel %vm1467, %v1538, 0
        %v1641 = vsel %vm1467, %v1539, 0
        %v1644 = vsel %vm1467, %v1540, 0
        %1646 = vmatprep.subr.mxu0 0.0
        %1647 = vmatpush1.msra.mxu0 0.0
        %1648 = vmatprep.subr.mxu0 0.0
        %1649 = vmatpush1.msra.mxu0 0.0
        %1650 = vmatprep.subr.mxu0 0.0
        %1651 = vmatpush1.msra.mxu0 0.0
        %1652 = vmatprep.subr.mxu0 0.0
        %1653 = vmatpush1.msra.mxu0 0.0
        %1654 = vmatprep.subr.mxu0 0.0
        %1655 = vmatpush1.msra.mxu0 0.0
        %1656 = vmatprep.subr.mxu0 0.0
        %1657 = vmatpush1.msra.mxu0 0.0
        %1658 = vmatprep.subr.mxu0 0.0
        %1659 = vmatpush1.msra.mxu0 0.0
        %1660 = vmatprep.subr.mxu0 0.0
        %1661 = vmatpush1.msra.mxu0 0.0
        %1662 = vmatprep.subr.mxu0 0.0
        %1663 = vmatpush1.msra.mxu0 0.0
        %1664 = vmatprep.subr.mxu0 0.0
        %1665 = vmatpush1.msra.mxu0 0.0
        %1666 = vmatprep.subr.mxu0 0.0
        %1667 = vmatpush1.msra.mxu0 0.0
        %1668 = vmatprep.subr.mxu0 0.0
        %1669 = vmatpush1.msra.mxu0 0.0
        %1670 = vmatprep.subr.mxu0 0.0
        %1671 = vmatpush1.msra.mxu0 0.0
        %1672 = vmatprep.subr.mxu0 0.0
        %1673 = vmatpush1.msra.mxu0 0.0
        %1674 = vmatprep.subr.mxu0 0.0
        %1675 = vmatpush1.msra.mxu0 %v1626
        %1676 = vmatprep.subr.mxu0 0.0
        %1677 = vmatpush1.msra.mxu0 %v1625
        %1678 = vmatprep.subr.mxu0 0.0
        %1679 = vmatpush2.msra.mxu0 0.0
        %1680 = vmatprep.subr.mxu0 0.0
        %1681 = vmatpush2.msra.mxu0 0.0
        %1682 = vmatprep.subr.mxu0 0.0
        %1683 = vmatpush2.msra.mxu0 0.0
        %1684 = vmatprep.subr.mxu0 0.0
        %1685 = vmatpush2.msra.mxu0 0.0
        %1686 = vmatprep.subr.mxu0 0.0
        %1687 = vmatpush2.msra.mxu0 0.0
        %1688 = vmatprep.subr.mxu0 0.0
        %1689 = vmatpush2.msra.mxu0 0.0
        %1690 = vmatprep.subr.mxu0 0.0
        %1691 = vmatpush2.msra.mxu0 0.0
        %1692 = vmatprep.subr.mxu0 0.0
        %1693 = vmatpush2.msra.mxu0 0.0
        %1694 = vmatprep.subr.mxu0 0.0
        %1695 = vmatpush2.msra.mxu0 0.0
        %1696 = vmatprep.subr.mxu0 0.0
        %1697 = vmatpush2.msra.mxu0 0.0
        %1698 = vmatprep.subr.mxu0 0.0
        %1699 = vmatpush2.msra.mxu0 0.0
        %1700 = vmatprep.subr.mxu0 0.0
        %1701 = vmatpush2.msra.mxu0 0.0
        %1702 = vmatprep.subr.mxu0 0.0
        %1703 = vmatpush2.msra.mxu0 0.0
        %1704 = vmatprep.subr.mxu0 0.0
        %1705 = vmatpush2.msra.mxu0 0.0
        %1706 = vmatprep.subr.mxu0 0.0
        %1707 = vmatpush2.msra.mxu0 0.0
        %1708 = vmatprep.subr.mxu0 0.0
        %1709 = vmatpush2.msra.mxu0 0.0
        %1710 = vmatprep.mubr.f32.mxu0 0.0
        %1711 = vmatmul.mubr.f32.gmra.mxu0 %v1635
        %v1712 = vpop.f32.mrf.mxu0
        %v1713 = vadd.f32 %v1632, %v1712
        %v1714 = vpop.f32.mrf.mxu0
        %1715 = vmatprep.mubr.f32.mxu0 0.0
        %1716 = vmatmul.mubr.f32.gmra.mxu0 %v1638
        %v1717 = vpop.f32.mrf.mxu0
        %v1718 = vadd.f32 %v1632, %v1717
        %v1719 = vpop.f32.mrf.mxu0
        %1720 = vmatprep.mubr.f32.mxu0 0.0
        %1721 = vmatmul.mubr.f32.gmra.mxu0 %v1641
        %v1722 = vpop.f32.mrf.mxu0
        %v1723 = vadd.f32 %v1632, %v1722
        %v1724 = vpop.f32.mrf.mxu0
        %1725 = vmatprep.mubr.f32.mxu0 0.0
        %1726 = vmatmul.mubr.f32.gmra.mxu0 %v1644
        %v1727 = vpop.f32.mrf.mxu0
        %v1728 = vadd.f32 %v1632, %v1727
        %v1729 = vpop.f32.mrf.mxu0
        %1730 = vdwg.mxu0
        %1732 = vrot.lane.b32.xlu0 %v1622, 96
        %v1733 = vpop.permute.xlu0 %1732
        %vm1734 = vcmask 64512
        %v1735 = vsel %vm1734, %v1622, 0
        %v1737 = vsel %vm1734, %v1733, 0
        %1739 = vmatprep.subr.mxu0 0.0
        %1740 = vmatpush1.xpose.msra.mxu0 0.0
        %1741 = vmatprep.subr.mxu0 0.0
        %1742 = vmatpush1.xpose.msra.mxu0 0.0
        %1743 = vmatprep.subr.mxu0 0.0
        %1744 = vmatpush1.xpose.msra.mxu0 0.0
        %1745 = vmatprep.subr.mxu0 0.0
        %1746 = vmatpush1.xpose.msra.mxu0 0.0
        %1747 = vmatprep.subr.mxu0 0.0
        %1748 = vmatpush1.xpose.msra.mxu0 0.0
        %1749 = vmatprep.subr.mxu0 0.0
        %1750 = vmatpush1.xpose.msra.mxu0 0.0
        %1751 = vmatprep.subr.mxu0 0.0
        %1752 = vmatpush1.xpose.msra.mxu0 0.0
        %1753 = vmatprep.subr.mxu0 0.0
        %1754 = vmatpush1.xpose.msra.mxu0 0.0
        %1755 = vmatprep.subr.mxu0 0.0
        %1756 = vmatpush1.xpose.msra.mxu0 0.0
        %1757 = vmatprep.subr.mxu0 0.0
        %1758 = vmatpush1.xpose.msra.mxu0 0.0
        %1759 = vmatprep.subr.mxu0 0.0
        %1760 = vmatpush1.xpose.msra.mxu0 0.0
        %1761 = vmatprep.subr.mxu0 0.0
        %1762 = vmatpush1.xpose.msra.mxu0 0.0
        %1763 = vmatprep.subr.mxu0 0.0
        %1764 = vmatpush1.xpose.msra.mxu0 0.0
        %1765 = vmatprep.subr.mxu0 0.0
        %1766 = vmatpush1.xpose.msra.mxu0 0.0
        %1767 = vmatprep.subr.mxu0 0.0
        %1768 = vmatpush1.xpose.msra.mxu0 0.0
        %1769 = vmatprep.subr.mxu0 0.0
        %1770 = vmatpush1.xpose.msra.mxu0 %v1737
        %1771 = vmatprep.subr.mxu0 0.0
        %1772 = vmatpush2.xpose.msra.mxu0 0.0
        %1773 = vmatprep.subr.mxu0 0.0
        %1774 = vmatpush2.xpose.msra.mxu0 0.0
        %1775 = vmatprep.subr.mxu0 0.0
        %1776 = vmatpush2.xpose.msra.mxu0 0.0
        %1777 = vmatprep.subr.mxu0 0.0
        %1778 = vmatpush2.xpose.msra.mxu0 0.0
        %1779 = vmatprep.subr.mxu0 0.0
        %1780 = vmatpush2.xpose.msra.mxu0 0.0
        %1781 = vmatprep.subr.mxu0 0.0
        %1782 = vmatpush2.xpose.msra.mxu0 0.0
        %1783 = vmatprep.subr.mxu0 0.0
        %1784 = vmatpush2.xpose.msra.mxu0 0.0
        %1785 = vmatprep.subr.mxu0 0.0
        %1786 = vmatpush2.xpose.msra.mxu0 0.0
        %1787 = vmatprep.subr.mxu0 0.0
        %1788 = vmatpush2.xpose.msra.mxu0 0.0
        %1789 = vmatprep.subr.mxu0 0.0
        %1790 = vmatpush2.xpose.msra.mxu0 0.0
        %1791 = vmatprep.subr.mxu0 0.0
        %1792 = vmatpush2.xpose.msra.mxu0 0.0
        %1793 = vmatprep.subr.mxu0 0.0
        %1794 = vmatpush2.xpose.msra.mxu0 0.0
        %1795 = vmatprep.subr.mxu0 0.0
        %1796 = vmatpush2.xpose.msra.mxu0 0.0
        %1797 = vmatprep.subr.mxu0 0.0
        %1798 = vmatpush2.xpose.msra.mxu0 0.0
        %1799 = vmatprep.subr.mxu0 0.0
        %1800 = vmatpush2.xpose.msra.mxu0 0.0
        %1801 = vmatprep.subr.mxu0 0.0
        %1802 = vmatpush2.xpose.msra.mxu0 0.0
        %1803 = vmatprep.mubr.f32.mxu0 0.0
        %1804 = vmatmul.mubr.f32.gmra.mxu0 %v1735
        %v1805 = vpop.f32.mrf.mxu0
        %v1806 = vadd.f32 0.0, %v1805
        %v1807 = vpop.f32.mrf.mxu0
        %1808 = vdwg.mxu0
        %v1809 = vmul.f32 %v1806, 0.35355338
        %v1810 = vsel %vm1734, %v1809, -inf
        %1811 = vmax.xlane.f32.xlu0 %v1810
        %v1812 = vpop.xlane.xlu0 %1811
        %v1813 = vsub.f32 %v1809, %v1812
        %v1814 = vmul.f32 %v1813, 1.442695
        %v1815 = vpow.pop %v1814
        %v1816 = vsel %vm1734, %v1815, 0.0
        %1817 = vadd.xlane.f32.xlu0 %v1816
        %v1818 = vpop.xlane.xlu0 %1817
        %v1819 = vrcp.pop %v1818
        %v1820 = vmul.f32 %v1815, %v1819
        %1821 = vrot.lane.b32.xlu0 %v1622, 64
        %v1822 = vpop.permute.xlu0 %1821
        %1825 = vrot.lane.b32.xlu0 %v1713, 8
        %v1826 = vpop.permute.xlu0 %1825
        %1829 = vrot.lane.b32.xlu0 %v1718, 12
        %v1830 = vpop.permute.xlu0 %1829
        %1833 = vrot.lane.b32.xlu0 %v1723, 16
        %v1834 = vpop.permute.xlu0 %1833
        %1837 = vrot.lane.b32.xlu0 %v1728, 20
        %v1838 = vpop.permute.xlu0 %1837
        %v1840 = vsel %vm1734, %v1822, %v1826
        %vm1841 = vcmask 97280
        %v1842 = vsel %vm1841, %v1840, %v1830
        %v1843 = vsel %vm1467, %v1842, %v1834
        %vm1844 = vcmask 162816
        %v1845 = vsel %vm1844, %v1843, %v1838
        %v1847 = vsel %vm1734, %v1820, 0
        %1849 = vmatprep.subr.mxu0 0.0
        %1850 = vmatpush1.msra.mxu0 0.0
        %1851 = vmatprep.subr.mxu0 0.0
        %1852 = vmatpush1.msra.mxu0 0.0
        %1853 = vmatprep.subr.mxu0 0.0
        %1854 = vmatpush1.msra.mxu0 0.0
        %1855 = vmatprep.subr.mxu0 0.0
        %1856 = vmatpush1.msra.mxu0 0.0
        %1857 = vmatprep.subr.mxu0 0.0
        %1858 = vmatpush1.msra.mxu0 0.0
        %1859 = vmatprep.subr.mxu0 0.0
        %1860 = vmatpush1.msra.mxu0 0.0
        %1861 = vmatprep.subr.mxu0 0.0
        %1862 = vmatpush1.msra.mxu0 0.0
        %1863 = vmatprep.subr.mxu0 0.0
        %1864 = vmatpush1.msra.mxu0 0.0
        %1865 = vmatprep.subr.mxu0 0.0
        %1866 = vmatpush1.msra.mxu0 0.0
        %1867 = vmatprep.subr.mxu0 0.0
        %1868 = vmatpush1.msra.mxu0 0.0
        %1869 = vmatprep.subr.mxu0 0.0
        %1870 = vmatpush1.msra.mxu0 0.0
        %1871 = vmatprep.subr.mxu0 0.0
        %1872 = vmatpush1.msra.mxu0 0.0
        %1873 = vmatprep.subr.mxu0 0.0
        %1874 = vmatpush1.msra.mxu0 0.0
        %1875 = vmatprep.subr.mxu0 0.0
        %1876 = vmatpush1.msra.mxu0 0.0
        %1877 = vmatprep.subr.mxu0 0.0
        %1878 = vmatpush1.msra.mxu0 0.0
        %1879 = vmatprep.subr.mxu0 0.0
        %1880 = vmatpush1.msra.mxu0 %v1845
        %1881 = vmatprep.subr.mxu0 0.0
        %1882 = vmatpush2.msra.mxu0 0.0
        %1883 = vmatprep.subr.mxu0 0.0
        %1884 = vmatpush2.msra.mxu0 0.0
        %1885 = vmatprep.subr.mxu0 0.0
        %1886 = vmatpush2.msra.mxu0 0.0
        %1887 = vmatprep.subr.mxu0 0.0
        %1888 = vmatpush2.msra.mxu0 0.0
        %1889 = vmatprep.subr.mxu0 0.0
        %1890 = vmatpush2.msra.mxu0 0.0
        %1891 = vmatprep.subr.mxu0 0.0
        %1892 = vmatpush2.msra.mxu0 0.0
        %1893 = vmatprep.subr.mxu0 0.0
        %1894 = vmatpush2.msra.mxu0 0.0
        %1895 = vmatprep.subr.mxu0 0.0
        %1896 = vmatpush2.msra.mxu0 0.0
        %1897 = vmatprep.subr.mxu0 0.0
        %1898 = vmatpush2.msra.mxu0 0.0
        %1899 = vmatprep.subr.mxu0 0.0
        %1900 = vmatpush2.msra.mxu0 0.0
        %1901 = vmatprep.subr.mxu0 0.0
        %1902 = vmatpush2.msra.mxu0 0.0
        %1903 = vmatprep.subr.mxu0 0.0
        %1904 = vmatpush2.msra.mxu0 0.0
        %1905 = vmatprep.subr.mxu0 0.0
        %1906 = vmatpush2.msra.mxu0 0.0
        %1907 = vmatprep.subr.mxu0 0.0
        %1908 = vmatpush2.msra.mxu0 0.0
        %1909 = vmatprep.subr.mxu0 0.0
        %1910 = vmatpush2.msra.mxu0 0.0
        %1911 = vmatprep.subr.mxu0 0.0
        %1912 = vmatpush2.msra.mxu0 0.0
        %1913 = vmatprep.mubr.f32.mxu0 0.0
        %1914 = vmatmul.mubr.f32.gmra.mxu0 %v1847
        %v1915 = vpop.f32.mrf.mxu0
        %v1916 = vadd.f32 0.0, %v1915
        %v1917 = vpop.f32.mrf.mxu0
        %1918 = vdwg.mxu0
        %1919 = vrot.lane.b32.xlu0 %v1622, 120
        %v1920 = vpop.permute.xlu0 %1919
        %1921 = vrot.lane.b32.xlu0 %v1622, 88
        %v1922 = vpop.permute.xlu0 %1921
        %v1923 = vsel %vm1734, %v1920, 0
        %v1925 = vsel %vm1734, %v1922, 0
        %1927 = vmatprep.subr.mxu0 0.0
        %1928 = vmatpush1.xpose.msra.mxu0 0.0
        %1929 = vmatprep.subr.mxu0 0.0
        %1930 = vmatpush1.xpose.msra.mxu0 0.0
        %1931 = vmatprep.subr.mxu0 0.0
        %1932 = vmatpush1.xpose.msra.mxu0 0.0
        %1933 = vmatprep.subr.mxu0 0.0
        %1934 = vmatpush1.xpose.msra.mxu0 0.0
        %1935 = vmatprep.subr.mxu0 0.0
        %1936 = vmatpush1.xpose.msra.mxu0 0.0
        %1937 = vmatprep.subr.mxu0 0.0
        %1938 = vmatpush1.xpose.msra.mxu0 0.0
        %1939 = vmatprep.subr.mxu0 0.0
        %1940 = vmatpush1.xpose.msra.mxu0 0.0
        %1941 = vmatprep.subr.mxu0 0.0
        %1942 = vmatpush1.xpose.msra.mxu0 0.0
        %1943 = vmatprep.subr.mxu0 0.0
        %1944 = vmatpush1.xpose.msra.mxu0 0.0
        %1945 = vmatprep.subr.mxu0 0.0
        %1946 = vmatpush1.xpose.msra.mxu0 0.0
        %1947 = vmatprep.subr.mxu0 0.0
        %1948 = vmatpush1.xpose.msra.mxu0 0.0
        %1949 = vmatprep.subr.mxu0 0.0
        %1950 = vmatpush1.xpose.msra.mxu0 0.0
        %1951 = vmatprep.subr.mxu0 0.0
        %1952 = vmatpush1.xpose.msra.mxu0 0.0
        %1953 = vmatprep.subr.mxu0 0.0
        %1954 = vmatpush1.xpose.msra.mxu0 0.0
        %1955 = vmatprep.subr.mxu0 0.0
        %1956 = vmatpush1.xpose.msra.mxu0 0.0
        %1957 = vmatprep.subr.mxu0 0.0
        %1958 = vmatpush1.xpose.msra.mxu0 %v1925
        %1959 = vmatprep.subr.mxu0 0.0
        %1960 = vmatpush2.xpose.msra.mxu0 0.0
        %1961 = vmatprep.subr.mxu0 0.0
        %1962 = vmatpush2.xpose.msra.mxu0 0.0
        %1963 = vmatprep.subr.mxu0 0.0
        %1964 = vmatpush2.xpose.msra.mxu0 0.0
        %1965 = vmatprep.subr.mxu0 0.0
        %1966 = vmatpush2.xpose.msra.mxu0 0.0
        %1967 = vmatprep.subr.mxu0 0.0
        %1968 = vmatpush2.xpose.msra.mxu0 0.0
        %1969 = vmatprep.subr.mxu0 0.0
        %1970 = vmatpush2.xpose.msra.mxu0 0.0
        %1971 = vmatprep.subr.mxu0 0.0
        %1972 = vmatpush2.xpose.msra.mxu0 0.0
        %1973 = vmatprep.subr.mxu0 0.0
        %1974 = vmatpush2.xpose.msra.mxu0 0.0
        %1975 = vmatprep.subr.mxu0 0.0
        %1976 = vmatpush2.xpose.msra.mxu0 0.0
        %1977 = vmatprep.subr.mxu0 0.0
        %1978 = vmatpush2.xpose.msra.mxu0 0.0
        %1979 = vmatprep.subr.mxu0 0.0
        %1980 = vmatpush2.xpose.msra.mxu0 0.0
        %1981 = vmatprep.subr.mxu0 0.0
        %1982 = vmatpush2.xpose.msra.mxu0 0.0
        %1983 = vmatprep.subr.mxu0 0.0
        %1984 = vmatpush2.xpose.msra.mxu0 0.0
        %1985 = vmatprep.subr.mxu0 0.0
        %1986 = vmatpush2.xpose.msra.mxu0 0.0
        %1987 = vmatprep.subr.mxu0 0.0
        %1988 = vmatpush2.xpose.msra.mxu0 0.0
        %1989 = vmatprep.subr.mxu0 0.0
        %1990 = vmatpush2.xpose.msra.mxu0 0.0
        %1991 = vmatprep.mubr.f32.mxu0 0.0
        %1992 = vmatmul.mubr.f32.gmra.mxu0 %v1923
        %v1993 = vpop.f32.mrf.mxu0
        %v1994 = vadd.f32 0.0, %v1993
        %v1995 = vpop.f32.mrf.mxu0
        %1996 = vdwg.mxu0
        %v1997 = vmul.f32 %v1994, 0.35355338
        %v1998 = vsel %vm1734, %v1997, -inf
        %1999 = vmax.xlane.f32.xlu0 %v1998
        %v2000 = vpop.xlane.xlu0 %1999
        %v2001 = vsub.f32 %v1997, %v2000
        %v2002 = vmul.f32 %v2001, 1.442695
        %v2003 = vpow.pop %v2002
        %v2004 = vsel %vm1734, %v2003, 0.0
        %2005 = vadd.xlane.f32.xlu0 %v2004
        %v2006 = vpop.xlane.xlu0 %2005
        %v2007 = vrcp.pop %v2006
        %v2008 = vmul.f32 %v2003, %v2007
        %2009 = vrot.lane.b32.xlu0 %v1622, 56
        %v2010 = vpop.permute.xlu0 %2009
        %2012 = vrot.lane.b32.xlu0 %v1713, 4
        %v2013 = vpop.permute.xlu0 %2012
        %2015 = vrot.lane.b32.xlu0 %v1718, 8
        %v2016 = vpop.permute.xlu0 %2015
        %2018 = vrot.lane.b32.xlu0 %v1723, 12
        %v2019 = vpop.permute.xlu0 %2018
        %2021 = vrot.lane.b32.xlu0 %v1728, 16
        %v2022 = vpop.permute.xlu0 %2021
        %v2024 = vsel %vm1734, %v2010, %v2013
        %v2025 = vsel %vm1841, %v2024, %v2016
        %v2026 = vsel %vm1467, %v2025, %v2019
        %v2027 = vsel %vm1844, %v2026, %v2022
        %v2029 = vsel %vm1734, %v2008, 0
        %2031 = vmatprep.subr.mxu0 0.0
        %2032 = vmatpush1.msra.mxu0 0.0
        %2033 = vmatprep.subr.mxu0 0.0
        %2034 = vmatpush1.msra.mxu0 0.0
        %2035 = vmatprep.subr.mxu0 0.0
        %2036 = vmatpush1.msra.mxu0 0.0
        %2037 = vmatprep.subr.mxu0 0.0
        %2038 = vmatpush1.msra.mxu0 0.0
        %2039 = vmatprep.subr.mxu0 0.0
        %2040 = vmatpush1.msra.mxu0 0.0
        %2041 = vmatprep.subr.mxu0 0.0
        %2042 = vmatpush1.msra.mxu0 0.0
        %2043 = vmatprep.subr.mxu0 0.0
        %2044 = vmatpush1.msra.mxu0 0.0
        %2045 = vmatprep.subr.mxu0 0.0
        %2046 = vmatpush1.msra.mxu0 0.0
        %2047 = vmatprep.subr.mxu0 0.0
        %2048 = vmatpush1.msra.mxu0 0.0
        %2049 = vmatprep.subr.mxu0 0.0
        %2050 = vmatpush1.msra.mxu0 0.0
        %2051 = vmatprep.subr.mxu0 0.0
        %2052 = vmatpush1.msra.mxu0 0.0
        %2053 = vmatprep.subr.mxu0 0.0
        %2054 = vmatpush1.msra.mxu0 0.0
        %2055 = vmatprep.subr.mxu0 0.0
        %2056 = vmatpush1.msra.mxu0 0.0
        %2057 = vmatprep.subr.mxu0 0.0
        %2058 = vmatpush1.msra.mxu0 0.0
        %2059 = vmatprep.subr.mxu0 0.0
        %2060 = vmatpush1.msra.mxu0 0.0
        %2061 = vmatprep.subr.mxu0 0.0
        %2062 = vmatpush1.msra.mxu0 %v2027
        %2063 = vmatprep.subr.mxu0 0.0
        %2064 = vmatpush2.msra.mxu0 0.0
        %2065 = vmatprep.subr.mxu0 0.0
        %2066 = vmatpush2.msra.mxu0 0.0
        %2067 = vmatprep.subr.mxu0 0.0
        %2068 = vmatpush2.msra.mxu0 0.0
        %2069 = vmatprep.subr.mxu0 0.0
        %2070 = vmatpush2.msra.mxu0 0.0
        %2071 = vmatprep.subr.mxu0 0.0
        %2072 = vmatpush2.msra.mxu0 0.0
        %2073 = vmatprep.subr.mxu0 0.0
        %2074 = vmatpush2.msra.mxu0 0.0
        %2075 = vmatprep.subr.mxu0 0.0
        %2076 = vmatpush2.msra.mxu0 0.0
        %2077 = vmatprep.subr.mxu0 0.0
        %2078 = vmatpush2.msra.mxu0 0.0
        %2079 = vmatprep.subr.mxu0 0.0
        %2080 = vmatpush2.msra.mxu0 0.0
        %2081 = vmatprep.subr.mxu0 0.0
        %2082 = vmatpush2.msra.mxu0 0.0
        %2083 = vmatprep.subr.mxu0 0.0
        %2084 = vmatpush2.msra.mxu0 0.0
        %2085 = vmatprep.subr.mxu0 0.0
        %2086 = vmatpush2.msra.mxu0 0.0
        %2087 = vmatprep.subr.mxu0 0.0
        %2088 = vmatpush2.msra.mxu0 0.0
        %2089 = vmatprep.subr.mxu0 0.0
        %2090 = vmatpush2.msra.mxu0 0.0
        %2091 = vmatprep.subr.mxu0 0.0
        %2092 = vmatpush2.msra.mxu0 0.0
        %2093 = vmatprep.subr.mxu0 0.0
        %2094 = vmatpush2.msra.mxu0 0.0
        %2095 = vmatprep.mubr.f32.mxu0 0.0
        %2096 = vmatmul.mubr.f32.gmra.mxu0 %v2029
        %v2097 = vpop.f32.mrf.mxu0
        %v2098 = vadd.f32 0.0, %v2097
        %v2099 = vpop.f32.mrf.mxu0
        %2100 = vdwg.mxu0
        %2101 = vrot.lane.b32.xlu0 %v1622, 112
        %v2102 = vpop.permute.xlu0 %2101
        %2103 = vrot.lane.b32.xlu0 %v1622, 80
        %v2104 = vpop.permute.xlu0 %2103
        %v2105 = vsel %vm1734, %v2102, 0
        %v2107 = vsel %vm1734, %v2104, 0
        %2109 = vmatprep.subr.mxu0 0.0
        %2110 = vmatpush1.xpose.msra.mxu0 0.0
        %2111 = vmatprep.subr.mxu0 0.0
        %2112 = vmatpush1.xpose.msra.mxu0 0.0
        %2113 = vmatprep.subr.mxu0 0.0
        %2114 = vmatpush1.xpose.msra.mxu0 0.0
        %2115 = vmatprep.subr.mxu0 0.0
        %2116 = vmatpush1.xpose.msra.mxu0 0.0
        %2117 = vmatprep.subr.mxu0 0.0
        %2118 = vmatpush1.xpose.msra.mxu0 0.0
        %2119 = vmatprep.subr.mxu0 0.0
        %2120 = vmatpush1.xpose.msra.mxu0 0.0
        %2121 = vmatprep.subr.mxu0 0.0
        %2122 = vmatpush1.xpose.msra.mxu0 0.0
        %2123 = vmatprep.subr.mxu0 0.0
        %2124 = vmatpush1.xpose.msra.mxu0 0.0
        %2125 = vmatprep.subr.mxu0 0.0
        %2126 = vmatpush1.xpose.msra.mxu0 0.0
        %2127 = vmatprep.subr.mxu0 0.0
        %2128 = vmatpush1.xpose.msra.mxu0 0.0
        %2129 = vmatprep.subr.mxu0 0.0
        %2130 = vmatpush1.xpose.msra.mxu0 0.0
        %2131 = vmatprep.subr.mxu0 0.0
        %2132 = vmatpush1.xpose.msra.mxu0 0.0
        %2133 = vmatprep.subr.mxu0 0.0
        %2134 = vmatpush1.xpose.msra.mxu0 0.0
        %2135 = vmatprep.subr.mxu0 0.0
        %2136 = vmatpush1.xpose.msra.mxu0 0.0
        %2137 = vmatprep.subr.mxu0 0.0
        %2138 = vmatpush1.xpose.msra.mxu0 0.0
        %2139 = vmatprep.subr.mxu0 0.0
        %2140 = vmatpush1.xpose.msra.mxu0 %v2107
        %2141 = vmatprep.subr.mxu0 0.0
        %2142 = vmatpush2.xpose.msra.mxu0 0.0
        %2143 = vmatprep.subr.mxu0 0.0
        %2144 = vmatpush2.xpose.msra.mxu0 0.0
        %2145 = vmatprep.subr.mxu0 0.0
        %2146 = vmatpush2.xpose.msra.mxu0 0.0
        %2147 = vmatprep.subr.mxu0 0.0
        %2148 = vmatpush2.xpose.msra.mxu0 0.0
        %2149 = vmatprep.subr.mxu0 0.0
        %2150 = vmatpush2.xpose.msra.mxu0 0.0
        %2151 = vmatprep.subr.mxu0 0.0
        %2152 = vmatpush2.xpose.msra.mxu0 0.0
        %2153 = vmatprep.subr.mxu0 0.0
        %2154 = vmatpush2.xpose.msra.mxu0 0.0
        %2155 = vmatprep.subr.mxu0 0.0
        %2156 = vmatpush2.xpose.msra.mxu0 0.0
        %2157 = vmatprep.subr.mxu0 0.0
        %2158 = vmatpush2.xpose.msra.mxu0 0.0
        %2159 = vmatprep.subr.mxu0 0.0
        %2160 = vmatpush2.xpose.msra.mxu0 0.0
        %2161 = vmatprep.subr.mxu0 0.0
        %2162 = vmatpush2.xpose.msra.mxu0 0.0
        %2163 = vmatprep.subr.mxu0 0.0
        %2164 = vmatpush2.xpose.msra.mxu0 0.0
        %2165 = vmatprep.subr.mxu0 0.0
        %2166 = vmatpush2.xpose.msra.mxu0 0.0
        %2167 = vmatprep.subr.mxu0 0.0
        %2168 = vmatpush2.xpose.msra.mxu0 0.0
        %2169 = vmatprep.subr.mxu0 0.0
        %2170 = vmatpush2.xpose.msra.mxu0 0.0
        %2171 = vmatprep.subr.mxu0 0.0
        %2172 = vmatpush2.xpose.msra.mxu0 0.0
        %2173 = vmatprep.mubr.f32.mxu0 0.0
        %2174 = vmatmul.mubr.f32.gmra.mxu0 %v2105
        %v2175 = vpop.f32.mrf.mxu0
        %v2176 = vadd.f32 0.0, %v2175
        %v2177 = vpop.f32.mrf.mxu0
        %2178 = vdwg.mxu0
        %v2179 = vmul.f32 %v2176, 0.35355338
        %v2180 = vsel %vm1734, %v2179, -inf
        %2181 = vmax.xlane.f32.xlu0 %v2180
        %v2182 = vpop.xlane.xlu0 %2181
        %v2183 = vsub.f32 %v2179, %v2182
        %v2184 = vmul.f32 %v2183, 1.442695
        %v2185 = vpow.pop %v2184
        %v2186 = vsel %vm1734, %v2185, 0.0
        %2187 = vadd.xlane.f32.xlu0 %v2186
        %v2188 = vpop.xlane.xlu0 %2187
        %v2189 = vrcp.pop %v2188
        %v2190 = vmul.f32 %v2185, %v2189
        %2191 = vrot.lane.b32.xlu0 %v1622, 48
        %v2192 = vpop.permute.xlu0 %2191
        %2194 = vrot.lane.b32.xlu0 %v1718, 4
        %v2195 = vpop.permute.xlu0 %2194
        %2197 = vrot.lane.b32.xlu0 %v1723, 8
        %v2198 = vpop.permute.xlu0 %2197
        %2200 = vrot.lane.b32.xlu0 %v1728, 12
        %v2201 = vpop.permute.xlu0 %2200
        %v2203 = vsel %vm1734, %v2192, %v1713
        %v2204 = vsel %vm1841, %v2203, %v2195
        %v2205 = vsel %vm1467, %v2204, %v2198
        %v2206 = vsel %vm1844, %v2205, %v2201
        %v2208 = vsel %vm1734, %v2190, 0
        %2210 = vmatprep.subr.mxu0 0.0
        %2211 = vmatpush1.msra.mxu0 0.0
        %2212 = vmatprep.subr.mxu0 0.0
        %2213 = vmatpush1.msra.mxu0 0.0
        %2214 = vmatprep.subr.mxu0 0.0
        %2215 = vmatpush1.msra.mxu0 0.0
        %2216 = vmatprep.subr.mxu0 0.0
        %2217 = vmatpush1.msra.mxu0 0.0
        %2218 = vmatprep.subr.mxu0 0.0
        %2219 = vmatpush1.msra.mxu0 0.0
        %2220 = vmatprep.subr.mxu0 0.0
        %2221 = vmatpush1.msra.mxu0 0.0
        %2222 = vmatprep.subr.mxu0 0.0
        %2223 = vmatpush1.msra.mxu0 0.0
        %2224 = vmatprep.subr.mxu0 0.0
        %2225 = vmatpush1.msra.mxu0 0.0
        %2226 = vmatprep.subr.mxu0 0.0
        %2227 = vmatpush1.msra.mxu0 0.0
        %2228 = vmatprep.subr.mxu0 0.0
        %2229 = vmatpush1.msra.mxu0 0.0
        %2230 = vmatprep.subr.mxu0 0.0
        %2231 = vmatpush1.msra.mxu0 0.0
        %2232 = vmatprep.subr.mxu0 0.0
        %2233 = vmatpush1.msra.mxu0 0.0
        %2234 = vmatprep.subr.mxu0 0.0
        %2235 = vmatpush1.msra.mxu0 0.0
        %2236 = vmatprep.subr.mxu0 0.0
        %2237 = vmatpush1.msra.mxu0 0.0
        %2238 = vmatprep.subr.mxu0 0.0
        %2239 = vmatpush1.msra.mxu0 0.0
        %2240 = vmatprep.subr.mxu0 0.0
        %2241 = vmatpush1.msra.mxu0 %v2206
        %2242 = vmatprep.subr.mxu0 0.0
        %2243 = vmatpush2.msra.mxu0 0.0
        %2244 = vmatprep.subr.mxu0 0.0
        %2245 = vmatpush2.msra.mxu0 0.0
        %2246 = vmatprep.subr.mxu0 0.0
        %2247 = vmatpush2.msra.mxu0 0.0
        %2248 = vmatprep.subr.mxu0 0.0
        %2249 = vmatpush2.msra.mxu0 0.0
        %2250 = vmatprep.subr.mxu0 0.0
        %2251 = vmatpush2.msra.mxu0 0.0
        %2252 = vmatprep.subr.mxu0 0.0
        %2253 = vmatpush2.msra.mxu0 0.0
        %2254 = vmatprep.subr.mxu0 0.0
        %2255 = vmatpush2.msra.mxu0 0.0
        %2256 = vmatprep.subr.mxu0 0.0
        %2257 = vmatpush2.msra.mxu0 0.0
        %2258 = vmatprep.subr.mxu0 0.0
        %2259 = vmatpush2.msra.mxu0 0.0
        %2260 = vmatprep.subr.mxu0 0.0
        %2261 = vmatpush2.msra.mxu0 0.0
        %2262 = vmatprep.subr.mxu0 0.0
        %2263 = vmatpush2.msra.mxu0 0.0
        %2264 = vmatprep.subr.mxu0 0.0
        %2265 = vmatpush2.msra.mxu0 0.0
        %2266 = vmatprep.subr.mxu0 0.0
        %2267 = vmatpush2.msra.mxu0 0.0
        %2268 = vmatprep.subr.mxu0 0.0
        %2269 = vmatpush2.msra.mxu0 0.0
        %2270 = vmatprep.subr.mxu0 0.0
        %2271 = vmatpush2.msra.mxu0 0.0
        %2272 = vmatprep.subr.mxu0 0.0
        %2273 = vmatpush2.msra.mxu0 0.0
        %2274 = vmatprep.mubr.f32.mxu0 0.0
        %2275 = vmatmul.mubr.f32.gmra.mxu0 %v2208
        %v2276 = vpop.f32.mrf.mxu0
        %v2277 = vadd.f32 0.0, %v2276
        %v2278 = vpop.f32.mrf.mxu0
        %2279 = vdwg.mxu0
        %2280 = vrot.lane.b32.xlu0 %v1622, 104
        %v2281 = vpop.permute.xlu0 %2280
        %2282 = vrot.lane.b32.xlu0 %v1622, 72
        %v2283 = vpop.permute.xlu0 %2282
        %v2284 = vsel %vm1734, %v2281, 0
        %v2286 = vsel %vm1734, %v2283, 0
        %2288 = vmatprep.subr.mxu0 0.0
        %2289 = vmatpush1.xpose.msra.mxu0 0.0
        %2290 = vmatprep.subr.mxu0 0.0
        %2291 = vmatpush1.xpose.msra.mxu0 0.0
        %2292 = vmatprep.subr.mxu0 0.0
        %2293 = vmatpush1.xpose.msra.mxu0 0.0
        %2294 = vmatprep.subr.mxu0 0.0
        %2295 = vmatpush1.xpose.msra.mxu0 0.0
        %2296 = vmatprep.subr.mxu0 0.0
        %2297 = vmatpush1.xpose.msra.mxu0 0.0
        %2298 = vmatprep.subr.mxu0 0.0
        %2299 = vmatpush1.xpose.msra.mxu0 0.0
        %2300 = vmatprep.subr.mxu0 0.0
        %2301 = vmatpush1.xpose.msra.mxu0 0.0
        %2302 = vmatprep.subr.mxu0 0.0
        %2303 = vmatpush1.xpose.msra.mxu0 0.0
        %2304 = vmatprep.subr.mxu0 0.0
        %2305 = vmatpush1.xpose.msra.mxu0 0.0
        %2306 = vmatprep.subr.mxu0 0.0
        %2307 = vmatpush1.xpose.msra.mxu0 0.0
        %2308 = vmatprep.subr.mxu0 0.0
        %2309 = vmatpush1.xpose.msra.mxu0 0.0
        %2310 = vmatprep.subr.mxu0 0.0
        %2311 = vmatpush1.xpose.msra.mxu0 0.0
        %2312 = vmatprep.subr.mxu0 0.0
        %2313 = vmatpush1.xpose.msra.mxu0 0.0
        %2314 = vmatprep.subr.mxu0 0.0
        %2315 = vmatpush1.xpose.msra.mxu0 0.0
        %2316 = vmatprep.subr.mxu0 0.0
        %2317 = vmatpush1.xpose.msra.mxu0 0.0
        %2318 = vmatprep.subr.mxu0 0.0
        %2319 = vmatpush1.xpose.msra.mxu0 %v2286
        %2320 = vmatprep.subr.mxu0 0.0
        %2321 = vmatpush2.xpose.msra.mxu0 0.0
        %2322 = vmatprep.subr.mxu0 0.0
        %2323 = vmatpush2.xpose.msra.mxu0 0.0
        %2324 = vmatprep.subr.mxu0 0.0
        %2325 = vmatpush2.xpose.msra.mxu0 0.0
        %2326 = vmatprep.subr.mxu0 0.0
        %2327 = vmatpush2.xpose.msra.mxu0 0.0
        %2328 = vmatprep.subr.mxu0 0.0
        %2329 = vmatpush2.xpose.msra.mxu0 0.0
        %2330 = vmatprep.subr.mxu0 0.0
        %2331 = vmatpush2.xpose.msra.mxu0 0.0
        %2332 = vmatprep.subr.mxu0 0.0
        %2333 = vmatpush2.xpose.msra.mxu0 0.0
        %2334 = vmatprep.subr.mxu0 0.0
        %2335 = vmatpush2.xpose.msra.mxu0 0.0
        %2336 = vmatprep.subr.mxu0 0.0
        %2337 = vmatpush2.xpose.msra.mxu0 0.0
        %2338 = vmatprep.subr.mxu0 0.0
        %2339 = vmatpush2.xpose.msra.mxu0 0.0
        %2340 = vmatprep.subr.mxu0 0.0
        %2341 = vmatpush2.xpose.msra.mxu0 0.0
        %2342 = vmatprep.subr.mxu0 0.0
        %2343 = vmatpush2.xpose.msra.mxu0 0.0
        %2344 = vmatprep.subr.mxu0 0.0
        %2345 = vmatpush2.xpose.msra.mxu0 0.0
        %2346 = vmatprep.subr.mxu0 0.0
        %2347 = vmatpush2.xpose.msra.mxu0 0.0
        %2348 = vmatprep.subr.mxu0 0.0
        %2349 = vmatpush2.xpose.msra.mxu0 0.0
        %2350 = vmatprep.subr.mxu0 0.0
        %2351 = vmatpush2.xpose.msra.mxu0 0.0
        %2352 = vmatprep.mubr.f32.mxu0 0.0
        %2353 = vmatmul.mubr.f32.gmra.mxu0 %v2284
        %v2354 = vpop.f32.mrf.mxu0
        %v2355 = vadd.f32 0.0, %v2354
        %v2356 = vpop.f32.mrf.mxu0
        %2357 = vdwg.mxu0
        %v2358 = vmul.f32 %v2355, 0.35355338
        %v2359 = vsel %vm1734, %v2358, -inf
        %2360 = vmax.xlane.f32.xlu0 %v2359
        %v2361 = vpop.xlane.xlu0 %2360
        %v2362 = vsub.f32 %v2358, %v2361
        %v2363 = vmul.f32 %v2362, 1.442695
        %v2364 = vpow.pop %v2363
        %v2365 = vsel %vm1734, %v2364, 0.0
        %2366 = vadd.xlane.f32.xlu0 %v2365
        %v2367 = vpop.xlane.xlu0 %2366
        %v2368 = vrcp.pop %v2367
        %v2369 = vmul.f32 %v2364, %v2368
        %2370 = vrot.lane.b32.xlu0 %v1622, 40
        %v2371 = vpop.permute.xlu0 %2370
        %2373 = vrot.lane.b32.xlu0 %v1713, 124
        %v2374 = vpop.permute.xlu0 %2373
        %2376 = vrot.lane.b32.xlu0 %v1723, 4
        %v2377 = vpop.permute.xlu0 %2376
        %2379 = vrot.lane.b32.xlu0 %v1728, 8
        %v2380 = vpop.permute.xlu0 %2379
        %v2382 = vsel %vm1734, %v2371, %v2374
        %v2383 = vsel %vm1841, %v2382, %v1718
        %v2384 = vsel %vm1467, %v2383, %v2377
        %v2385 = vsel %vm1844, %v2384, %v2380
        %v2387 = vsel %vm1734, %v2369, 0
        %2389 = vmatprep.subr.mxu0 0.0
        %2390 = vmatpush1.msra.mxu0 0.0
        %2391 = vmatprep.subr.mxu0 0.0
        %2392 = vmatpush1.msra.mxu0 0.0
        %2393 = vmatprep.subr.mxu0 0.0
        %2394 = vmatpush1.msra.mxu0 0.0
        %2395 = vmatprep.subr.mxu0 0.0
        %2396 = vmatpush1.msra.mxu0 0.0
        %2397 = vmatprep.subr.mxu0 0.0
        %2398 = vmatpush1.msra.mxu0 0.0
        %2399 = vmatprep.subr.mxu0 0.0
        %2400 = vmatpush1.msra.mxu0 0.0
        %2401 = vmatprep.subr.mxu0 0.0
        %2402 = vmatpush1.msra.mxu0 0.0
        %2403 = vmatprep.subr.mxu0 0.0
        %2404 = vmatpush1.msra.mxu0 0.0
        %2405 = vmatprep.subr.mxu0 0.0
        %2406 = vmatpush1.msra.mxu0 0.0
        %2407 = vmatprep.subr.mxu0 0.0
        %2408 = vmatpush1.msra.mxu0 0.0
        %2409 = vmatprep.subr.mxu0 0.0
        %2410 = vmatpush1.msra.mxu0 0.0
        %2411 = vmatprep.subr.mxu0 0.0
        %2412 = vmatpush1.msra.mxu0 0.0
        %2413 = vmatprep.subr.mxu0 0.0
        %2414 = vmatpush1.msra.mxu0 0.0
        %2415 = vmatprep.subr.mxu0 0.0
        %2416 = vmatpush1.msra.mxu0 0.0
        %2417 = vmatprep.subr.mxu0 0.0
        %2418 = vmatpush1.msra.mxu0 0.0
        %2419 = vmatprep.subr.mxu0 0.0
        %2420 = vmatpush1.msra.mxu0 %v2385
        %2421 = vmatprep.subr.mxu0 0.0
        %2422 = vmatpush2.msra.mxu0 0.0
        %2423 = vmatprep.subr.mxu0 0.0
        %2424 = vmatpush2.msra.mxu0 0.0
        %2425 = vmatprep.subr.mxu0 0.0
        %2426 = vmatpush2.msra.mxu0 0.0
        %2427 = vmatprep.subr.mxu0 0.0
        %2428 = vmatpush2.msra.mxu0 0.0
        %2429 = vmatprep.subr.mxu0 0.0
        %2430 = vmatpush2.msra.mxu0 0.0
        %2431 = vmatprep.subr.mxu0 0.0
        %2432 = vmatpush2.msra.mxu0 0.0
        %2433 = vmatprep.subr.mxu0 0.0
        %2434 = vmatpush2.msra.mxu0 0.0
        %2435 = vmatprep.subr.mxu0 0.0
        %2436 = vmatpush2.msra.mxu0 0.0
        %2437 = vmatprep.subr.mxu0 0.0
        %2438 = vmatpush2.msra.mxu0 0.0
        %2439 = vmatprep.subr.mxu0 0.0
        %2440 = vmatpush2.msra.mxu0 0.0
        %2441 = vmatprep.subr.mxu0 0.0
        %2442 = vmatpush2.msra.mxu0 0.0
        %2443 = vmatprep.subr.mxu0 0.0
        %2444 = vmatpush2.msra.mxu0 0.0
        %2445 = vmatprep.subr.mxu0 0.0
        %2446 = vmatpush2.msra.mxu0 0.0
        %2447 = vmatprep.subr.mxu0 0.0
        %2448 = vmatpush2.msra.mxu0 0.0
        %2449 = vmatprep.subr.mxu0 0.0
        %2450 = vmatpush2.msra.mxu0 0.0
        %2451 = vmatprep.subr.mxu0 0.0
        %2452 = vmatpush2.msra.mxu0 0.0
        %2453 = vmatprep.mubr.f32.mxu0 0.0
        %2454 = vmatmul.mubr.f32.gmra.mxu0 %v2387
        %v2455 = vpop.f32.mrf.mxu0
        %v2456 = vadd.f32 0.0, %v2455
        %v2457 = vpop.f32.mrf.mxu0
        %2458 = vdwg.mxu0
        %2460 = vrot.lane.b32.xlu0 %v2098, 8
        %v2461 = vpop.permute.xlu0 %2460
        %2464 = vrot.lane.b32.xlu0 %v2277, 16
        %v2465 = vpop.permute.xlu0 %2464
        %2468 = vrot.lane.b32.xlu0 %v2456, 24
        %v2469 = vpop.permute.xlu0 %2468
        %v2471 = vsel %vm1734, %v1916, %v2461
        %v2472 = vsel %vm1467, %v2471, %v2465
        %vm2473 = vcmask 195584
        %v2474 = vsel %vm2473, %v2472, %v2469
        %2476 = vrot.lane.b32.xlu0 %v1916, 120
        %v2477 = vpop.permute.xlu0 %2476
        %2479 = vrot.lane.b32.xlu0 %v2098, 124
        %v2480 = vpop.permute.xlu0 %2479
        %2482 = vrot.lane.b32.xlu0 %v2456, 4
        %v2483 = vpop.permute.xlu0 %2482
        %vm2485 = vcmask 31744
        %v2486 = vsel %vm2485, %v2477, %v2480
        %v2487 = vsel %vm1734, %v2486, %v2277
        %v2488 = vsel %vm1841, %v2487, %v2483
        %2489 = vrot.lane.b32.xlu0 %v1916, 116
        %v2490 = vpop.permute.xlu0 %2489
        %2492 = vrot.lane.b32.xlu0 %v2098, 120
        %v2493 = vpop.permute.xlu0 %2492
        %2495 = vrot.lane.b32.xlu0 %v2277, 124
        %v2496 = vpop.permute.xlu0 %2495
        %v2498 = vsel %vm2485, %v2490, %v2493
        %v2499 = vsel %vm1734, %v2498, %v2496
        %v2500 = vsel %vm1841, %v2499, %v2456
        %2501 = vrot.lane.b32.xlu0 %v1916, 112
        %v2502 = vpop.permute.xlu0 %2501
        %2504 = vrot.lane.b32.xlu0 %v2098, 116
        %v2505 = vpop.permute.xlu0 %2504
        %2507 = vrot.lane.b32.xlu0 %v2277, 120
        %v2508 = vpop.permute.xlu0 %2507
        %2510 = vrot.lane.b32.xlu0 %v2456, 124
        %v2511 = vpop.permute.xlu0 %2510
        %v2513 = vsel %vm2485, %v2502, %v2505
        %v2514 = vsel %vm1734, %v2513, %v2508
        %v2515 = vsel %vm1841, %v2514, %v2511
        %2516 = vrot.lane.b32.xlu0 %v1916, 108
        %v2517 = vpop.permute.xlu0 %2516
        %2519 = vrot.lane.b32.xlu0 %v2098, 112
        %v2520 = vpop.permute.xlu0 %2519
        %2522 = vrot.lane.b32.xlu0 %v2277, 116
        %v2523 = vpop.permute.xlu0 %2522
        %2525 = vrot.lane.b32.xlu0 %v2456, 120
        %v2526 = vpop.permute.xlu0 %2525
        %v2528 = vsel %vm2485, %v2517, %v2520
        %v2529 = vsel %vm1734, %v2528, %v2523
        %v2530 = vsel %vm1841, %v2529, %v2526
        %v2531 = vld [vmem:[%s29] sm:$0xff]
        %v2532 = vld [vmem:[%s29 + $0x8] sm:$0xff]
        %v2533 = vld [vmem:[%s29 + $0x10] sm:$0xff]
        %v2534 = vld [vmem:[%s29 + $0x18] sm:$0xff]
        %v2536 = vsel %vm1324, %v2474, 0
        %2538 = vmatprep.subr.mxu0 0.0
        %2539 = vmatpush1.msra.mxu0 0.0
        %2540 = vmatprep.subr.mxu0 0.0
        %2541 = vmatpush1.msra.mxu0 0.0
        %2542 = vmatprep.subr.mxu0 0.0
        %2543 = vmatpush1.msra.mxu0 0.0
        %2544 = vmatprep.subr.mxu0 0.0
        %2545 = vmatpush1.msra.mxu0 0.0
        %2546 = vmatprep.subr.mxu0 0.0
        %2547 = vmatpush1.msra.mxu0 0.0
        %2548 = vmatprep.subr.mxu0 0.0
        %2549 = vmatpush1.msra.mxu0 0.0
        %2550 = vmatprep.subr.mxu0 0.0
        %2551 = vmatpush1.msra.mxu0 0.0
        %2552 = vmatprep.subr.mxu0 0.0
        %2553 = vmatpush1.msra.mxu0 0.0
        %2554 = vmatprep.subr.mxu0 0.0
        %2555 = vmatpush1.msra.mxu0 0.0
        %2556 = vmatprep.subr.mxu0 0.0
        %2557 = vmatpush1.msra.mxu0 0.0
        %2558 = vmatprep.subr.mxu0 0.0
        %2559 = vmatpush1.msra.mxu0 0.0
        %2560 = vmatprep.subr.mxu0 0.0
        %2561 = vmatpush1.msra.mxu0 0.0
        %2562 = vmatprep.subr.mxu0 0.0
        %2563 = vmatpush1.msra.mxu0 %v2534
        %2564 = vmatprep.subr.mxu0 0.0
        %2565 = vmatpush1.msra.mxu0 %v2533
        %2566 = vmatprep.subr.mxu0 0.0
        %2567 = vmatpush1.msra.mxu0 %v2532
        %2568 = vmatprep.subr.mxu0 0.0
        %2569 = vmatpush1.msra.mxu0 %v2531
        %2570 = vmatprep.subr.mxu0 0.0
        %2571 = vmatpush2.msra.mxu0 0.0
        %2572 = vmatprep.subr.mxu0 0.0
        %2573 = vmatpush2.msra.mxu0 0.0
        %2574 = vmatprep.subr.mxu0 0.0
        %2575 = vmatpush2.msra.mxu0 0.0
        %2576 = vmatprep.subr.mxu0 0.0
        %2577 = vmatpush2.msra.mxu0 0.0
        %2578 = vmatprep.subr.mxu0 0.0
        %2579 = vmatpush2.msra.mxu0 0.0
        %2580 = vmatprep.subr.mxu0 0.0
        %2581 = vmatpush2.msra.mxu0 0.0
        %2582 = vmatprep.subr.mxu0 0.0
        %2583 = vmatpush2.msra.mxu0 0.0
        %2584 = vmatprep.subr.mxu0 0.0
        %2585 = vmatpush2.msra.mxu0 0.0
        %2586 = vmatprep.subr.mxu0 0.0
        %2587 = vmatpush2.msra.mxu0 0.0
        %2588 = vmatprep.subr.mxu0 0.0
        %2589 = vmatpush2.msra.mxu0 0.0
        %2590 = vmatprep.subr.mxu0 0.0
        %2591 = vmatpush2.msra.mxu0 0.0
        %2592 = vmatprep.subr.mxu0 0.0
        %2593 = vmatpush2.msra.mxu0 0.0
        %2594 = vmatprep.subr.mxu0 0.0
        %2595 = vmatpush2.msra.mxu0 0.0
        %2596 = vmatprep.subr.mxu0 0.0
        %2597 = vmatpush2.msra.mxu0 0.0
        %2598 = vmatprep.subr.mxu0 0.0
        %2599 = vmatpush2.msra.mxu0 0.0
        %2600 = vmatprep.subr.mxu0 0.0
        %2601 = vmatpush2.msra.mxu0 0.0
        %2602 = vmatprep.mubr.f32.mxu0 0.0
        %2603 = vmatmul.mubr.f32.gmra.mxu0 %v2536
        %v2604 = vpop.f32.mrf.mxu0
        %v2605 = vadd.f32 0.0, %v2604
        %v2606 = vpop.f32.mrf.mxu0
        %2607 = vdwg.mxu0
        %v2608 = vadd.f32 %v1352, %v2605
        %v2609 = vld [vmem:[#allocation14] sm:$0x1]
        %v2611 = vlaneseq
        %v2612 = vshrl.u32 %v2611, 7
        %v2613 = vsub.s32 0, %v2612
        %v2614 = vrot.slane %v2609, %v2613
        %v2616 = vadd.f32 %v2608, %v2614
        %v2617 = vld [vmem:[#allocation19] sm:$0x1]
        %v2618 = vld [vmem:[#allocation20] sm:$0x1]
        %v2619 = vsel %vm1324, %v2616, 0.0
        %2620 = vadd.xlane.f32.xlu0 %v2619
        %v2621 = vpop.xlane.xlu0 %2620
        %v2622 = vmul.f32 %v2621, %v1328
        %v2623 = vsub.f32 %v2616, %v2622
        %v2624 = vmul.f32 %v2623, %v2623
        %v2625 = vsel %vm1324, %v2624, 0.0
        %2626 = vadd.xlane.f32.xlu0 %v2625
        %v2627 = vpop.xlane.xlu0 %2626
        %v2628 = vmul.f32 %v2627, %v1328
        %v2629 = vadd.f32 %v2628, 1e-05
        %v2630 = vrsqrt.pop %v2629
        %v2631 = vmul.f32 %v2623, %v2630
        %v2633 = vlaneseq
        %v2634 = vshrl.u32 %v2633, 7
        %v2635 = vsub.s32 0, %v2634
        %v2636 = vrot.slane %v2617, %v2635
        %v2638 = vmul.f32 %v2631, %v2636
        %v2640 = vlaneseq
        %v2641 = vshrl.u32 %v2640, 7
        %v2642 = vsub.s32 0, %v2641
        %v2643 = vrot.slane %v2618, %v2642
        %v2645 = vadd.f32 %v2638, %v2643
        %v2646 = vld [vmem:[#allocation16] sm:$0xff]
        %v2647 = vld [vmem:[#allocation16 + $0x8] sm:$0xff]
        %v2649 = vsel %vm1467, %v2488, 0
        %v2652 = vsel %vm1467, %v2500, 0
        %v2655 = vsel %vm1467, %v2515, 0
        %v2658 = vsel %vm1467, %v2530, 0
        %2660 = vmatprep.subr.mxu0 0.0
        %2661 = vmatpush1.msra.mxu0 0.0
        %2662 = vmatprep.subr.mxu0 0.0
        %2663 = vmatpush1.msra.mxu0 0.0
        %2664 = vmatprep.subr.mxu0 0.0
        %2665 = vmatpush1.msra.mxu0 0.0
        %2666 = vmatprep.subr.mxu0 0.0
        %2667 = vmatpush1.msra.mxu0 0.0
        %2668 = vmatprep.subr.mxu0 0.0
        %2669 = vmatpush1.msra.mxu0 0.0
        %2670 = vmatprep.subr.mxu0 0.0
        %2671 = vmatpush1.msra.mxu0 0.0
        %2672 = vmatprep.subr.mxu0 0.0
        %2673 = vmatpush1.msra.mxu0 0.0
        %2674 = vmatprep.subr.mxu0 0.0
        %2675 = vmatpush1.msra.mxu0 0.0
        %2676 = vmatprep.subr.mxu0 0.0
        %2677 = vmatpush1.msra.mxu0 0.0
        %2678 = vmatprep.subr.mxu0 0.0
        %2679 = vmatpush1.msra.mxu0 0.0
        %2680 = vmatprep.subr.mxu0 0.0
        %2681 = vmatpush1.msra.mxu0 0.0
        %2682 = vmatprep.subr.mxu0 0.0
        %2683 = vmatpush1.msra.mxu0 0.0
        %2684 = vmatprep.subr.mxu0 0.0
        %2685 = vmatpush1.msra.mxu0 0.0
        %2686 = vmatprep.subr.mxu0 0.0
        %2687 = vmatpush1.msra.mxu0 0.0
        %2688 = vmatprep.subr.mxu0 0.0
        %2689 = vmatpush1.msra.mxu0 %v2647
        %2690 = vmatprep.subr.mxu0 0.0
        %2691 = vmatpush1.msra.mxu0 %v2646
        %2692 = vmatprep.subr.mxu0 0.0
        %2693 = vmatpush2.msra.mxu0 0.0
        %2694 = vmatprep.subr.mxu0 0.0
        %2695 = vmatpush2.msra.mxu0 0.0
        %2696 = vmatprep.subr.mxu0 0.0
        %2697 = vmatpush2.msra.mxu0 0.0
        %2698 = vmatprep.subr.mxu0 0.0
        %2699 = vmatpush2.msra.mxu0 0.0
        %2700 = vmatprep.subr.mxu0 0.0
        %2701 = vmatpush2.msra.mxu0 0.0
        %2702 = vmatprep.subr.mxu0 0.0
        %2703 = vmatpush2.msra.mxu0 0.0
        %2704 = vmatprep.subr.mxu0 0.0
        %2705 = vmatpush2.msra.mxu0 0.0
        %2706 = vmatprep.subr.mxu0 0.0
        %2707 = vmatpush2.msra.mxu0 0.0
        %2708 = vmatprep.subr.mxu0 0.0
        %2709 = vmatpush2.msra.mxu0 0.0
        %2710 = vmatprep.subr.mxu0 0.0
        %2711 = vmatpush2.msra.mxu0 0.0
        %2712 = vmatprep.subr.mxu0 0.0
        %2713 = vmatpush2.msra.mxu0 0.0
        %2714 = vmatprep.subr.mxu0 0.0
        %2715 = vmatpush2.msra.mxu0 0.0
        %2716 = vmatprep.subr.mxu0 0.0
        %2717 = vmatpush2.msra.mxu0 0.0
        %2718 = vmatprep.subr.mxu0 0.0
        %2719 = vmatpush2.msra.mxu0 0.0
        %2720 = vmatprep.subr.mxu0 0.0
        %2721 = vmatpush2.msra.mxu0 0.0
        %2722 = vmatprep.subr.mxu0 0.0
        %2723 = vmatpush2.msra.mxu0 0.0
        %2724 = vmatprep.mubr.f32.mxu0 0.0
        %2725 = vmatmul.mubr.f32.gmra.mxu0 %v2649
        %v2726 = vpop.f32.mrf.mxu0
        %v2727 = vadd.f32 0.0, %v2726
        %v2728 = vpop.f32.mrf.mxu0
        %2729 = vmatprep.mubr.f32.mxu0 0.0
        %2730 = vmatmul.mubr.f32.gmra.mxu0 %v2652
        %v2731 = vpop.f32.mrf.mxu0
        %v2732 = vadd.f32 0.0, %v2731
        %v2733 = vpop.f32.mrf.mxu0
        %2734 = vmatprep.mubr.f32.mxu0 0.0
        %2735 = vmatmul.mubr.f32.gmra.mxu0 %v2655
        %v2736 = vpop.f32.mrf.mxu0
        %v2737 = vadd.f32 0.0, %v2736
        %v2738 = vpop.f32.mrf.mxu0
        %2739 = vmatprep.mubr.f32.mxu0 0.0
        %2740 = vmatmul.mubr.f32.gmra.mxu0 %v2658
        %v2741 = vpop.f32.mrf.mxu0
        %v2742 = vadd.f32 0.0, %v2741
        %v2743 = vpop.f32.mrf.mxu0
        %2744 = vdwg.mxu0
        %v2745 = vadd.f32 %v1537, %v2727
        %v2746 = vadd.f32 %v1538, %v2732
        %v2747 = vadd.f32 %v1539, %v2737
        %v2748 = vadd.f32 %v1540, %v2742
        %v2749 = vld [vmem:[#allocation17] sm:$0x1]
        %v2751 = vlaneseq
        %v2752 = vshrl.u32 %v2751, 7
        %v2753 = vsub.s32 0, %v2752
        %v2754 = vrot.slane %v2749, %v2753
        %v2756 = vadd.f32 %v2745, %v2754
        %v2757 = vadd.f32 %v2746, %v2754
        %v2758 = vadd.f32 %v2747, %v2754
        %v2759 = vadd.f32 %v2748, %v2754
        %v2760 = vld [vmem:[#allocation22] sm:$0x1]
        %v2761 = vld [vmem:[#allocation23] sm:$0x1]
        %v2762 = vsel %vm1467, %v2756, 0.0
        %2763 = vadd.xlane.f32.xlu0 %v2762
        %v2764 = vpop.xlane.xlu0 %2763
        %v2765 = vsel %vm1467, %v2757, 0.0
        %2766 = vadd.xlane.f32.xlu0 %v2765
        %v2767 = vpop.xlane.xlu0 %2766
        %v2768 = vsel %vm1467, %v2758, 0.0
        %2769 = vadd.xlane.f32.xlu0 %v2768
        %v2770 = vpop.xlane.xlu0 %2769
        %v2771 = vsel %vm1467, %v2759, 0.0
        %2772 = vadd.xlane.f32.xlu0 %v2771
        %v2773 = vpop.xlane.xlu0 %2772
        %v2774 = vmul.f32 %v2764, %v1480
        %v2775 = vmul.f32 %v2767, %v1480
        %v2776 = vmul.f32 %v2770, %v1480
        %v2777 = vmul.f32 %v2773, %v1480
        %v2778 = vsub.f32 %v2756, %v2774
        %v2779 = vsub.f32 %v2757, %v2775
        %v2780 = vsub.f32 %v2758, %v2776
        %v2781 = vsub.f32 %v2759, %v2777
        %v2782 = vmul.f32 %v2778, %v2778
        %v2783 = vmul.f32 %v2779, %v2779
        %v2784 = vmul.f32 %v2780, %v2780
        %v2785 = vmul.f32 %v2781, %v2781
        %v2786 = vsel %vm1467, %v2782, 0.0
        %2787 = vadd.xlane.f32.xlu0 %v2786
        %v2788 = vpop.xlane.xlu0 %2787
        %v2789 = vsel %vm1467, %v2783, 0.0
        %2790 = vadd.xlane.f32.xlu0 %v2789
        %v2791 = vpop.xlane.xlu0 %2790
        %v2792 = vsel %vm1467, %v2784, 0.0
        %2793 = vadd.xlane.f32.xlu0 %v2792
        %v2794 = vpop.xlane.xlu0 %2793
        %v2795 = vsel %vm1467, %v2785, 0.0
        %2796 = vadd.xlane.f32.xlu0 %v2795
        %v2797 = vpop.xlane.xlu0 %2796
        %v2798 = vmul.f32 %v2788, %v1480
        %v2799 = vmul.f32 %v2791, %v1480
        %v2800 = vmul.f32 %v2794, %v1480
        %v2801 = vmul.f32 %v2797, %v1480
        %v2802 = vadd.f32 %v2798, 1e-05
        %v2803 = vadd.f32 %v2799, 1e-05
        %v2804 = vadd.f32 %v2800, 1e-05
        %v2805 = vadd.f32 %v2801, 1e-05
        %v2806 = vrsqrt.pop %v2802
        %v2807 = vrsqrt.pop %v2803
        %v2808 = vrsqrt.pop %v2804
        %v2809 = vrsqrt.pop %v2805
        %v2810 = vmul.f32 %v2778, %v2806
        %v2811 = vmul.f32 %v2779, %v2807
        %v2812 = vmul.f32 %v2780, %v2808
        %v2813 = vmul.f32 %v2781, %v2809
        %v2815 = vlaneseq
        %v2816 = vshrl.u32 %v2815, 7
        %v2817 = vsub.s32 0, %v2816
        %v2818 = vrot.slane %v2760, %v2817
        %v2820 = vmul.f32 %v2810, %v2818
        %v2821 = vmul.f32 %v2811, %v2818
        %v2822 = vmul.f32 %v2812, %v2818
        %v2823 = vmul.f32 %v2813, %v2818
        %v2825 = vlaneseq
        %v2826 = vshrl.u32 %v2825, 7
        %v2827 = vsub.s32 0, %v2826
        %v2828 = vrot.slane %v2761, %v2827
        %v2830 = vadd.f32 %v2820, %v2828
        %v2831 = vadd.f32 %v2821, %v2828
        %v2832 = vadd.f32 %v2822, %v2828
        %v2833 = vadd.f32 %v2823, %v2828
        %v2834 = vld [vmem:[%s45] sm:$0xff]
        %v2835 = vld [vmem:[%s45 + $0x8] sm:$0xff]
        %v2836 = vld [vmem:[%s45 + $0x10] sm:$0xff]
        %v2837 = vld [vmem:[%s45 + $0x18] sm:$0xff]
        %v2838 = vld [vmem:[#allocation25] sm:$0x1]
        %v2840 = vlaneseq
        %v2841 = vshrl.u32 %v2840, 7
        %v2842 = vsub.s32 0, %v2841
        %v2843 = vrot.slane %v2838, %v2842
        %v2846 = vsel %vm1324, %v2645, 0
        %2848 = vmatprep.subr.mxu0 0.0
        %2849 = vmatpush1.msra.mxu0 0.0
        %2850 = vmatprep.subr.mxu0 0.0
        %2851 = vmatpush1.msra.mxu0 0.0
        %2852 = vmatprep.subr.mxu0 0.0
        %2853 = vmatpush1.msra.mxu0 0.0
        %2854 = vmatprep.subr.mxu0 0.0
        %2855 = vmatpush1.msra.mxu0 0.0
        %2856 = vmatprep.subr.mxu0 0.0
        %2857 = vmatpush1.msra.mxu0 0.0
        %2858 = vmatprep.subr.mxu0 0.0
        %2859 = vmatpush1.msra.mxu0 0.0
        %2860 = vmatprep.subr.mxu0 0.0
        %2861 = vmatpush1.msra.mxu0 0.0
        %2862 = vmatprep.subr.mxu0 0.0
        %2863 = vmatpush1.msra.mxu0 0.0
        %2864 = vmatprep.subr.mxu0 0.0
        %2865 = vmatpush1.msra.mxu0 0.0
        %2866 = vmatprep.subr.mxu0 0.0
        %2867 = vmatpush1.msra.mxu0 0.0
        %2868 = vmatprep.subr.mxu0 0.0
        %2869 = vmatpush1.msra.mxu0 0.0
        %2870 = vmatprep.subr.mxu0 0.0
        %2871 = vmatpush1.msra.mxu0 0.0
        %2872 = vmatprep.subr.mxu0 0.0
        %2873 = vmatpush1.msra.mxu0 %v2837
        %2874 = vmatprep.subr.mxu0 0.0
        %2875 = vmatpush1.msra.mxu0 %v2836
        %2876 = vmatprep.subr.mxu0 0.0
        %2877 = vmatpush1.msra.mxu0 %v2835
        %2878 = vmatprep.subr.mxu0 0.0
        %2879 = vmatpush1.msra.mxu0 %v2834
        %2880 = vmatprep.subr.mxu0 0.0
        %2881 = vmatpush2.msra.mxu0 0.0
        %2882 = vmatprep.subr.mxu0 0.0
        %2883 = vmatpush2.msra.mxu0 0.0
        %2884 = vmatprep.subr.mxu0 0.0
        %2885 = vmatpush2.msra.mxu0 0.0
        %2886 = vmatprep.subr.mxu0 0.0
        %2887 = vmatpush2.msra.mxu0 0.0
        %2888 = vmatprep.subr.mxu0 0.0
        %2889 = vmatpush2.msra.mxu0 0.0
        %2890 = vmatprep.subr.mxu0 0.0
        %2891 = vmatpush2.msra.mxu0 0.0
        %2892 = vmatprep.subr.mxu0 0.0
        %2893 = vmatpush2.msra.mxu0 0.0
        %2894 = vmatprep.subr.mxu0 0.0
        %2895 = vmatpush2.msra.mxu0 0.0
        %2896 = vmatprep.subr.mxu0 0.0
        %2897 = vmatpush2.msra.mxu0 0.0
        %2898 = vmatprep.subr.mxu0 0.0
        %2899 = vmatpush2.msra.mxu0 0.0
        %2900 = vmatprep.subr.mxu0 0.0
        %2901 = vmatpush2.msra.mxu0 0.0
        %2902 = vmatprep.subr.mxu0 0.0
        %2903 = vmatpush2.msra.mxu0 0.0
        %2904 = vmatprep.subr.mxu0 0.0
        %2905 = vmatpush2.msra.mxu0 0.0
        %2906 = vmatprep.subr.mxu0 0.0
        %2907 = vmatpush2.msra.mxu0 0.0
        %2908 = vmatprep.subr.mxu0 0.0
        %2909 = vmatpush2.msra.mxu0 0.0
        %2910 = vmatprep.subr.mxu0 0.0
        %2911 = vmatpush2.msra.mxu0 0.0
        %2912 = vmatprep.mubr.f32.mxu0 0.0
        %2913 = vmatmul.mubr.f32.gmra.mxu0 %v2846
        %v2914 = vpop.f32.mrf.mxu0
        %v2915 = vadd.f32 %v2843, %v2914
        %v2916 = vpop.f32.mrf.mxu0
        %2917 = vdwg.mxu0
        %2919 = vrot.lane.b32.xlu0 %v2915, 96
        %v2920 = vpop.permute.xlu0 %2919
        %v2921 = vsel %vm1734, %v2915, 0
        %v2923 = vsel %vm1734, %v2920, 0
        %2925 = vmatprep.subr.mxu0 0.0
        %2926 = vmatpush1.xpose.msra.mxu0 0.0
        %2927 = vmatprep.subr.mxu0 0.0
        %2928 = vmatpush1.xpose.msra.mxu0 0.0
        %2929 = vmatprep.subr.mxu0 0.0
        %2930 = vmatpush1.xpose.msra.mxu0 0.0
        %2931 = vmatprep.subr.mxu0 0.0
        %2932 = vmatpush1.xpose.msra.mxu0 0.0
        %2933 = vmatprep.subr.mxu0 0.0
        %2934 = vmatpush1.xpose.msra.mxu0 0.0
        %2935 = vmatprep.subr.mxu0 0.0
        %2936 = vmatpush1.xpose.msra.mxu0 0.0
        %2937 = vmatprep.subr.mxu0 0.0
        %2938 = vmatpush1.xpose.msra.mxu0 0.0
        %2939 = vmatprep.subr.mxu0 0.0
        %2940 = vmatpush1.xpose.msra.mxu0 0.0
        %2941 = vmatprep.subr.mxu0 0.0
        %2942 = vmatpush1.xpose.msra.mxu0 0.0
        %2943 = vmatprep.subr.mxu0 0.0
        %2944 = vmatpush1.xpose.msra.mxu0 0.0
        %2945 = vmatprep.subr.mxu0 0.0
        %2946 = vmatpush1.xpose.msra.mxu0 0.0
        %2947 = vmatprep.subr.mxu0 0.0
        %2948 = vmatpush1.xpose.msra.mxu0 0.0
        %2949 = vmatprep.subr.mxu0 0.0
        %2950 = vmatpush1.xpose.msra.mxu0 0.0
        %2951 = vmatprep.subr.mxu0 0.0
        %2952 = vmatpush1.xpose.msra.mxu0 0.0
        %2953 = vmatprep.subr.mxu0 0.0
        %2954 = vmatpush1.xpose.msra.mxu0 0.0
        %2955 = vmatprep.subr.mxu0 0.0
        %2956 = vmatpush1.xpose.msra.mxu0 %v2923
        %2957 = vmatprep.subr.mxu0 0.0
        %2958 = vmatpush2.xpose.msra.mxu0 0.0
        %2959 = vmatprep.subr.mxu0 0.0
        %2960 = vmatpush2.xpose.msra.mxu0 0.0
        %2961 = vmatprep.subr.mxu0 0.0
        %2962 = vmatpush2.xpose.msra.mxu0 0.0
        %2963 = vmatprep.subr.mxu0 0.0
        %2964 = vmatpush2.xpose.msra.mxu0 0.0
        %2965 = vmatprep.subr.mxu0 0.0
        %2966 = vmatpush2.xpose.msra.mxu0 0.0
        %2967 = vmatprep.subr.mxu0 0.0
        %2968 = vmatpush2.xpose.msra.mxu0 0.0
        %2969 = vmatprep.subr.mxu0 0.0
        %2970 = vmatpush2.xpose.msra.mxu0 0.0
        %2971 = vmatprep.subr.mxu0 0.0
        %2972 = vmatpush2.xpose.msra.mxu0 0.0
        %2973 = vmatprep.subr.mxu0 0.0
        %2974 = vmatpush2.xpose.msra.mxu0 0.0
        %2975 = vmatprep.subr.mxu0 0.0
        %2976 = vmatpush2.xpose.msra.mxu0 0.0
        %2977 = vmatprep.subr.mxu0 0.0
        %2978 = vmatpush2.xpose.msra.mxu0 0.0
        %2979 = vmatprep.subr.mxu0 0.0
        %2980 = vmatpush2.xpose.msra.mxu0 0.0
        %2981 = vmatprep.subr.mxu0 0.0
        %2982 = vmatpush2.xpose.msra.mxu0 0.0
        %2983 = vmatprep.subr.mxu0 0.0
        %2984 = vmatpush2.xpose.msra.mxu0 0.0
        %2985 = vmatprep.subr.mxu0 0.0
        %2986 = vmatpush2.xpose.msra.mxu0 0.0
        %2987 = vmatprep.subr.mxu0 0.0
        %2988 = vmatpush2.xpose.msra.mxu0 0.0
        %2989 = vmatprep.mubr.f32.mxu0 0.0
        %2990 = vmatmul.mubr.f32.gmra.mxu0 %v2921
        %v2991 = vpop.f32.mrf.mxu0
        %v2992 = vadd.f32 0.0, %v2991
        %v2993 = vpop.f32.mrf.mxu0
        %2994 = vdwg.mxu0
        %v2995 = vmul.f32 %v2992, 0.35355338
        %v2996 = vsel %vm1734, %v2995, -inf
        %2997 = vmax.xlane.f32.xlu0 %v2996
        %v2998 = vpop.xlane.xlu0 %2997
        %v2999 = vsub.f32 %v2995, %v2998
        %v3000 = vmul.f32 %v2999, 1.442695
        %v3001 = vpow.pop %v3000
        %v3002 = vsel %vm1734, %v3001, 0.0
        %3003 = vadd.xlane.f32.xlu0 %v3002
        %v3004 = vpop.xlane.xlu0 %3003
        %v3005 = vrcp.pop %v3004
        %v3006 = vmul.f32 %v3001, %v3005
        %3007 = vrot.lane.b32.xlu0 %v2915, 64
        %v3008 = vpop.permute.xlu0 %3007
        %v3011 = vsel %vm1734, %v3006, 0
        %3013 = vmatprep.subr.mxu0 0.0
        %3014 = vmatpush1.msra.mxu0 0.0
        %3015 = vmatprep.subr.mxu0 0.0
        %3016 = vmatpush1.msra.mxu0 0.0
        %3017 = vmatprep.subr.mxu0 0.0
        %3018 = vmatpush1.msra.mxu0 0.0
        %3019 = vmatprep.subr.mxu0 0.0
        %3020 = vmatpush1.msra.mxu0 0.0
        %3021 = vmatprep.subr.mxu0 0.0
        %3022 = vmatpush1.msra.mxu0 0.0
        %3023 = vmatprep.subr.mxu0 0.0
        %3024 = vmatpush1.msra.mxu0 0.0
        %3025 = vmatprep.subr.mxu0 0.0
        %3026 = vmatpush1.msra.mxu0 0.0
        %3027 = vmatprep.subr.mxu0 0.0
        %3028 = vmatpush1.msra.mxu0 0.0
        %3029 = vmatprep.subr.mxu0 0.0
        %3030 = vmatpush1.msra.mxu0 0.0
        %3031 = vmatprep.subr.mxu0 0.0
        %3032 = vmatpush1.msra.mxu0 0.0
        %3033 = vmatprep.subr.mxu0 0.0
        %3034 = vmatpush1.msra.mxu0 0.0
        %3035 = vmatprep.subr.mxu0 0.0
        %3036 = vmatpush1.msra.mxu0 0.0
        %3037 = vmatprep.subr.mxu0 0.0
        %3038 = vmatpush1.msra.mxu0 0.0
        %3039 = vmatprep.subr.mxu0 0.0
        %3040 = vmatpush1.msra.mxu0 0.0
        %3041 = vmatprep.subr.mxu0 0.0
        %3042 = vmatpush1.msra.mxu0 0.0
        %3043 = vmatprep.subr.mxu0 0.0
        %3044 = vmatpush1.msra.mxu0 %v3008
        %3045 = vmatprep.subr.mxu0 0.0
        %3046 = vmatpush2.msra.mxu0 0.0
        %3047 = vmatprep.subr.mxu0 0.0
        %3048 = vmatpush2.msra.mxu0 0.0
        %3049 = vmatprep.subr.mxu0 0.0
        %3050 = vmatpush2.msra.mxu0 0.0
        %3051 = vmatprep.subr.mxu0 0.0
        %3052 = vmatpush2.msra.mxu0 0.0
        %3053 = vmatprep.subr.mxu0 0.0
        %3054 = vmatpush2.msra.mxu0 0.0
        %3055 = vmatprep.subr.mxu0 0.0
        %3056 = vmatpush2.msra.mxu0 0.0
        %3057 = vmatprep.subr.mxu0 0.0
        %3058 = vmatpush2.msra.mxu0 0.0
        %3059 = vmatprep.subr.mxu0 0.0
        %3060 = vmatpush2.msra.mxu0 0.0
        %3061 = vmatprep.subr.mxu0 0.0
        %3062 = vmatpush2.msra.mxu0 0.0
        %3063 = vmatprep.subr.mxu0 0.0
        %3064 = vmatpush2.msra.mxu0 0.0
        %3065 = vmatprep.subr.mxu0 0.0
        %3066 = vmatpush2.msra.mxu0 0.0
        %3067 = vmatprep.subr.mxu0 0.0
        %3068 = vmatpush2.msra.mxu0 0.0
        %3069 = vmatprep.subr.mxu0 0.0
        %3070 = vmatpush2.msra.mxu0 0.0
        %3071 = vmatprep.subr.mxu0 0.0
        %3072 = vmatpush2.msra.mxu0 0.0
        %3073 = vmatprep.subr.mxu0 0.0
        %3074 = vmatpush2.msra.mxu0 0.0
        %3075 = vmatprep.subr.mxu0 0.0
        %3076 = vmatpush2.msra.mxu0 0.0
        %3077 = vmatprep.mubr.f32.mxu0 0.0
        %3078 = vmatmul.mubr.f32.gmra.mxu0 %v3011
        %v3079 = vpop.f32.mrf.mxu0
        %v3080 = vadd.f32 0.0, %v3079
        %v3081 = vpop.f32.mrf.mxu0
        %3082 = vdwg.mxu0
        %3083 = vrot.lane.b32.xlu0 %v2915, 120
        %v3084 = vpop.permute.xlu0 %3083
        %3085 = vrot.lane.b32.xlu0 %v2915, 88
        %v3086 = vpop.permute.xlu0 %3085
        %v3087 = vsel %vm1734, %v3084, 0
        %v3089 = vsel %vm1734, %v3086, 0
        %3091 = vmatprep.subr.mxu0 0.0
        %3092 = vmatpush1.xpose.msra.mxu0 0.0
        %3093 = vmatprep.subr.mxu0 0.0
        %3094 = vmatpush1.xpose.msra.mxu0 0.0
        %3095 = vmatprep.subr.mxu0 0.0
        %3096 = vmatpush1.xpose.msra.mxu0 0.0
        %3097 = vmatprep.subr.mxu0 0.0
        %3098 = vmatpush1.xpose.msra.mxu0 0.0
        %3099 = vmatprep.subr.mxu0 0.0
        %3100 = vmatpush1.xpose.msra.mxu0 0.0
        %3101 = vmatprep.subr.mxu0 0.0
        %3102 = vmatpush1.xpose.msra.mxu0 0.0
        %3103 = vmatprep.subr.mxu0 0.0
        %3104 = vmatpush1.xpose.msra.mxu0 0.0
        %3105 = vmatprep.subr.mxu0 0.0
        %3106 = vmatpush1.xpose.msra.mxu0 0.0
        %3107 = vmatprep.subr.mxu0 0.0
        %3108 = vmatpush1.xpose.msra.mxu0 0.0
        %3109 = vmatprep.subr.mxu0 0.0
        %3110 = vmatpush1.xpose.msra.mxu0 0.0
        %3111 = vmatprep.subr.mxu0 0.0
        %3112 = vmatpush1.xpose.msra.mxu0 0.0
        %3113 = vmatprep.subr.mxu0 0.0
        %3114 = vmatpush1.xpose.msra.mxu0 0.0
        %3115 = vmatprep.subr.mxu0 0.0
        %3116 = vmatpush1.xpose.msra.mxu0 0.0
        %3117 = vmatprep.subr.mxu0 0.0
        %3118 = vmatpush1.xpose.msra.mxu0 0.0
        %3119 = vmatprep.subr.mxu0 0.0
        %3120 = vmatpush1.xpose.msra.mxu0 0.0
        %3121 = vmatprep.subr.mxu0 0.0
        %3122 = vmatpush1.xpose.msra.mxu0 %v3089
        %3123 = vmatprep.subr.mxu0 0.0
        %3124 = vmatpush2.xpose.msra.mxu0 0.0
        %3125 = vmatprep.subr.mxu0 0.0
        %3126 = vmatpush2.xpose.msra.mxu0 0.0
        %3127 = vmatprep.subr.mxu0 0.0
        %3128 = vmatpush2.xpose.msra.mxu0 0.0
        %3129 = vmatprep.subr.mxu0 0.0
        %3130 = vmatpush2.xpose.msra.mxu0 0.0
        %3131 = vmatprep.subr.mxu0 0.0
        %3132 = vmatpush2.xpose.msra.mxu0 0.0
        %3133 = vmatprep.subr.mxu0 0.0
        %3134 = vmatpush2.xpose.msra.mxu0 0.0
        %3135 = vmatprep.subr.mxu0 0.0
        %3136 = vmatpush2.xpose.msra.mxu0 0.0
        %3137 = vmatprep.subr.mxu0 0.0
        %3138 = vmatpush2.xpose.msra.mxu0 0.0
        %3139 = vmatprep.subr.mxu0 0.0
        %3140 = vmatpush2.xpose.msra.mxu0 0.0
        %3141 = vmatprep.subr.mxu0 0.0
        %3142 = vmatpush2.xpose.msra.mxu0 0.0
        %3143 = vmatprep.subr.mxu0 0.0
        %3144 = vmatpush2.xpose.msra.mxu0 0.0
        %3145 = vmatprep.subr.mxu0 0.0
        %3146 = vmatpush2.xpose.msra.mxu0 0.0
        %3147 = vmatprep.subr.mxu0 0.0
        %3148 = vmatpush2.xpose.msra.mxu0 0.0
        %3149 = vmatprep.subr.mxu0 0.0
        %3150 = vmatpush2.xpose.msra.mxu0 0.0
        %3151 = vmatprep.subr.mxu0 0.0
        %3152 = vmatpush2.xpose.msra.mxu0 0.0
        %3153 = vmatprep.subr.mxu0 0.0
        %3154 = vmatpush2.xpose.msra.mxu0 0.0
        %3155 = vmatprep.mubr.f32.mxu0 0.0
        %3156 = vmatmul.mubr.f32.gmra.mxu0 %v3087
        %v3157 = vpop.f32.mrf.mxu0
        %v3158 = vadd.f32 0.0, %v3157
        %v3159 = vpop.f32.mrf.mxu0
        %3160 = vdwg.mxu0
        %v3161 = vmul.f32 %v3158, 0.35355338
        %v3162 = vsel %vm1734, %v3161, -inf
        %3163 = vmax.xlane.f32.xlu0 %v3162
        %v3164 = vpop.xlane.xlu0 %3163
        %v3165 = vsub.f32 %v3161, %v3164
        %v3166 = vmul.f32 %v3165, 1.442695
        %v3167 = vpow.pop %v3166
        %v3168 = vsel %vm1734, %v3167, 0.0
        %3169 = vadd.xlane.f32.xlu0 %v3168
        %v3170 = vpop.xlane.xlu0 %3169
        %v3171 = vrcp.pop %v3170
        %v3172 = vmul.f32 %v3167, %v3171
        %3173 = vrot.lane.b32.xlu0 %v2915, 56
        %v3174 = vpop.permute.xlu0 %3173
        %v3177 = vsel %vm1734, %v3172, 0
        %3179 = vmatprep.subr.mxu0 0.0
        %3180 = vmatpush1.msra.mxu0 0.0
        %3181 = vmatprep.subr.mxu0 0.0
        %3182 = vmatpush1.msra.mxu0 0.0
        %3183 = vmatprep.subr.mxu0 0.0
        %3184 = vmatpush1.msra.mxu0 0.0
        %3185 = vmatprep.subr.mxu0 0.0
        %3186 = vmatpush1.msra.mxu0 0.0
        %3187 = vmatprep.subr.mxu0 0.0
        %3188 = vmatpush1.msra.mxu0 0.0
        %3189 = vmatprep.subr.mxu0 0.0
        %3190 = vmatpush1.msra.mxu0 0.0
        %3191 = vmatprep.subr.mxu0 0.0
        %3192 = vmatpush1.msra.mxu0 0.0
        %3193 = vmatprep.subr.mxu0 0.0
        %3194 = vmatpush1.msra.mxu0 0.0
        %3195 = vmatprep.subr.mxu0 0.0
        %3196 = vmatpush1.msra.mxu0 0.0
        %3197 = vmatprep.subr.mxu0 0.0
        %3198 = vmatpush1.msra.mxu0 0.0
        %3199 = vmatprep.subr.mxu0 0.0
        %3200 = vmatpush1.msra.mxu0 0.0
        %3201 = vmatprep.subr.mxu0 0.0
        %3202 = vmatpush1.msra.mxu0 0.0
        %3203 = vmatprep.subr.mxu0 0.0
        %3204 = vmatpush1.msra.mxu0 0.0
        %3205 = vmatprep.subr.mxu0 0.0
        %3206 = vmatpush1.msra.mxu0 0.0
        %3207 = vmatprep.subr.mxu0 0.0
        %3208 = vmatpush1.msra.mxu0 0.0
        %3209 = vmatprep.subr.mxu0 0.0
        %3210 = vmatpush1.msra.mxu0 %v3174
        %3211 = vmatprep.subr.mxu0 0.0
        %3212 = vmatpush2.msra.mxu0 0.0
        %3213 = vmatprep.subr.mxu0 0.0
        %3214 = vmatpush2.msra.mxu0 0.0
        %3215 = vmatprep.subr.mxu0 0.0
        %3216 = vmatpush2.msra.mxu0 0.0
        %3217 = vmatprep.subr.mxu0 0.0
        %3218 = vmatpush2.msra.mxu0 0.0
        %3219 = vmatprep.subr.mxu0 0.0
        %3220 = vmatpush2.msra.mxu0 0.0
        %3221 = vmatprep.subr.mxu0 0.0
        %3222 = vmatpush2.msra.mxu0 0.0
        %3223 = vmatprep.subr.mxu0 0.0
        %3224 = vmatpush2.msra.mxu0 0.0
        %3225 = vmatprep.subr.mxu0 0.0
        %3226 = vmatpush2.msra.mxu0 0.0
        %3227 = vmatprep.subr.mxu0 0.0
        %3228 = vmatpush2.msra.mxu0 0.0
        %3229 = vmatprep.subr.mxu0 0.0
        %3230 = vmatpush2.msra.mxu0 0.0
        %3231 = vmatprep.subr.mxu0 0.0
        %3232 = vmatpush2.msra.mxu0 0.0
        %3233 = vmatprep.subr.mxu0 0.0
        %3234 = vmatpush2.msra.mxu0 0.0
        %3235 = vmatprep.subr.mxu0 0.0
        %3236 = vmatpush2.msra.mxu0 0.0
        %3237 = vmatprep.subr.mxu0 0.0
        %3238 = vmatpush2.msra.mxu0 0.0
        %3239 = vmatprep.subr.mxu0 0.0
        %3240 = vmatpush2.msra.mxu0 0.0
        %3241 = vmatprep.subr.mxu0 0.0
        %3242 = vmatpush2.msra.mxu0 0.0
        %3243 = vmatprep.mubr.f32.mxu0 0.0
        %3244 = vmatmul.mubr.f32.gmra.mxu0 %v3177
        %v3245 = vpop.f32.mrf.mxu0
        %v3246 = vadd.f32 0.0, %v3245
        %v3247 = vpop.f32.mrf.mxu0
        %3248 = vdwg.mxu0
        %3249 = vrot.lane.b32.xlu0 %v2915, 112
        %v3250 = vpop.permute.xlu0 %3249
        %3251 = vrot.lane.b32.xlu0 %v2915, 80
        %v3252 = vpop.permute.xlu0 %3251
        %v3253 = vsel %vm1734, %v3250, 0
        %v3255 = vsel %vm1734, %v3252, 0
        %3257 = vmatprep.subr.mxu0 0.0
        %3258 = vmatpush1.xpose.msra.mxu0 0.0
        %3259 = vmatprep.subr.mxu0 0.0
        %3260 = vmatpush1.xpose.msra.mxu0 0.0
        %3261 = vmatprep.subr.mxu0 0.0
        %3262 = vmatpush1.xpose.msra.mxu0 0.0
        %3263 = vmatprep.subr.mxu0 0.0
        %3264 = vmatpush1.xpose.msra.mxu0 0.0
        %3265 = vmatprep.subr.mxu0 0.0
        %3266 = vmatpush1.xpose.msra.mxu0 0.0
        %3267 = vmatprep.subr.mxu0 0.0
        %3268 = vmatpush1.xpose.msra.mxu0 0.0
        %3269 = vmatprep.subr.mxu0 0.0
        %3270 = vmatpush1.xpose.msra.mxu0 0.0
        %3271 = vmatprep.subr.mxu0 0.0
        %3272 = vmatpush1.xpose.msra.mxu0 0.0
        %3273 = vmatprep.subr.mxu0 0.0
        %3274 = vmatpush1.xpose.msra.mxu0 0.0
        %3275 = vmatprep.subr.mxu0 0.0
        %3276 = vmatpush1.xpose.msra.mxu0 0.0
        %3277 = vmatprep.subr.mxu0 0.0
        %3278 = vmatpush1.xpose.msra.mxu0 0.0
        %3279 = vmatprep.subr.mxu0 0.0
        %3280 = vmatpush1.xpose.msra.mxu0 0.0
        %3281 = vmatprep.subr.mxu0 0.0
        %3282 = vmatpush1.xpose.msra.mxu0 0.0
        %3283 = vmatprep.subr.mxu0 0.0
        %3284 = vmatpush1.xpose.msra.mxu0 0.0
        %3285 = vmatprep.subr.mxu0 0.0
        %3286 = vmatpush1.xpose.msra.mxu0 0.0
        %3287 = vmatprep.subr.mxu0 0.0
        %3288 = vmatpush1.xpose.msra.mxu0 %v3255
        %3289 = vmatprep.subr.mxu0 0.0
        %3290 = vmatpush2.xpose.msra.mxu0 0.0
        %3291 = vmatprep.subr.mxu0 0.0
        %3292 = vmatpush2.xpose.msra.mxu0 0.0
        %3293 = vmatprep.subr.mxu0 0.0
        %3294 = vmatpush2.xpose.msra.mxu0 0.0
        %3295 = vmatprep.subr.mxu0 0.0
        %3296 = vmatpush2.xpose.msra.mxu0 0.0
        %3297 = vmatprep.subr.mxu0 0.0
        %3298 = vmatpush2.xpose.msra.mxu0 0.0
        %3299 = vmatprep.subr.mxu0 0.0
        %3300 = vmatpush2.xpose.msra.mxu0 0.0
        %3301 = vmatprep.subr.mxu0 0.0
        %3302 = vmatpush2.xpose.msra.mxu0 0.0
        %3303 = vmatprep.subr.mxu0 0.0
        %3304 = vmatpush2.xpose.msra.mxu0 0.0
        %3305 = vmatprep.subr.mxu0 0.0
        %3306 = vmatpush2.xpose.msra.mxu0 0.0
        %3307 = vmatprep.subr.mxu0 0.0
        %3308 = vmatpush2.xpose.msra.mxu0 0.0
        %3309 = vmatprep.subr.mxu0 0.0
        %3310 = vmatpush2.xpose.msra.mxu0 0.0
        %3311 = vmatprep.subr.mxu0 0.0
        %3312 = vmatpush2.xpose.msra.mxu0 0.0
        %3313 = vmatprep.subr.mxu0 0.0
        %3314 = vmatpush2.xpose.msra.mxu0 0.0
        %3315 = vmatprep.subr.mxu0 0.0
        %3316 = vmatpush2.xpose.msra.mxu0 0.0
        %3317 = vmatprep.subr.mxu0 0.0
        %3318 = vmatpush2.xpose.msra.mxu0 0.0
        %3319 = vmatprep.subr.mxu0 0.0
        %3320 = vmatpush2.xpose.msra.mxu0 0.0
        %3321 = vmatprep.mubr.f32.mxu0 0.0
        %3322 = vmatmul.mubr.f32.gmra.mxu0 %v3253
        %v3323 = vpop.f32.mrf.mxu0
        %v3324 = vadd.f32 0.0, %v3323
        %v3325 = vpop.f32.mrf.mxu0
        %3326 = vdwg.mxu0
        %v3327 = vmul.f32 %v3324, 0.35355338
        %v3328 = vsel %vm1734, %v3327, -inf
        %3329 = vmax.xlane.f32.xlu0 %v3328
        %v3330 = vpop.xlane.xlu0 %3329
        %v3331 = vsub.f32 %v3327, %v3330
        %v3332 = vmul.f32 %v3331, 1.442695
        %v3333 = vpow.pop %v3332
        %v3334 = vsel %vm1734, %v3333, 0.0
        %3335 = vadd.xlane.f32.xlu0 %v3334
        %v3336 = vpop.xlane.xlu0 %3335
        %v3337 = vrcp.pop %v3336
        %v3338 = vmul.f32 %v3333, %v3337
        %3339 = vrot.lane.b32.xlu0 %v2915, 48
        %v3340 = vpop.permute.xlu0 %3339
        %v3343 = vsel %vm1734, %v3338, 0
        %3345 = vmatprep.subr.mxu0 0.0
        %3346 = vmatpush1.msra.mxu0 0.0
        %3347 = vmatprep.subr.mxu0 0.0
        %3348 = vmatpush1.msra.mxu0 0.0
        %3349 = vmatprep.subr.mxu0 0.0
        %3350 = vmatpush1.msra.mxu0 0.0
        %3351 = vmatprep.subr.mxu0 0.0
        %3352 = vmatpush1.msra.mxu0 0.0
        %3353 = vmatprep.subr.mxu0 0.0
        %3354 = vmatpush1.msra.mxu0 0.0
        %3355 = vmatprep.subr.mxu0 0.0
        %3356 = vmatpush1.msra.mxu0 0.0
        %3357 = vmatprep.subr.mxu0 0.0
        %3358 = vmatpush1.msra.mxu0 0.0
        %3359 = vmatprep.subr.mxu0 0.0
        %3360 = vmatpush1.msra.mxu0 0.0
        %3361 = vmatprep.subr.mxu0 0.0
        %3362 = vmatpush1.msra.mxu0 0.0
        %3363 = vmatprep.subr.mxu0 0.0
        %3364 = vmatpush1.msra.mxu0 0.0
        %3365 = vmatprep.subr.mxu0 0.0
        %3366 = vmatpush1.msra.mxu0 0.0
        %3367 = vmatprep.subr.mxu0 0.0
        %3368 = vmatpush1.msra.mxu0 0.0
        %3369 = vmatprep.subr.mxu0 0.0
        %3370 = vmatpush1.msra.mxu0 0.0
        %3371 = vmatprep.subr.mxu0 0.0
        %3372 = vmatpush1.msra.mxu0 0.0
        %3373 = vmatprep.subr.mxu0 0.0
        %3374 = vmatpush1.msra.mxu0 0.0
        %3375 = vmatprep.subr.mxu0 0.0
        %3376 = vmatpush1.msra.mxu0 %v3340
        %3377 = vmatprep.subr.mxu0 0.0
        %3378 = vmatpush2.msra.mxu0 0.0
        %3379 = vmatprep.subr.mxu0 0.0
        %3380 = vmatpush2.msra.mxu0 0.0
        %3381 = vmatprep.subr.mxu0 0.0
        %3382 = vmatpush2.msra.mxu0 0.0
        %3383 = vmatprep.subr.mxu0 0.0
        %3384 = vmatpush2.msra.mxu0 0.0
        %3385 = vmatprep.subr.mxu0 0.0
        %3386 = vmatpush2.msra.mxu0 0.0
        %3387 = vmatprep.subr.mxu0 0.0
        %3388 = vmatpush2.msra.mxu0 0.0
        %3389 = vmatprep.subr.mxu0 0.0
        %3390 = vmatpush2.msra.mxu0 0.0
        %3391 = vmatprep.subr.mxu0 0.0
        %3392 = vmatpush2.msra.mxu0 0.0
        %3393 = vmatprep.subr.mxu0 0.0
        %3394 = vmatpush2.msra.mxu0 0.0
        %3395 = vmatprep.subr.mxu0 0.0
        %3396 = vmatpush2.msra.mxu0 0.0
        %3397 = vmatprep.subr.mxu0 0.0
        %3398 = vmatpush2.msra.mxu0 0.0
        %3399 = vmatprep.subr.mxu0 0.0
        %3400 = vmatpush2.msra.mxu0 0.0
        %3401 = vmatprep.subr.mxu0 0.0
        %3402 = vmatpush2.msra.mxu0 0.0
        %3403 = vmatprep.subr.mxu0 0.0
        %3404 = vmatpush2.msra.mxu0 0.0
        %3405 = vmatprep.subr.mxu0 0.0
        %3406 = vmatpush2.msra.mxu0 0.0
        %3407 = vmatprep.subr.mxu0 0.0
        %3408 = vmatpush2.msra.mxu0 0.0
        %3409 = vmatprep.mubr.f32.mxu0 0.0
        %3410 = vmatmul.mubr.f32.gmra.mxu0 %v3343
        %v3411 = vpop.f32.mrf.mxu0
        %v3412 = vadd.f32 0.0, %v3411
        %v3413 = vpop.f32.mrf.mxu0
        %3414 = vdwg.mxu0
        %3415 = vrot.lane.b32.xlu0 %v2915, 104
        %v3416 = vpop.permute.xlu0 %3415
        %3417 = vrot.lane.b32.xlu0 %v2915, 72
        %v3418 = vpop.permute.xlu0 %3417
        %v3419 = vsel %vm1734, %v3416, 0
        %v3421 = vsel %vm1734, %v3418, 0
        %3423 = vmatprep.subr.mxu0 0.0
        %3424 = vmatpush1.xpose.msra.mxu0 0.0
        %3425 = vmatprep.subr.mxu0 0.0
        %3426 = vmatpush1.xpose.msra.mxu0 0.0
        %3427 = vmatprep.subr.mxu0 0.0
        %3428 = vmatpush1.xpose.msra.mxu0 0.0
        %3429 = vmatprep.subr.mxu0 0.0
        %3430 = vmatpush1.xpose.msra.mxu0 0.0
        %3431 = vmatprep.subr.mxu0 0.0
        %3432 = vmatpush1.xpose.msra.mxu0 0.0
        %3433 = vmatprep.subr.mxu0 0.0
        %3434 = vmatpush1.xpose.msra.mxu0 0.0
        %3435 = vmatprep.subr.mxu0 0.0
        %3436 = vmatpush1.xpose.msra.mxu0 0.0
        %3437 = vmatprep.subr.mxu0 0.0
        %3438 = vmatpush1.xpose.msra.mxu0 0.0
        %3439 = vmatprep.subr.mxu0 0.0
        %3440 = vmatpush1.xpose.msra.mxu0 0.0
        %3441 = vmatprep.subr.mxu0 0.0
        %3442 = vmatpush1.xpose.msra.mxu0 0.0
        %3443 = vmatprep.subr.mxu0 0.0
        %3444 = vmatpush1.xpose.msra.mxu0 0.0
        %3445 = vmatprep.subr.mxu0 0.0
        %3446 = vmatpush1.xpose.msra.mxu0 0.0
        %3447 = vmatprep.subr.mxu0 0.0
        %3448 = vmatpush1.xpose.msra.mxu0 0.0
        %3449 = vmatprep.subr.mxu0 0.0
        %3450 = vmatpush1.xpose.msra.mxu0 0.0
        %3451 = vmatprep.subr.mxu0 0.0
        %3452 = vmatpush1.xpose.msra.mxu0 0.0
        %3453 = vmatprep.subr.mxu0 0.0
        %3454 = vmatpush1.xpose.msra.mxu0 %v3421
        %3455 = vmatprep.subr.mxu0 0.0
        %3456 = vmatpush2.xpose.msra.mxu0 0.0
        %3457 = vmatprep.subr.mxu0 0.0
        %3458 = vmatpush2.xpose.msra.mxu0 0.0
        %3459 = vmatprep.subr.mxu0 0.0
        %3460 = vmatpush2.xpose.msra.mxu0 0.0
        %3461 = vmatprep.subr.mxu0 0.0
        %3462 = vmatpush2.xpose.msra.mxu0 0.0
        %3463 = vmatprep.subr.mxu0 0.0
        %3464 = vmatpush2.xpose.msra.mxu0 0.0
        %3465 = vmatprep.subr.mxu0 0.0
        %3466 = vmatpush2.xpose.msra.mxu0 0.0
        %3467 = vmatprep.subr.mxu0 0.0
        %3468 = vmatpush2.xpose.msra.mxu0 0.0
        %3469 = vmatprep.subr.mxu0 0.0
        %3470 = vmatpush2.xpose.msra.mxu0 0.0
        %3471 = vmatprep.subr.mxu0 0.0
        %3472 = vmatpush2.xpose.msra.mxu0 0.0
        %3473 = vmatprep.subr.mxu0 0.0
        %3474 = vmatpush2.xpose.msra.mxu0 0.0
        %3475 = vmatprep.subr.mxu0 0.0
        %3476 = vmatpush2.xpose.msra.mxu0 0.0
        %3477 = vmatprep.subr.mxu0 0.0
        %3478 = vmatpush2.xpose.msra.mxu0 0.0
        %3479 = vmatprep.subr.mxu0 0.0
        %3480 = vmatpush2.xpose.msra.mxu0 0.0
        %3481 = vmatprep.subr.mxu0 0.0
        %3482 = vmatpush2.xpose.msra.mxu0 0.0
        %3483 = vmatprep.subr.mxu0 0.0
        %3484 = vmatpush2.xpose.msra.mxu0 0.0
        %3485 = vmatprep.subr.mxu0 0.0
        %3486 = vmatpush2.xpose.msra.mxu0 0.0
        %3487 = vmatprep.mubr.f32.mxu0 0.0
        %3488 = vmatmul.mubr.f32.gmra.mxu0 %v3419
        %v3489 = vpop.f32.mrf.mxu0
        %v3490 = vadd.f32 0.0, %v3489
        %v3491 = vpop.f32.mrf.mxu0
        %3492 = vdwg.mxu0
        %v3493 = vmul.f32 %v3490, 0.35355338
        %v3494 = vsel %vm1734, %v3493, -inf
        %3495 = vmax.xlane.f32.xlu0 %v3494
        %v3496 = vpop.xlane.xlu0 %3495
        %v3497 = vsub.f32 %v3493, %v3496
        %v3498 = vmul.f32 %v3497, 1.442695
        %v3499 = vpow.pop %v3498
        %v3500 = vsel %vm1734, %v3499, 0.0
        %3501 = vadd.xlane.f32.xlu0 %v3500
        %v3502 = vpop.xlane.xlu0 %3501
        %v3503 = vrcp.pop %v3502
        %v3504 = vmul.f32 %v3499, %v3503
        %3505 = vrot.lane.b32.xlu0 %v2915, 40
        %v3506 = vpop.permute.xlu0 %3505
        %v3509 = vsel %vm1734, %v3504, 0
        %3511 = vmatprep.subr.mxu0 0.0
        %3512 = vmatpush1.msra.mxu0 0.0
        %3513 = vmatprep.subr.mxu0 0.0
        %3514 = vmatpush1.msra.mxu0 0.0
        %3515 = vmatprep.subr.mxu0 0.0
        %3516 = vmatpush1.msra.mxu0 0.0
        %3517 = vmatprep.subr.mxu0 0.0
        %3518 = vmatpush1.msra.mxu0 0.0
        %3519 = vmatprep.subr.mxu0 0.0
        %3520 = vmatpush1.msra.mxu0 0.0
        %3521 = vmatprep.subr.mxu0 0.0
        %3522 = vmatpush1.msra.mxu0 0.0
        %3523 = vmatprep.subr.mxu0 0.0
        %3524 = vmatpush1.msra.mxu0 0.0
        %3525 = vmatprep.subr.mxu0 0.0
        %3526 = vmatpush1.msra.mxu0 0.0
        %3527 = vmatprep.subr.mxu0 0.0
        %3528 = vmatpush1.msra.mxu0 0.0
        %3529 = vmatprep.subr.mxu0 0.0
        %3530 = vmatpush1.msra.mxu0 0.0
        %3531 = vmatprep.subr.mxu0 0.0
        %3532 = vmatpush1.msra.mxu0 0.0
        %3533 = vmatprep.subr.mxu0 0.0
        %3534 = vmatpush1.msra.mxu0 0.0
        %3535 = vmatprep.subr.mxu0 0.0
        %3536 = vmatpush1.msra.mxu0 0.0
        %3537 = vmatprep.subr.mxu0 0.0
        %3538 = vmatpush1.msra.mxu0 0.0
        %3539 = vmatprep.subr.mxu0 0.0
        %3540 = vmatpush1.msra.mxu0 0.0
        %3541 = vmatprep.subr.mxu0 0.0
        %3542 = vmatpush1.msra.mxu0 %v3506
        %3543 = vmatprep.subr.mxu0 0.0
        %3544 = vmatpush2.msra.mxu0 0.0
        %3545 = vmatprep.subr.mxu0 0.0
        %3546 = vmatpush2.msra.mxu0 0.0
        %3547 = vmatprep.subr.mxu0 0.0
        %3548 = vmatpush2.msra.mxu0 0.0
        %3549 = vmatprep.subr.mxu0 0.0
        %3550 = vmatpush2.msra.mxu0 0.0
        %3551 = vmatprep.subr.mxu0 0.0
        %3552 = vmatpush2.msra.mxu0 0.0
        %3553 = vmatprep.subr.mxu0 0.0
        %3554 = vmatpush2.msra.mxu0 0.0
        %3555 = vmatprep.subr.mxu0 0.0
        %3556 = vmatpush2.msra.mxu0 0.0
        %3557 = vmatprep.subr.mxu0 0.0
        %3558 = vmatpush2.msra.mxu0 0.0
        %3559 = vmatprep.subr.mxu0 0.0
        %3560 = vmatpush2.msra.mxu0 0.0
        %3561 = vmatprep.subr.mxu0 0.0
        %3562 = vmatpush2.msra.mxu0 0.0
        %3563 = vmatprep.subr.mxu0 0.0
        %3564 = vmatpush2.msra.mxu0 0.0
        %3565 = vmatprep.subr.mxu0 0.0
        %3566 = vmatpush2.msra.mxu0 0.0
        %3567 = vmatprep.subr.mxu0 0.0
        %3568 = vmatpush2.msra.mxu0 0.0
        %3569 = vmatprep.subr.mxu0 0.0
        %3570 = vmatpush2.msra.mxu0 0.0
        %3571 = vmatprep.subr.mxu0 0.0
        %3572 = vmatpush2.msra.mxu0 0.0
        %3573 = vmatprep.subr.mxu0 0.0
        %3574 = vmatpush2.msra.mxu0 0.0
        %3575 = vmatprep.mubr.f32.mxu0 0.0
        %3576 = vmatmul.mubr.f32.gmra.mxu0 %v3509
        %v3577 = vpop.f32.mrf.mxu0
        %v3578 = vadd.f32 0.0, %v3577
        %v3579 = vpop.f32.mrf.mxu0
        %3580 = vdwg.mxu0
        %3582 = vrot.lane.b32.xlu0 %v3246, 8
        %v3583 = vpop.permute.xlu0 %3582
        %3586 = vrot.lane.b32.xlu0 %v3412, 16
        %v3587 = vpop.permute.xlu0 %3586
        %3590 = vrot.lane.b32.xlu0 %v3578, 24
        %v3591 = vpop.permute.xlu0 %3590
        %v3593 = vsel %vm1734, %v3080, %v3583
        %v3594 = vsel %vm1467, %v3593, %v3587
        %v3595 = vsel %vm2473, %v3594, %v3591
        %v3596 = vld [vmem:[%s49] sm:$0xff]
        %v3597 = vld [vmem:[%s49 + $0x8] sm:$0xff]
        %v3598 = vld [vmem:[%s49 + $0x10] sm:$0xff]
        %v3599 = vld [vmem:[%s49 + $0x18] sm:$0xff]
        %v3600 = vld [vmem:[#allocation26] sm:$0x1]
        %v3602 = vlaneseq
        %v3603 = vshrl.u32 %v3602, 7
        %v3604 = vsub.s32 0, %v3603
        %v3605 = vrot.slane %v3600, %v3604
        %v3608 = vsel %vm1324, %v3595, 0
        %3610 = vmatprep.subr.mxu0 0.0
        %3611 = vmatpush1.msra.mxu0 0.0
        %3612 = vmatprep.subr.mxu0 0.0
        %3613 = vmatpush1.msra.mxu0 0.0
        %3614 = vmatprep.subr.mxu0 0.0
        %3615 = vmatpush1.msra.mxu0 0.0
        %3616 = vmatprep.subr.mxu0 0.0
        %3617 = vmatpush1.msra.mxu0 0.0
        %3618 = vmatprep.subr.mxu0 0.0
        %3619 = vmatpush1.msra.mxu0 0.0
        %3620 = vmatprep.subr.mxu0 0.0
        %3621 = vmatpush1.msra.mxu0 0.0
        %3622 = vmatprep.subr.mxu0 0.0
        %3623 = vmatpush1.msra.mxu0 0.0
        %3624 = vmatprep.subr.mxu0 0.0
        %3625 = vmatpush1.msra.mxu0 0.0
        %3626 = vmatprep.subr.mxu0 0.0
        %3627 = vmatpush1.msra.mxu0 0.0
        %3628 = vmatprep.subr.mxu0 0.0
        %3629 = vmatpush1.msra.mxu0 0.0
        %3630 = vmatprep.subr.mxu0 0.0
        %3631 = vmatpush1.msra.mxu0 0.0
        %3632 = vmatprep.subr.mxu0 0.0
        %3633 = vmatpush1.msra.mxu0 0.0
        %3634 = vmatprep.subr.mxu0 0.0
        %3635 = vmatpush1.msra.mxu0 %v3599
        %3636 = vmatprep.subr.mxu0 0.0
        %3637 = vmatpush1.msra.mxu0 %v3598
        %3638 = vmatprep.subr.mxu0 0.0
        %3639 = vmatpush1.msra.mxu0 %v3597
        %3640 = vmatprep.subr.mxu0 0.0
        %3641 = vmatpush1.msra.mxu0 %v3596
        %3642 = vmatprep.subr.mxu0 0.0
        %3643 = vmatpush2.msra.mxu0 0.0
        %3644 = vmatprep.subr.mxu0 0.0
        %3645 = vmatpush2.msra.mxu0 0.0
        %3646 = vmatprep.subr.mxu0 0.0
        %3647 = vmatpush2.msra.mxu0 0.0
        %3648 = vmatprep.subr.mxu0 0.0
        %3649 = vmatpush2.msra.mxu0 0.0
        %3650 = vmatprep.subr.mxu0 0.0
        %3651 = vmatpush2.msra.mxu0 0.0
        %3652 = vmatprep.subr.mxu0 0.0
        %3653 = vmatpush2.msra.mxu0 0.0
        %3654 = vmatprep.subr.mxu0 0.0
        %3655 = vmatpush2.msra.mxu0 0.0
        %3656 = vmatprep.subr.mxu0 0.0
        %3657 = vmatpush2.msra.mxu0 0.0
        %3658 = vmatprep.subr.mxu0 0.0
        %3659 = vmatpush2.msra.mxu0 0.0
        %3660 = vmatprep.subr.mxu0 0.0
        %3661 = vmatpush2.msra.mxu0 0.0
        %3662 = vmatprep.subr.mxu0 0.0
        %3663 = vmatpush2.msra.mxu0 0.0
        %3664 = vmatprep.subr.mxu0 0.0
        %3665 = vmatpush2.msra.mxu0 0.0
        %3666 = vmatprep.subr.mxu0 0.0
        %3667 = vmatpush2.msra.mxu0 0.0
        %3668 = vmatprep.subr.mxu0 0.0
        %3669 = vmatpush2.msra.mxu0 0.0
        %3670 = vmatprep.subr.mxu0 0.0
        %3671 = vmatpush2.msra.mxu0 0.0
        %3672 = vmatprep.subr.mxu0 0.0
        %3673 = vmatpush2.msra.mxu0 0.0
        %3674 = vmatprep.mubr.f32.mxu0 0.0
        %3675 = vmatmul.mubr.f32.gmra.mxu0 %v3608
        %v3676 = vpop.f32.mrf.mxu0
        %v3677 = vadd.f32 %v3605, %v3676
        %v3678 = vpop.f32.mrf.mxu0
        %3679 = vdwg.mxu0
        %v3680 = vadd.f32 %v3677, %v2645
        %v3681 = vld [vmem:[#allocation28] sm:$0x1]
        %v3682 = vld [vmem:[#allocation29] sm:$0x1]
        %v3683 = vsel %vm1324, %v3680, 0.0
        %3684 = vadd.xlane.f32.xlu0 %v3683
        %v3685 = vpop.xlane.xlu0 %3684
        %v3686 = vmul.f32 %v3685, %v1328
        %v3687 = vsub.f32 %v3680, %v3686
        %v3688 = vmul.f32 %v3687, %v3687
        %v3689 = vsel %vm1324, %v3688, 0.0
        %3690 = vadd.xlane.f32.xlu0 %v3689
        %v3691 = vpop.xlane.xlu0 %3690
        %v3692 = vmul.f32 %v3691, %v1328
        %v3693 = vadd.f32 %v3692, 1e-05
        %v3694 = vrsqrt.pop %v3693
        %v3695 = vmul.f32 %v3687, %v3694
        %v3697 = vlaneseq
        %v3698 = vshrl.u32 %v3697, 7
        %v3699 = vsub.s32 0, %v3698
        %v3700 = vrot.slane %v3681, %v3699
        %v3702 = vmul.f32 %v3695, %v3700
        %v3704 = vlaneseq
        %v3705 = vshrl.u32 %v3704, 7
        %v3706 = vsub.s32 0, %v3705
        %v3707 = vrot.slane %v3682, %v3706
        %v3709 = vadd.f32 %v3702, %v3707
        %v3710 = vld [vmem:[%s57] sm:$0xff]
        %v3711 = vld [vmem:[%s57 + $0x8] sm:$0xff]
        %v3712 = vld [vmem:[%s57 + $0x10] sm:$0xff]
        %v3713 = vld [vmem:[%s57 + $0x18] sm:$0xff]
        %v3715 = vsel %vm1324, %v3709, 0
        %3717 = vmatprep.subr.mxu0 0.0
        %3718 = vmatpush1.msra.mxu0 0.0
        %3719 = vmatprep.subr.mxu0 0.0
        %3720 = vmatpush1.msra.mxu0 0.0
        %3721 = vmatprep.subr.mxu0 0.0
        %3722 = vmatpush1.msra.mxu0 0.0
        %3723 = vmatprep.subr.mxu0 0.0
        %3724 = vmatpush1.msra.mxu0 0.0
        %3725 = vmatprep.subr.mxu0 0.0
        %3726 = vmatpush1.msra.mxu0 0.0
        %3727 = vmatprep.subr.mxu0 0.0
        %3728 = vmatpush1.msra.mxu0 0.0
        %3729 = vmatprep.subr.mxu0 0.0
        %3730 = vmatpush1.msra.mxu0 0.0
        %3731 = vmatprep.subr.mxu0 0.0
        %3732 = vmatpush1.msra.mxu0 0.0
        %3733 = vmatprep.subr.mxu0 0.0
        %3734 = vmatpush1.msra.mxu0 0.0
        %3735 = vmatprep.subr.mxu0 0.0
        %3736 = vmatpush1.msra.mxu0 0.0
        %3737 = vmatprep.subr.mxu0 0.0
        %3738 = vmatpush1.msra.mxu0 0.0
        %3739 = vmatprep.subr.mxu0 0.0
        %3740 = vmatpush1.msra.mxu0 0.0
        %3741 = vmatprep.subr.mxu0 0.0
        %3742 = vmatpush1.msra.mxu0 %v3713
        %3743 = vmatprep.subr.mxu0 0.0
        %3744 = vmatpush1.msra.mxu0 %v3712
        %3745 = vmatprep.subr.mxu0 0.0
        %3746 = vmatpush1.msra.mxu0 %v3711
        %3747 = vmatprep.subr.mxu0 0.0
        %3748 = vmatpush1.msra.mxu0 %v3710
        %3749 = vmatprep.subr.mxu0 0.0
        %3750 = vmatpush2.msra.mxu0 0.0
        %3751 = vmatprep.subr.mxu0 0.0
        %3752 = vmatpush2.msra.mxu0 0.0
        %3753 = vmatprep.subr.mxu0 0.0
        %3754 = vmatpush2.msra.mxu0 0.0
        %3755 = vmatprep.subr.mxu0 0.0
        %3756 = vmatpush2.msra.mxu0 0.0
        %3757 = vmatprep.subr.mxu0 0.0
        %3758 = vmatpush2.msra.mxu0 0.0
        %3759 = vmatprep.subr.mxu0 0.0
        %3760 = vmatpush2.msra.mxu0 0.0
        %3761 = vmatprep.subr.mxu0 0.0
        %3762 = vmatpush2.msra.mxu0 0.0
        %3763 = vmatprep.subr.mxu0 0.0
        %3764 = vmatpush2.msra.mxu0 0.0
        %3765 = vmatprep.subr.mxu0 0.0
        %3766 = vmatpush2.msra.mxu0 0.0
        %3767 = vmatprep.subr.mxu0 0.0
        %3768 = vmatpush2.msra.mxu0 0.0
        %3769 = vmatprep.subr.mxu0 0.0
        %3770 = vmatpush2.msra.mxu0 0.0
        %3771 = vmatprep.subr.mxu0 0.0
        %3772 = vmatpush2.msra.mxu0 0.0
        %3773 = vmatprep.subr.mxu0 0.0
        %3774 = vmatpush2.msra.mxu0 0.0
        %3775 = vmatprep.subr.mxu0 0.0
        %3776 = vmatpush2.msra.mxu0 0.0
        %3777 = vmatprep.subr.mxu0 0.0
        %3778 = vmatpush2.msra.mxu0 0.0
        %3779 = vmatprep.subr.mxu0 0.0
        %3780 = vmatpush2.msra.mxu0 0.0
        %3781 = vmatprep.mubr.f32.mxu0 0.0
        %3782 = vmatmul.mubr.f32.gmra.mxu0 %v3715
        %v3783 = vpop.f32.mrf.mxu0
        %v3784 = vadd.f32 0.0, %v3783
        %v3785 = vpop.f32.mrf.mxu0
        %3786 = vdwg.mxu0
        %v3787 = vld [vmem:[#allocation31] sm:$0xff]
        %v3788 = vld [vmem:[#allocation31 + $0x8] sm:$0xff]
        %v3789 = vld [vmem:[%s61] sm:$0x1]
        %v3791 = vlaneseq
        %v3792 = vshrl.u32 %v3791, 7
        %v3793 = vsub.s32 0, %v3792
        %v3794 = vrot.slane %v3789, %v3793
        %v3797 = vsel %vm1467, %v2830, 0
        %v3800 = vsel %vm1467, %v2831, 0
        %v3803 = vsel %vm1467, %v2832, 0
        %v3806 = vsel %vm1467, %v2833, 0
        %3808 = vmatprep.subr.mxu0 0.0
        %3809 = vmatpush1.msra.mxu0 0.0
        %3810 = vmatprep.subr.mxu0 0.0
        %3811 = vmatpush1.msra.mxu0 0.0
        %3812 = vmatprep.subr.mxu0 0.0
        %3813 = vmatpush1.msra.mxu0 0.0
        %3814 = vmatprep.subr.mxu0 0.0
        %3815 = vmatpush1.msra.mxu0 0.0
        %3816 = vmatprep.subr.mxu0 0.0
        %3817 = vmatpush1.msra.mxu0 0.0
        %3818 = vmatprep.subr.mxu0 0.0
        %3819 = vmatpush1.msra.mxu0 0.0
        %3820 = vmatprep.subr.mxu0 0.0
        %3821 = vmatpush1.msra.mxu0 0.0
        %3822 = vmatprep.subr.mxu0 0.0
        %3823 = vmatpush1.msra.mxu0 0.0
        %3824 = vmatprep.subr.mxu0 0.0
        %3825 = vmatpush1.msra.mxu0 0.0
        %3826 = vmatprep.subr.mxu0 0.0
        %3827 = vmatpush1.msra.mxu0 0.0
        %3828 = vmatprep.subr.mxu0 0.0
        %3829 = vmatpush1.msra.mxu0 0.0
        %3830 = vmatprep.subr.mxu0 0.0
        %3831 = vmatpush1.msra.mxu0 0.0
        %3832 = vmatprep.subr.mxu0 0.0
        %3833 = vmatpush1.msra.mxu0 0.0
        %3834 = vmatprep.subr.mxu0 0.0
        %3835 = vmatpush1.msra.mxu0 0.0
        %3836 = vmatprep.subr.mxu0 0.0
        %3837 = vmatpush1.msra.mxu0 %v3788
        %3838 = vmatprep.subr.mxu0 0.0
        %3839 = vmatpush1.msra.mxu0 %v3787
        %3840 = vmatprep.subr.mxu0 0.0
        %3841 = vmatpush2.msra.mxu0 0.0
        %3842 = vmatprep.subr.mxu0 0.0
        %3843 = vmatpush2.msra.mxu0 0.0
        %3844 = vmatprep.subr.mxu0 0.0
        %3845 = vmatpush2.msra.mxu0 0.0
        %3846 = vmatprep.subr.mxu0 0.0
        %3847 = vmatpush2.msra.mxu0 0.0
        %3848 = vmatprep.subr.mxu0 0.0
        %3849 = vmatpush2.msra.mxu0 0.0
        %3850 = vmatprep.subr.mxu0 0.0
        %3851 = vmatpush2.msra.mxu0 0.0
        %3852 = vmatprep.subr.mxu0 0.0
        %3853 = vmatpush2.msra.mxu0 0.0
        %3854 = vmatprep.subr.mxu0 0.0
        %3855 = vmatpush2.msra.mxu0 0.0
        %3856 = vmatprep.subr.mxu0 0.0
        %3857 = vmatpush2.msra.mxu0 0.0
        %3858 = vmatprep.subr.mxu0 0.0
        %3859 = vmatpush2.msra.mxu0 0.0
        %3860 = vmatprep.subr.mxu0 0.0
        %3861 = vmatpush2.msra.mxu0 0.0
        %3862 = vmatprep.subr.mxu0 0.0
        %3863 = vmatpush2.msra.mxu0 0.0
        %3864 = vmatprep.subr.mxu0 0.0
        %3865 = vmatpush2.msra.mxu0 0.0
        %3866 = vmatprep.subr.mxu0 0.0
        %3867 = vmatpush2.msra.mxu0 0.0
        %3868 = vmatprep.subr.mxu0 0.0
        %3869 = vmatpush2.msra.mxu0 0.0
        %3870 = vmatprep.subr.mxu0 0.0
        %3871 = vmatpush2.msra.mxu0 0.0
        %3872 = vmatprep.mubr.f32.mxu0 0.0
        %3873 = vmatmul.mubr.f32.gmra.mxu0 %v3797
        %v3874 = vpop.f32.mrf.mxu0
        %v3875 = vadd.f32 %v3794, %v3874
        %v3876 = vpop.f32.mrf.mxu0
        %3877 = vmatprep.mubr.f32.mxu0 0.0
        %3878 = vmatmul.mubr.f32.gmra.mxu0 %v3800
        %v3879 = vpop.f32.mrf.mxu0
        %v3880 = vadd.f32 %v3794, %v3879
        %v3881 = vpop.f32.mrf.mxu0
        %3882 = vmatprep.mubr.f32.mxu0 0.0
        %3883 = vmatmul.mubr.f32.gmra.mxu0 %v3803
        %v3884 = vpop.f32.mrf.mxu0
        %v3885 = vadd.f32 %v3794, %v3884
        %v3886 = vpop.f32.mrf.mxu0
        %3887 = vmatprep.mubr.f32.mxu0 0.0
        %3888 = vmatmul.mubr.f32.gmra.mxu0 %v3806
        %v3889 = vpop.f32.mrf.mxu0
        %v3890 = vadd.f32 %v3794, %v3889
        %v3891 = vpop.f32.mrf.mxu0
        %3892 = vdwg.mxu0
        %v3893 = vadd.f32 %v3784, %v3875
        %v3894 = vadd.f32 %v3784, %v3880
        %v3895 = vadd.f32 %v3784, %v3885
        %v3896 = vadd.f32 %v3784, %v3890
        %v3897 = vadd.f32 %v3893, %v1228
        %v3898 = vadd.f32 %v3894, %v1229
        %v3899 = vadd.f32 %v3895, %v1230
        %v3900 = vadd.f32 %v3896, %v1231
        %3901 = vst.msk [vmem:[%s1220] sm:$0xff] %vm1248, %v3897
        %3902 = vst.msk [vmem:[%s1220 + $0x8] sm:$0xff] %vm1248, %v3898
        %3903 = vst.msk [vmem:[%s1220 + $0x10] sm:$0xff] %vm1248, %v3899
        %3904 = vst.msk [vmem:[%s1220 + $0x18] sm:$0xff] %vm1248, %v3900
        %s3905 = sand.u32 %s758, 1
        %s3906 = scalar_lea.sflag [#allocation4], %s3905
        %s3907 = sand.u32 %s758, 1
        %s3908 = smul.addr %s3907, 32
        %s3909 = scalar_lea.vmem [#allocation32], %s3908
        // Predicated region
        $region221: #{tpu_custom_call.1} parent=143 // pred_check
          %p3910 = pneg %p768
        $region222: #{tpu_custom_call.1} parent=143 // pred_check_branch
          %3912 = sbr.rel (%p3910) target = $region224
        $region223: #{tpu_custom_call.1} parent=143 // pred_region
          %s3913 = smul.u32 4, %s89
          %s3915 = ssub.s32 512, 512
          %3916 = vsyncadd %s3906, %s3915
          %s3917 = smul.addr %s3913, 128
          %s3918 = scalar_lea.hbm %s63, %s3917
          %s3919 = sshll.u32 %s3909, 4
          %s3920 = int_to_ptr.vmem [resolvable:$true] %s3919
          %3925 = dma.vmem_to_hbm [thread:$0]  %s3920, 512, %s3918, %s3906, 128, 128, 8
        $region224: #{tpu_custom_call.1} parent=143 // pred_fallthru
          _
      $region144: #{tpu_custom_call.1} parent=5 // pred_fallthru
        _
      %p3926 = scmp.le.s32.totalorder 2, %s84
      // Predicated region
      $region225: #{tpu_custom_call.1} parent=5 // pred_check
        %p3927 = pneg %p3926
      $region226: #{tpu_custom_call.1} parent=5 // pred_check_branch
        %3929 = sbr.rel (%p3927) target = $region228
      $region227: #{tpu_custom_call.1} parent=5 // pred_region
        %s3930 = ssub.s32 %s84, 2
        // Predicated region
        $region229: #{tpu_custom_call.1} parent=227 // pred_check
          %p3931 = pneg %p774
        $region230: #{tpu_custom_call.1} parent=227 // pred_check_branch
          %3933 = sbr.rel (%p3931) target = $region232
        $region231: #{tpu_custom_call.1} parent=227 // pred_region
          %s3934 = sand.u32 %s759, 1
          %s3935 = scalar_lea.sflag [#allocation4], %s3934
          %s3936 = sand.u32 %s759, 1
          %s3937 = smul.addr %s3936, 32
          %s3938 = scalar_lea.vmem [#allocation32], %s3937
          %3939 = dma.done %s3935, 512
        $region232: #{tpu_custom_call.1} parent=227 // pred_fallthru
          _
      $region228: #{tpu_custom_call.1} parent=5 // pred_fallthru
        _
    $region6: #{tpu_custom_call.1} parent=1 // loop_footer
      %s88 = sadd.s32 1, %s84
    $region7: #{tpu_custom_call.1} parent=1 // loop_footer_branch
      %83 = sbr.rel target = $region3
    $region8: #{tpu_custom_call.1} parent=1 // loop_exit
      _
    %3940 = vsyncpa [#allocation3], 1
    %s3941 = scalar_lea.sflag [#allocation3], 1
    %3942 = vsyncpa %s3941, 1
    %3943 = vsyncpa [#allocation6], 1
    %3944 = vsyncpa [#allocation9], 1
    %3945 = vsyncpa [#allocation12], 1
    %3946 = vsyncpa [#allocation15], 1
    %3947 = vsyncpa [#allocation18], 1
    %3948 = vsyncpa [#allocation21], 1
    %3949 = vsyncpa [#allocation24], 1
    %3950 = vsyncpa [#allocation27], 1
    %3951 = vsyncpa [#allocation30], 1
    %3952 = vsyncpa [#allocation4], 1
    %s3953 = scalar_lea.sflag [#allocation4], 1
    %3954 = vsyncpa %s3953, 1

</llo_original>
